<compile_context>
chip_gen: v6e
topology: v6e:2x2x1
jax: 0.10.0
libtpu: 0.0.40
codegen_flags: <defaults>
</compile_context>

<pallas_src>
import jax
import jax.numpy as jnp
from jax import lax
from jax.experimental import pallas as pl
from jax.experimental.pallas import tpu as pltpu


def _vmem_spec():
    return pl.BlockSpec(memory_space=pltpu.MemorySpace.VMEM)


# ----------------------------- fused kernel ---------------------------------
def gnn_captioner_kernel(
        x_ref, adj_ref,
        w1_ref, a_src1_ref, a_dst1_ref, b1_ref,
        w2_ref, a_src2_ref, a_dst2_ref, b2_ref,
        w_ih_ref, w_hh_ref, b_lstm_ref,
        w_fc_ref, b_fc_ref,
        out_ref,
        gx_ref, hid_ref):
    """GAT -> ReLU -> GAT -> LSTM -> Linear, everything resident in VMEM."""
    neg_slope = 0.2

    # Dense adjacency mask adj[target, source] != 0 (int8 in HBM), loaded once
    # and shared by both GAT layers.
    mask = adj_ref[...].astype(jnp.float32) > 0.0            # [N, N] bool

    def gat(x_bf16, w_ref, a_src_ref, a_dst_ref, b_ref, apply_relu):
        # h = x @ W  (bf16 MXU, f32 accumulate)                       [N, H]
        h = jnp.dot(x_bf16, w_ref[...], preferred_element_type=jnp.float32)
        # target term d_i = a_dst . h_i  -> [N, 1] (lane reduce)
        d_col = jnp.sum(h * a_dst_ref[...], axis=-1, keepdims=True)
        # source term s_j = a_src . h_j  -> [1, N] directly via a
        # transposed-RHS MXU matmul (no XLU transpose of an [N,1] column).
        s_row = lax.dot_general(a_src_ref[...], h,
                                (((1,), (1,)), ((), ())),
                                preferred_element_type=jnp.float32)
        # e[i, j] = LeakyReLU(d_i + s_j) for edge j -> i
        e = d_col + s_row
        e = jnp.where(e > 0, e, neg_slope * e)
        e = jnp.where(mask, e, -1e30)
        e = e - jnp.max(e, axis=-1, keepdims=True)
        # No second mask: self-loops guarantee a finite row max, so masked
        # entries underflow to exactly 0 in the exp.
        p = jnp.exp(e)
        alpha = p / jnp.sum(p, axis=-1, keepdims=True)        # softmax over src
        out = jnp.dot(alpha.astype(jnp.bfloat16), h.astype(jnp.bfloat16),
                      preferred_element_type=jnp.float32) + b_ref[...]
        if apply_relu:
            out = jnp.maximum(out, 0.0)
        return out

    # x = F.relu(gnn1(x, edge_index)); x = gnn2(x, edge_index)
    h1 = gat(x_ref[...], w1_ref, a_src1_ref, a_dst1_ref, b1_ref, True)
    h2 = gat(h1.astype(jnp.bfloat16), w2_ref, a_src2_ref, a_dst2_ref, b2_ref,
             False)

    # --------------------------------- LSTM ---------------------------------
    # Hoisted input projection: one [N,H]x[H,4H] MXU matmul outside the loop.
    gx_ref[...] = (jnp.dot(h2.astype(jnp.bfloat16), w_ih_ref[...],
                           preferred_element_type=jnp.float32)
                   + b_lstm_ref[...])                          # [N, 4H]

    n, hd = hid_ref.shape

    def step(t, carry):
        h_prev, c_prev = carry
        gates = (gx_ref[pl.ds(t, 1), :]
                 + jnp.dot(h_prev.astype(jnp.bfloat16), w_hh_ref[...],
                           preferred_element_type=jnp.float32))    # [1, 4H]
        i = jax.nn.sigmoid(gates[:, 0 * hd:1 * hd])   # PyTorch gate order
        f = jax.nn.sigmoid(gates[:, 1 * hd:2 * hd])   # i, f, g, o
        g = jnp.tanh(gates[:, 2 * hd:3 * hd])
        o = jax.nn.sigmoid(gates[:, 3 * hd:4 * hd])
        c = f * c_prev + i * g
        h = o * jnp.tanh(c)
        hid_ref[pl.ds(t, 1), :] = h
        return (h, c)

    zeros = jnp.zeros((1, hd), jnp.float32)
    # N is small & static: fully unroll so the LLO scheduler can overlap the
    # tiny recurrent matmul with the EUP sigmoid/tanh and VPU gate math.
    lax.fori_loop(0, n, step, (zeros, zeros), unroll=True)

    # ---------------------------------- FC ----------------------------------
    # Vocab is padded to a multiple of 128 -> one lane-dense (unmasked) store.
    out_ref[...] = (jnp.dot(hid_ref[...].astype(jnp.bfloat16), w_fc_ref[...],
                            preferred_element_type=jnp.float32)
                    + b_fc_ref[...])


# ------------------------------ forward wrapper ------------------------------
def gnn_captioner_forward(x, adj_i8, params, vocab):
    n = x.shape[0]
    hidden = params["w_hh_t"].shape[0]
    vpad = params["w_fc"].shape[1]

    inputs = (
        x.astype(jnp.bfloat16), adj_i8,
        params["w1"].astype(jnp.bfloat16), params["a_src1"],
        params["a_dst1"], params["b1"],
        params["w2"].astype(jnp.bfloat16), params["a_src2"],
        params["a_dst2"], params["b2"],
        params["w_ih_t"].astype(jnp.bfloat16),
        params["w_hh_t"].astype(jnp.bfloat16), params["b_lstm"],
        params["w_fc"].astype(jnp.bfloat16), params["b_fc"],
    )
    logits_pad = pl.pallas_call(
        gnn_captioner_kernel,
        out_shape=jax.ShapeDtypeStruct((n, vpad), jnp.float32),
        in_specs=[_vmem_spec()] * len(inputs),
        out_specs=_vmem_spec(),
        scratch_shapes=[pltpu.VMEM((n, 4 * hidden), jnp.float32),  # gates_x
                        pltpu.VMEM((n, hidden), jnp.float32)],      # hiddens
    )(*inputs)
    # Strip the vocab padding outside the kernel.
    return logits_pad[:, :vocab]


# --------------------------------- params ------------------------------------
def make_params(key, input_dim, hidden_dim, vocab):
    ks = jax.random.split(key, 12)
    s = 0.1
    vpad = ((vocab + 127) // 128) * 128
    w_fc = s * jax.random.normal(ks[11], (hidden_dim, vocab), jnp.float32)
    w_fc = jnp.pad(w_fc, ((0, 0), (0, vpad - vocab)))   # lane-dense FC output
    return {
        # GATConv 1 (single head): lin weight stored pre-transposed [Din, H]
        "w1": s * jax.random.normal(ks[0], (input_dim, hidden_dim), jnp.float32),
        "a_src1": s * jax.random.normal(ks[1], (1, hidden_dim), jnp.float32),
        "a_dst1": s * jax.random.normal(ks[2], (1, hidden_dim), jnp.float32),
        "b1": s * jax.random.normal(ks[3], (1, hidden_dim), jnp.float32),
        # GATConv 2
        "w2": s * jax.random.normal(ks[4], (hidden_dim, hidden_dim), jnp.float32),
        "a_src2": s * jax.random.normal(ks[5], (1, hidden_dim), jnp.float32),
        "a_dst2": s * jax.random.normal(ks[6], (1, hidden_dim), jnp.float32),
        "b2": s * jax.random.normal(ks[7], (1, hidden_dim), jnp.float32),
        # LSTM (PyTorch gate order i,f,g,o), weights pre-transposed [Hin, 4H]
        "w_ih_t": s * jax.random.normal(ks[8], (hidden_dim, 4 * hidden_dim),
                                        jnp.float32),
        "w_hh_t": s * jax.random.normal(ks[9], (hidden_dim, 4 * hidden_dim),
                                        jnp.float32),
        "b_lstm": s * jax.random.normal(ks[10], (1, 4 * hidden_dim),
                                        jnp.float32),  # b_ih + b_hh combined
        # Final Linear(hidden_dim, 1000), pre-transposed and padded [H, Vpad]
        "w_fc": w_fc,
        "b_fc": jnp.zeros((1, vpad), jnp.float32),
    }


def edge_index_to_dense_adj(edge_index, num_nodes):
    # adj[target, source] = 1 for every edge, plus self-loops (as PyG GATConv
    # adds by default). int8 to minimize HBM/VMEM traffic; plain-JAX glue.
    src, dst = edge_index[0], edge_index[1]
    adj = jnp.zeros((num_nodes, num_nodes), jnp.int8)
    adj = adj.at[dst, src].set(1)
    diag = jnp.arange(num_nodes)
    adj = adj.at[diag, diag].set(1)
    return adj


if __name__ == "__main__":
    N = 8             # number of graph nodes (== LSTM sequence length)
    INPUT_DIM = 128   # small, lane-aligned stand-in for 512
    HIDDEN_DIM = 128  # small, lane-aligned stand-in for 256
    VOCAB = 1000      # as in nn.Linear(hidden_dim, 1000); padded to 1024 in-kernel

    key = jax.random.PRNGKey(0)
    k_x, k_p = jax.random.split(key)

    # data.x
    x = jax.random.normal(k_x, (N, INPUT_DIM), jnp.float32)
    # data.edge_index: bidirectional ring graph, shape [2, 2N]
    src = jnp.arange(N)
    dst = (src + 1) % N
    edge_index = jnp.stack([jnp.concatenate([src, dst]),
                            jnp.concatenate([dst, src])], axis=0)
    adj = edge_index_to_dense_adj(edge_index, N)

    params = make_params(k_p, INPUT_DIM, HIDDEN_DIM, VOCAB)

    logits = gnn_captioner_forward(x, adj, params, VOCAB)
    logits = jax.block_until_ready(logits)

    assert logits.shape == (N, VOCAB), logits.shape
    assert jnp.all(jnp.isfinite(logits))
    print("KERNEL_OK")
</pallas_src>

<mosaic_0001>
module attributes {stable_mosaic.version = 11 : i64} {
  func.func @gnn_captioner_kernel(%arg0: memref<8x128xbf16, #tpu.memory_space<vmem>>, %arg1: memref<8x8xi8, #tpu.memory_space<vmem>>, %arg2: memref<128x128xbf16, #tpu.memory_space<vmem>>, %arg3: memref<1x128xf32, #tpu.memory_space<vmem>>, %arg4: memref<1x128xf32, #tpu.memory_space<vmem>>, %arg5: memref<1x128xf32, #tpu.memory_space<vmem>>, %arg6: memref<128x128xbf16, #tpu.memory_space<vmem>>, %arg7: memref<1x128xf32, #tpu.memory_space<vmem>>, %arg8: memref<1x128xf32, #tpu.memory_space<vmem>>, %arg9: memref<1x128xf32, #tpu.memory_space<vmem>>, %arg10: memref<128x512xbf16, #tpu.memory_space<vmem>>, %arg11: memref<128x512xbf16, #tpu.memory_space<vmem>>, %arg12: memref<1x512xf32, #tpu.memory_space<vmem>>, %arg13: memref<128x1024xbf16, #tpu.memory_space<vmem>>, %arg14: memref<1x1024xf32, #tpu.memory_space<vmem>>, %arg15: memref<8x1024xf32, #tpu.memory_space<vmem>>, %arg16: memref<8x512xf32, #tpu.memory_space<vmem>>, %arg17: memref<8x128xf32, #tpu.memory_space<vmem>>) attributes {dimension_semantics = [], scalar_prefetch = 0 : i64, scratch_operands = 2 : i64, tpu.core_type = #tpu.core_type<tc>} {
    %c0 = arith.constant 0 : index
    %c0_0 = arith.constant 0 : index
    %0 = vector.load %arg1[%c0, %c0_0] : memref<8x8xi8, #tpu.memory_space<vmem>>, vector<8x8xi8>
    %1 = arith.sitofp %0 : vector<8x8xi8> to vector<8x8xf32>
    %cst = arith.constant 0.000000e+00 : f32
    %2 = vector.broadcast %cst : f32 to vector<8x8xf32>
    %3 = arith.cmpf ogt, %1, %2 : vector<8x8xf32>
    %c0_1 = arith.constant 0 : index
    %c0_2 = arith.constant 0 : index
    %4 = vector.load %arg0[%c0_1, %c0_2] : memref<8x128xbf16, #tpu.memory_space<vmem>>, vector<8x128xbf16>
    %c0_3 = arith.constant 0 : index
    %c0_4 = arith.constant 0 : index
    %5 = vector.load %arg2[%c0_3, %c0_4] : memref<128x128xbf16, #tpu.memory_space<vmem>>, vector<128x128xbf16>
    %cst_5 = arith.constant dense<0.000000e+00> : vector<8x128xf32>
    %6 = tpu.matmul %4, %5, %cst_5 {dimension_numbers = #tpu.dot_dimension_numbers<[1], [0], [0], [1], [0, 0, 1, 1], [], []>} : vector<8x128xbf16>, vector<128x128xbf16>, vector<8x128xf32> -> vector<8x128xf32>
    %c0_6 = arith.constant 0 : index
    %c0_7 = arith.constant 0 : index
    %7 = vector.load %arg4[%c0_6, %c0_7] : memref<1x128xf32, #tpu.memory_space<vmem>>, vector<1x128xf32>
    %8 = vector.broadcast %7 : vector<1x128xf32> to vector<8x128xf32>
    %9 = arith.mulf %6, %8 : vector<8x128xf32>
    %cst_8 = arith.constant dense<0.000000e+00> : vector<8xf32>
    %10 = vector.multi_reduction <add>, %9, %cst_8 [1] : vector<8x128xf32> to vector<8xf32>
    %11 = vector.shape_cast %10 : vector<8xf32> to vector<8x1xf32>
    %c0_9 = arith.constant 0 : index
    %c0_10 = arith.constant 0 : index
    %12 = vector.load %arg3[%c0_9, %c0_10] : memref<1x128xf32, #tpu.memory_space<vmem>>, vector<1x128xf32>
    %cst_11 = arith.constant dense<0.000000e+00> : vector<1x8xf32>
    %13 = tpu.matmul %12, %6, %cst_11 {dimension_numbers = #tpu.dot_dimension_numbers<[1], [1], [0], [0], [0, 0, 1, 0], [], []>} : vector<1x128xf32>, vector<8x128xf32>, vector<1x8xf32> -> vector<1x8xf32>
    %14 = vector.broadcast %11 : vector<8x1xf32> to vector<8x8xf32>
    %15 = vector.broadcast %13 : vector<1x8xf32> to vector<8x8xf32>
    %16 = arith.addf %14, %15 : vector<8x8xf32>
    %cst_12 = arith.constant 0.000000e+00 : f32
    %17 = vector.broadcast %cst_12 : f32 to vector<8x8xf32>
    %18 = arith.cmpf ogt, %16, %17 : vector<8x8xf32>
    %cst_13 = arith.constant 2.000000e-01 : f32
    %19 = vector.broadcast %cst_13 : f32 to vector<8x8xf32>
    %20 = arith.mulf %19, %16 : vector<8x8xf32>
    %21 = arith.select %18, %16, %20 : vector<8x8xi1>, vector<8x8xf32>
    %cst_14 = arith.constant -1.000000e+30 : f32
    %22 = vector.broadcast %cst_14 : f32 to vector<8x8xf32>
    %23 = arith.select %3, %21, %22 : vector<8x8xi1>, vector<8x8xf32>
    %cst_15 = arith.constant dense<0xFF800000> : vector<8xf32>
    %24 = vector.multi_reduction <maximumf>, %23, %cst_15 [1] : vector<8x8xf32> to vector<8xf32>
    %25 = vector.shape_cast %24 : vector<8xf32> to vector<8x1xf32>
    %26 = vector.broadcast %25 : vector<8x1xf32> to vector<8x8xf32>
    %27 = arith.subf %23, %26 : vector<8x8xf32>
    %28 = math.exp %27 : vector<8x8xf32>
    %cst_16 = arith.constant dense<0.000000e+00> : vector<8xf32>
    %29 = vector.multi_reduction <add>, %28, %cst_16 [1] : vector<8x8xf32> to vector<8xf32>
    %30 = vector.shape_cast %29 : vector<8xf32> to vector<8x1xf32>
    %31 = vector.broadcast %30 : vector<8x1xf32> to vector<8x8xf32>
    %32 = arith.divf %28, %31 : vector<8x8xf32>
    %33 = arith.truncf %32 : vector<8x8xf32> to vector<8x8xbf16>
    %34 = arith.truncf %6 : vector<8x128xf32> to vector<8x128xbf16>
    %cst_17 = arith.constant dense<0.000000e+00> : vector<8x128xf32>
    %35 = tpu.matmul %33, %34, %cst_17 {dimension_numbers = #tpu.dot_dimension_numbers<[1], [0], [0], [1], [0, 0, 1, 1], [], []>} : vector<8x8xbf16>, vector<8x128xbf16>, vector<8x128xf32> -> vector<8x128xf32>
    %c0_18 = arith.constant 0 : index
    %c0_19 = arith.constant 0 : index
    %36 = vector.load %arg5[%c0_18, %c0_19] : memref<1x128xf32, #tpu.memory_space<vmem>>, vector<1x128xf32>
    %37 = vector.broadcast %36 : vector<1x128xf32> to vector<8x128xf32>
    %38 = arith.addf %35, %37 : vector<8x128xf32>
    %cst_20 = arith.constant 0.000000e+00 : f32
    %39 = vector.broadcast %cst_20 : f32 to vector<8x128xf32>
    %40 = arith.maximumf %38, %39 : vector<8x128xf32>
    %41 = arith.truncf %40 : vector<8x128xf32> to vector<8x128xbf16>
    %c0_21 = arith.constant 0 : index
    %c0_22 = arith.constant 0 : index
    %42 = vector.load %arg6[%c0_21, %c0_22] : memref<128x128xbf16, #tpu.memory_space<vmem>>, vector<128x128xbf16>
    %cst_23 = arith.constant dense<0.000000e+00> : vector<8x128xf32>
    %43 = tpu.matmul %41, %42, %cst_23 {dimension_numbers = #tpu.dot_dimension_numbers<[1], [0], [0], [1], [0, 0, 1, 1], [], []>} : vector<8x128xbf16>, vector<128x128xbf16>, vector<8x128xf32> -> vector<8x128xf32>
    %c0_24 = arith.constant 0 : index
    %c0_25 = arith.constant 0 : index
    %44 = vector.load %arg8[%c0_24, %c0_25] : memref<1x128xf32, #tpu.memory_space<vmem>>, vector<1x128xf32>
    %45 = vector.broadcast %44 : vector<1x128xf32> to vector<8x128xf32>
    %46 = arith.mulf %43, %45 : vector<8x128xf32>
    %cst_26 = arith.constant dense<0.000000e+00> : vector<8xf32>
    %47 = vector.multi_reduction <add>, %46, %cst_26 [1] : vector<8x128xf32> to vector<8xf32>
    %48 = vector.shape_cast %47 : vector<8xf32> to vector<8x1xf32>
    %c0_27 = arith.constant 0 : index
    %c0_28 = arith.constant 0 : index
    %49 = vector.load %arg7[%c0_27, %c0_28] : memref<1x128xf32, #tpu.memory_space<vmem>>, vector<1x128xf32>
    %cst_29 = arith.constant dense<0.000000e+00> : vector<1x8xf32>
    %50 = tpu.matmul %49, %43, %cst_29 {dimension_numbers = #tpu.dot_dimension_numbers<[1], [1], [0], [0], [0, 0, 1, 0], [], []>} : vector<1x128xf32>, vector<8x128xf32>, vector<1x8xf32> -> vector<1x8xf32>
    %51 = vector.broadcast %48 : vector<8x1xf32> to vector<8x8xf32>
    %52 = vector.broadcast %50 : vector<1x8xf32> to vector<8x8xf32>
    %53 = arith.addf %51, %52 : vector<8x8xf32>
    %cst_30 = arith.constant 0.000000e+00 : f32
    %54 = vector.broadcast %cst_30 : f32 to vector<8x8xf32>
    %55 = arith.cmpf ogt, %53, %54 : vector<8x8xf32>
    %cst_31 = arith.constant 2.000000e-01 : f32
    %56 = vector.broadcast %cst_31 : f32 to vector<8x8xf32>
    %57 = arith.mulf %56, %53 : vector<8x8xf32>
    %58 = arith.select %55, %53, %57 : vector<8x8xi1>, vector<8x8xf32>
    %cst_32 = arith.constant -1.000000e+30 : f32
    %59 = vector.broadcast %cst_32 : f32 to vector<8x8xf32>
    %60 = arith.select %3, %58, %59 : vector<8x8xi1>, vector<8x8xf32>
    %cst_33 = arith.constant dense<0xFF800000> : vector<8xf32>
    %61 = vector.multi_reduction <maximumf>, %60, %cst_33 [1] : vector<8x8xf32> to vector<8xf32>
    %62 = vector.shape_cast %61 : vector<8xf32> to vector<8x1xf32>
    %63 = vector.broadcast %62 : vector<8x1xf32> to vector<8x8xf32>
    %64 = arith.subf %60, %63 : vector<8x8xf32>
    %65 = math.exp %64 : vector<8x8xf32>
    %cst_34 = arith.constant dense<0.000000e+00> : vector<8xf32>
    %66 = vector.multi_reduction <add>, %65, %cst_34 [1] : vector<8x8xf32> to vector<8xf32>
    %67 = vector.shape_cast %66 : vector<8xf32> to vector<8x1xf32>
    %68 = vector.broadcast %67 : vector<8x1xf32> to vector<8x8xf32>
    %69 = arith.divf %65, %68 : vector<8x8xf32>
    %70 = arith.truncf %69 : vector<8x8xf32> to vector<8x8xbf16>
    %71 = arith.truncf %43 : vector<8x128xf32> to vector<8x128xbf16>
    %cst_35 = arith.constant dense<0.000000e+00> : vector<8x128xf32>
    %72 = tpu.matmul %70, %71, %cst_35 {dimension_numbers = #tpu.dot_dimension_numbers<[1], [0], [0], [1], [0, 0, 1, 1], [], []>} : vector<8x8xbf16>, vector<8x128xbf16>, vector<8x128xf32> -> vector<8x128xf32>
    %c0_36 = arith.constant 0 : index
    %c0_37 = arith.constant 0 : index
    %73 = vector.load %arg9[%c0_36, %c0_37] : memref<1x128xf32, #tpu.memory_space<vmem>>, vector<1x128xf32>
    %74 = vector.broadcast %73 : vector<1x128xf32> to vector<8x128xf32>
    %75 = arith.addf %72, %74 : vector<8x128xf32>
    %76 = arith.truncf %75 : vector<8x128xf32> to vector<8x128xbf16>
    %c0_38 = arith.constant 0 : index
    %c0_39 = arith.constant 0 : index
    %77 = vector.load %arg10[%c0_38, %c0_39] : memref<128x512xbf16, #tpu.memory_space<vmem>>, vector<128x512xbf16>
    %cst_40 = arith.constant dense<0.000000e+00> : vector<8x512xf32>
    %78 = tpu.matmul %76, %77, %cst_40 {dimension_numbers = #tpu.dot_dimension_numbers<[1], [0], [0], [1], [0, 0, 1, 1], [], []>} : vector<8x128xbf16>, vector<128x512xbf16>, vector<8x512xf32> -> vector<8x512xf32>
    %c0_41 = arith.constant 0 : index
    %c0_42 = arith.constant 0 : index
    %79 = vector.load %arg12[%c0_41, %c0_42] : memref<1x512xf32, #tpu.memory_space<vmem>>, vector<1x512xf32>
    %80 = vector.broadcast %79 : vector<1x512xf32> to vector<8x512xf32>
    %81 = arith.addf %78, %80 : vector<8x512xf32>
    %c0_43 = arith.constant 0 : index
    %c0_44 = arith.constant 0 : index
    %82 = vector.load %arg16[%c0_43, %c0_44] : memref<8x512xf32, #tpu.memory_space<vmem>>, vector<8x512xf32>
    tpu.vector_store %arg16[%c0_43, %c0_44], %81 {strides = array<i32>} : memref<8x512xf32, #tpu.memory_space<vmem>>, vector<8x512xf32>,
    %cst_45 = arith.constant 0.000000e+00 : f32
    %83 = vector.broadcast %cst_45 : f32 to vector<1x128xf32>
    %c0_i32 = arith.constant 0 : i32
    %84 = arith.index_cast %c0_i32 : i32 to index
    %c0_46 = arith.constant 0 : index
    %85 = vector.load %arg16[%84, %c0_46] : memref<8x512xf32, #tpu.memory_space<vmem>>, vector<1x512xf32>
    %86 = arith.truncf %83 : vector<1x128xf32> to vector<1x128xbf16>
    %c0_47 = arith.constant 0 : index
    %c0_48 = arith.constant 0 : index
    %87 = vector.load %arg11[%c0_47, %c0_48] : memref<128x512xbf16, #tpu.memory_space<vmem>>, vector<128x512xbf16>
    %cst_49 = arith.constant dense<0.000000e+00> : vector<1x512xf32>
    %88 = tpu.matmul %86, %87, %cst_49 {dimension_numbers = #tpu.dot_dimension_numbers<[1], [0], [0], [1], [0, 0, 1, 1], [], []>} : vector<1x128xbf16>, vector<128x512xbf16>, vector<1x512xf32> -> vector<1x512xf32>
    %89 = arith.addf %85, %88 : vector<1x512xf32>
    %90 = vector.extract_strided_slice %89 {offsets = [0, 0], sizes = [1, 128], strides = [1, 1]} : vector<1x512xf32> to vector<1x128xf32>
    %91 = arith.negf %90 : vector<1x128xf32>
    %92 = math.exp %91 : vector<1x128xf32>
    %cst_50 = arith.constant 1.000000e+00 : f32
    %93 = vector.broadcast %cst_50 : f32 to vector<1x128xf32>
    %94 = arith.addf %93, %92 : vector<1x128xf32>
    %95 = arith.divf %93, %94 : vector<1x128xf32>
    %96 = vector.extract_strided_slice %89 {offsets = [0, 128], sizes = [1, 128], strides = [1, 1]} : vector<1x512xf32> to vector<1x128xf32>
    %97 = arith.negf %96 : vector<1x128xf32>
    %98 = math.exp %97 : vector<1x128xf32>
    %cst_51 = arith.constant 1.000000e+00 : f32
    %99 = vector.broadcast %cst_51 : f32 to vector<1x128xf32>
    %100 = arith.addf %99, %98 : vector<1x128xf32>
    %101 = arith.divf %99, %100 : vector<1x128xf32>
    %102 = vector.extract_strided_slice %89 {offsets = [0, 256], sizes = [1, 128], strides = [1, 1]} : vector<1x512xf32> to vector<1x128xf32>
    %103 = math.tanh %102 : vector<1x128xf32>
    %104 = vector.extract_strided_slice %89 {offsets = [0, 384], sizes = [1, 128], strides = [1, 1]} : vector<1x512xf32> to vector<1x128xf32>
    %105 = arith.negf %104 : vector<1x128xf32>
    %106 = math.exp %105 : vector<1x128xf32>
    %cst_52 = arith.constant 1.000000e+00 : f32
    %107 = vector.broadcast %cst_52 : f32 to vector<1x128xf32>
    %108 = arith.addf %107, %106 : vector<1x128xf32>
    %109 = arith.divf %107, %108 : vector<1x128xf32>
    %110 = arith.mulf %101, %83 : vector<1x128xf32>
    %111 = arith.mulf %95, %103 : vector<1x128xf32>
    %112 = arith.addf %110, %111 : vector<1x128xf32>
    %113 = math.tanh %112 : vector<1x128xf32>
    %114 = arith.mulf %109, %113 : vector<1x128xf32>
    %115 = arith.index_cast %c0_i32 : i32 to index
    %c0_53 = arith.constant 0 : index
    %116 = vector.load %arg17[%115, %c0_53] : memref<8x128xf32, #tpu.memory_space<vmem>>, vector<1x128xf32>
    tpu.vector_store %arg17[%115, %c0_53], %114 {strides = array<i32>} : memref<8x128xf32, #tpu.memory_space<vmem>>, vector<1x128xf32>,
    %c1_i32 = arith.constant 1 : i32
    %117 = arith.index_cast %c1_i32 : i32 to index
    %c0_54 = arith.constant 0 : index
    %118 = vector.load %arg16[%117, %c0_54] : memref<8x512xf32, #tpu.memory_space<vmem>>, vector<1x512xf32>
    %119 = arith.truncf %114 : vector<1x128xf32> to vector<1x128xbf16>
    %c0_55 = arith.constant 0 : index
    %c0_56 = arith.constant 0 : index
    %120 = vector.load %arg11[%c0_55, %c0_56] : memref<128x512xbf16, #tpu.memory_space<vmem>>, vector<128x512xbf16>
    %cst_57 = arith.constant dense<0.000000e+00> : vector<1x512xf32>
    %121 = tpu.matmul %119, %120, %cst_57 {dimension_numbers = #tpu.dot_dimension_numbers<[1], [0], [0], [1], [0, 0, 1, 1], [], []>} : vector<1x128xbf16>, vector<128x512xbf16>, vector<1x512xf32> -> vector<1x512xf32>
    %122 = arith.addf %118, %121 : vector<1x512xf32>
    %123 = vector.extract_strided_slice %122 {offsets = [0, 0], sizes = [1, 128], strides = [1, 1]} : vector<1x512xf32> to vector<1x128xf32>
    %124 = arith.negf %123 : vector<1x128xf32>
    %125 = math.exp %124 : vector<1x128xf32>
    %cst_58 = arith.constant 1.000000e+00 : f32
    %126 = vector.broadcast %cst_58 : f32 to vector<1x128xf32>
    %127 = arith.addf %126, %125 : vector<1x128xf32>
    %128 = arith.divf %126, %127 : vector<1x128xf32>
    %129 = vector.extract_strided_slice %122 {offsets = [0, 128], sizes = [1, 128], strides = [1, 1]} : vector<1x512xf32> to vector<1x128xf32>
    %130 = arith.negf %129 : vector<1x128xf32>
    %131 = math.exp %130 : vector<1x128xf32>
    %cst_59 = arith.constant 1.000000e+00 : f32
    %132 = vector.broadcast %cst_59 : f32 to vector<1x128xf32>
    %133 = arith.addf %132, %131 : vector<1x128xf32>
    %134 = arith.divf %132, %133 : vector<1x128xf32>
    %135 = vector.extract_strided_slice %122 {offsets = [0, 256], sizes = [1, 128], strides = [1, 1]} : vector<1x512xf32> to vector<1x128xf32>
    %136 = math.tanh %135 : vector<1x128xf32>
    %137 = vector.extract_strided_slice %122 {offsets = [0, 384], sizes = [1, 128], strides = [1, 1]} : vector<1x512xf32> to vector<1x128xf32>
    %138 = arith.negf %137 : vector<1x128xf32>
    %139 = math.exp %138 : vector<1x128xf32>
    %cst_60 = arith.constant 1.000000e+00 : f32
    %140 = vector.broadcast %cst_60 : f32 to vector<1x128xf32>
    %141 = arith.addf %140, %139 : vector<1x128xf32>
    %142 = arith.divf %140, %141 : vector<1x128xf32>
    %143 = arith.mulf %134, %112 : vector<1x128xf32>
    %144 = arith.mulf %128, %136 : vector<1x128xf32>
    %145 = arith.addf %143, %144 : vector<1x128xf32>
    %146 = math.tanh %145 : vector<1x128xf32>
    %147 = arith.mulf %142, %146 : vector<1x128xf32>
    %148 = arith.index_cast %c1_i32 : i32 to index
    %c0_61 = arith.constant 0 : index
    %149 = vector.load %arg17[%148, %c0_61] : memref<8x128xf32, #tpu.memory_space<vmem>>, vector<1x128xf32>
    tpu.vector_store %arg17[%148, %c0_61], %147 {strides = array<i32>} : memref<8x128xf32, #tpu.memory_space<vmem>>, vector<1x128xf32>,
    %c2_i32 = arith.constant 2 : i32
    %150 = arith.index_cast %c2_i32 : i32 to index
    %c0_62 = arith.constant 0 : index
    %151 = vector.load %arg16[%150, %c0_62] : memref<8x512xf32, #tpu.memory_space<vmem>>, vector<1x512xf32>
    %152 = arith.truncf %147 : vector<1x128xf32> to vector<1x128xbf16>
    %c0_63 = arith.constant 0 : index
    %c0_64 = arith.constant 0 : index
    %153 = vector.load %arg11[%c0_63, %c0_64] : memref<128x512xbf16, #tpu.memory_space<vmem>>, vector<128x512xbf16>
    %cst_65 = arith.constant dense<0.000000e+00> : vector<1x512xf32>
    %154 = tpu.matmul %152, %153, %cst_65 {dimension_numbers = #tpu.dot_dimension_numbers<[1], [0], [0], [1], [0, 0, 1, 1], [], []>} : vector<1x128xbf16>, vector<128x512xbf16>, vector<1x512xf32> -> vector<1x512xf32>
    %155 = arith.addf %151, %154 : vector<1x512xf32>
    %156 = vector.extract_strided_slice %155 {offsets = [0, 0], sizes = [1, 128], strides = [1, 1]} : vector<1x512xf32> to vector<1x128xf32>
    %157 = arith.negf %156 : vector<1x128xf32>
    %158 = math.exp %157 : vector<1x128xf32>
    %cst_66 = arith.constant 1.000000e+00 : f32
    %159 = vector.broadcast %cst_66 : f32 to vector<1x128xf32>
    %160 = arith.addf %159, %158 : vector<1x128xf32>
    %161 = arith.divf %159, %160 : vector<1x128xf32>
    %162 = vector.extract_strided_slice %155 {offsets = [0, 128], sizes = [1, 128], strides = [1, 1]} : vector<1x512xf32> to vector<1x128xf32>
    %163 = arith.negf %162 : vector<1x128xf32>
    %164 = math.exp %163 : vector<1x128xf32>
    %cst_67 = arith.constant 1.000000e+00 : f32
    %165 = vector.broadcast %cst_67 : f32 to vector<1x128xf32>
    %166 = arith.addf %165, %164 : vector<1x128xf32>
    %167 = arith.divf %165, %166 : vector<1x128xf32>
    %168 = vector.extract_strided_slice %155 {offsets = [0, 256], sizes = [1, 128], strides = [1, 1]} : vector<1x512xf32> to vector<1x128xf32>
    %169 = math.tanh %168 : vector<1x128xf32>
    %170 = vector.extract_strided_slice %155 {offsets = [0, 384], sizes = [1, 128], strides = [1, 1]} : vector<1x512xf32> to vector<1x128xf32>
    %171 = arith.negf %170 : vector<1x128xf32>
    %172 = math.exp %171 : vector<1x128xf32>
    %cst_68 = arith.constant 1.000000e+00 : f32
    %173 = vector.broadcast %cst_68 : f32 to vector<1x128xf32>
    %174 = arith.addf %173, %172 : vector<1x128xf32>
    %175 = arith.divf %173, %174 : vector<1x128xf32>
    %176 = arith.mulf %167, %145 : vector<1x128xf32>
    %177 = arith.mulf %161, %169 : vector<1x128xf32>
    %178 = arith.addf %176, %177 : vector<1x128xf32>
    %179 = math.tanh %178 : vector<1x128xf32>
    %180 = arith.mulf %175, %179 : vector<1x128xf32>
    %181 = arith.index_cast %c2_i32 : i32 to index
    %c0_69 = arith.constant 0 : index
    %182 = vector.load %arg17[%181, %c0_69] : memref<8x128xf32, #tpu.memory_space<vmem>>, vector<1x128xf32>
    tpu.vector_store %arg17[%181, %c0_69], %180 {strides = array<i32>} : memref<8x128xf32, #tpu.memory_space<vmem>>, vector<1x128xf32>,
    %c3_i32 = arith.constant 3 : i32
    %183 = arith.index_cast %c3_i32 : i32 to index
    %c0_70 = arith.constant 0 : index
    %184 = vector.load %arg16[%183, %c0_70] : memref<8x512xf32, #tpu.memory_space<vmem>>, vector<1x512xf32>
    %185 = arith.truncf %180 : vector<1x128xf32> to vector<1x128xbf16>
    %c0_71 = arith.constant 0 : index
    %c0_72 = arith.constant 0 : index
    %186 = vector.load %arg11[%c0_71, %c0_72] : memref<128x512xbf16, #tpu.memory_space<vmem>>, vector<128x512xbf16>
    %cst_73 = arith.constant dense<0.000000e+00> : vector<1x512xf32>
    %187 = tpu.matmul %185, %186, %cst_73 {dimension_numbers = #tpu.dot_dimension_numbers<[1], [0], [0], [1], [0, 0, 1, 1], [], []>} : vector<1x128xbf16>, vector<128x512xbf16>, vector<1x512xf32> -> vector<1x512xf32>
    %188 = arith.addf %184, %187 : vector<1x512xf32>
    %189 = vector.extract_strided_slice %188 {offsets = [0, 0], sizes = [1, 128], strides = [1, 1]} : vector<1x512xf32> to vector<1x128xf32>
    %190 = arith.negf %189 : vector<1x128xf32>
    %191 = math.exp %190 : vector<1x128xf32>
    %cst_74 = arith.constant 1.000000e+00 : f32
    %192 = vector.broadcast %cst_74 : f32 to vector<1x128xf32>
    %193 = arith.addf %192, %191 : vector<1x128xf32>
    %194 = arith.divf %192, %193 : vector<1x128xf32>
    %195 = vector.extract_strided_slice %188 {offsets = [0, 128], sizes = [1, 128], strides = [1, 1]} : vector<1x512xf32> to vector<1x128xf32>
    %196 = arith.negf %195 : vector<1x128xf32>
    %197 = math.exp %196 : vector<1x128xf32>
    %cst_75 = arith.constant 1.000000e+00 : f32
    %198 = vector.broadcast %cst_75 : f32 to vector<1x128xf32>
    %199 = arith.addf %198, %197 : vector<1x128xf32>
    %200 = arith.divf %198, %199 : vector<1x128xf32>
    %201 = vector.extract_strided_slice %188 {offsets = [0, 256], sizes = [1, 128], strides = [1, 1]} : vector<1x512xf32> to vector<1x128xf32>
    %202 = math.tanh %201 : vector<1x128xf32>
    %203 = vector.extract_strided_slice %188 {offsets = [0, 384], sizes = [1, 128], strides = [1, 1]} : vector<1x512xf32> to vector<1x128xf32>
    %204 = arith.negf %203 : vector<1x128xf32>
    %205 = math.exp %204 : vector<1x128xf32>
    %cst_76 = arith.constant 1.000000e+00 : f32
    %206 = vector.broadcast %cst_76 : f32 to vector<1x128xf32>
    %207 = arith.addf %206, %205 : vector<1x128xf32>
    %208 = arith.divf %206, %207 : vector<1x128xf32>
    %209 = arith.mulf %200, %178 : vector<1x128xf32>
    %210 = arith.mulf %194, %202 : vector<1x128xf32>
    %211 = arith.addf %209, %210 : vector<1x128xf32>
    %212 = math.tanh %211 : vector<1x128xf32>
    %213 = arith.mulf %208, %212 : vector<1x128xf32>
    %214 = arith.index_cast %c3_i32 : i32 to index
    %c0_77 = arith.constant 0 : index
    %215 = vector.load %arg17[%214, %c0_77] : memref<8x128xf32, #tpu.memory_space<vmem>>, vector<1x128xf32>
    tpu.vector_store %arg17[%214, %c0_77], %213 {strides = array<i32>} : memref<8x128xf32, #tpu.memory_space<vmem>>, vector<1x128xf32>,
    %c4_i32 = arith.constant 4 : i32
    %216 = arith.index_cast %c4_i32 : i32 to index
    %c0_78 = arith.constant 0 : index
    %217 = vector.load %arg16[%216, %c0_78] : memref<8x512xf32, #tpu.memory_space<vmem>>, vector<1x512xf32>
    %218 = arith.truncf %213 : vector<1x128xf32> to vector<1x128xbf16>
    %c0_79 = arith.constant 0 : index
    %c0_80 = arith.constant 0 : index
    %219 = vector.load %arg11[%c0_79, %c0_80] : memref<128x512xbf16, #tpu.memory_space<vmem>>, vector<128x512xbf16>
    %cst_81 = arith.constant dense<0.000000e+00> : vector<1x512xf32>
    %220 = tpu.matmul %218, %219, %cst_81 {dimension_numbers = #tpu.dot_dimension_numbers<[1], [0], [0], [1], [0, 0, 1, 1], [], []>} : vector<1x128xbf16>, vector<128x512xbf16>, vector<1x512xf32> -> vector<1x512xf32>
    %221 = arith.addf %217, %220 : vector<1x512xf32>
    %222 = vector.extract_strided_slice %221 {offsets = [0, 0], sizes = [1, 128], strides = [1, 1]} : vector<1x512xf32> to vector<1x128xf32>
    %223 = arith.negf %222 : vector<1x128xf32>
    %224 = math.exp %223 : vector<1x128xf32>
    %cst_82 = arith.constant 1.000000e+00 : f32
    %225 = vector.broadcast %cst_82 : f32 to vector<1x128xf32>
    %226 = arith.addf %225, %224 : vector<1x128xf32>
    %227 = arith.divf %225, %226 : vector<1x128xf32>
    %228 = vector.extract_strided_slice %221 {offsets = [0, 128], sizes = [1, 128], strides = [1, 1]} : vector<1x512xf32> to vector<1x128xf32>
    %229 = arith.negf %228 : vector<1x128xf32>
    %230 = math.exp %229 : vector<1x128xf32>
    %cst_83 = arith.constant 1.000000e+00 : f32
    %231 = vector.broadcast %cst_83 : f32 to vector<1x128xf32>
    %232 = arith.addf %231, %230 : vector<1x128xf32>
    %233 = arith.divf %231, %232 : vector<1x128xf32>
    %234 = vector.extract_strided_slice %221 {offsets = [0, 256], sizes = [1, 128], strides = [1, 1]} : vector<1x512xf32> to vector<1x128xf32>
    %235 = math.tanh %234 : vector<1x128xf32>
    %236 = vector.extract_strided_slice %221 {offsets = [0, 384], sizes = [1, 128], strides = [1, 1]} : vector<1x512xf32> to vector<1x128xf32>
    %237 = arith.negf %236 : vector<1x128xf32>
    %238 = math.exp %237 : vector<1x128xf32>
    %cst_84 = arith.constant 1.000000e+00 : f32
    %239 = vector.broadcast %cst_84 : f32 to vector<1x128xf32>
    %240 = arith.addf %239, %238 : vector<1x128xf32>
    %241 = arith.divf %239, %240 : vector<1x128xf32>
    %242 = arith.mulf %233, %211 : vector<1x128xf32>
    %243 = arith.mulf %227, %235 : vector<1x128xf32>
    %244 = arith.addf %242, %243 : vector<1x128xf32>
    %245 = math.tanh %244 : vector<1x128xf32>
    %246 = arith.mulf %241, %245 : vector<1x128xf32>
    %247 = arith.index_cast %c4_i32 : i32 to index
    %c0_85 = arith.constant 0 : index
    %248 = vector.load %arg17[%247, %c0_85] : memref<8x128xf32, #tpu.memory_space<vmem>>, vector<1x128xf32>
    tpu.vector_store %arg17[%247, %c0_85], %246 {strides = array<i32>} : memref<8x128xf32, #tpu.memory_space<vmem>>, vector<1x128xf32>,
    %c5_i32 = arith.constant 5 : i32
    %249 = arith.index_cast %c5_i32 : i32 to index
    %c0_86 = arith.constant 0 : index
    %250 = vector.load %arg16[%249, %c0_86] : memref<8x512xf32, #tpu.memory_space<vmem>>, vector<1x512xf32>
    %251 = arith.truncf %246 : vector<1x128xf32> to vector<1x128xbf16>
    %c0_87 = arith.constant 0 : index
    %c0_88 = arith.constant 0 : index
    %252 = vector.load %arg11[%c0_87, %c0_88] : memref<128x512xbf16, #tpu.memory_space<vmem>>, vector<128x512xbf16>
    %cst_89 = arith.constant dense<0.000000e+00> : vector<1x512xf32>
    %253 = tpu.matmul %251, %252, %cst_89 {dimension_numbers = #tpu.dot_dimension_numbers<[1], [0], [0], [1], [0, 0, 1, 1], [], []>} : vector<1x128xbf16>, vector<128x512xbf16>, vector<1x512xf32> -> vector<1x512xf32>
    %254 = arith.addf %250, %253 : vector<1x512xf32>
    %255 = vector.extract_strided_slice %254 {offsets = [0, 0], sizes = [1, 128], strides = [1, 1]} : vector<1x512xf32> to vector<1x128xf32>
    %256 = arith.negf %255 : vector<1x128xf32>
    %257 = math.exp %256 : vector<1x128xf32>
    %cst_90 = arith.constant 1.000000e+00 : f32
    %258 = vector.broadcast %cst_90 : f32 to vector<1x128xf32>
    %259 = arith.addf %258, %257 : vector<1x128xf32>
    %260 = arith.divf %258, %259 : vector<1x128xf32>
    %261 = vector.extract_strided_slice %254 {offsets = [0, 128], sizes = [1, 128], strides = [1, 1]} : vector<1x512xf32> to vector<1x128xf32>
    %262 = arith.negf %261 : vector<1x128xf32>
    %263 = math.exp %262 : vector<1x128xf32>
    %cst_91 = arith.constant 1.000000e+00 : f32
    %264 = vector.broadcast %cst_91 : f32 to vector<1x128xf32>
    %265 = arith.addf %264, %263 : vector<1x128xf32>
    %266 = arith.divf %264, %265 : vector<1x128xf32>
    %267 = vector.extract_strided_slice %254 {offsets = [0, 256], sizes = [1, 128], strides = [1, 1]} : vector<1x512xf32> to vector<1x128xf32>
    %268 = math.tanh %267 : vector<1x128xf32>
    %269 = vector.extract_strided_slice %254 {offsets = [0, 384], sizes = [1, 128], strides = [1, 1]} : vector<1x512xf32> to vector<1x128xf32>
    %270 = arith.negf %269 : vector<1x128xf32>
    %271 = math.exp %270 : vector<1x128xf32>
    %cst_92 = arith.constant 1.000000e+00 : f32
    %272 = vector.broadcast %cst_92 : f32 to vector<1x128xf32>
    %273 = arith.addf %272, %271 : vector<1x128xf32>
    %274 = arith.divf %272, %273 : vector<1x128xf32>
    %275 = arith.mulf %266, %244 : vector<1x128xf32>
    %276 = arith.mulf %260, %268 : vector<1x128xf32>
    %277 = arith.addf %275, %276 : vector<1x128xf32>
    %278 = math.tanh %277 : vector<1x128xf32>
    %279 = arith.mulf %274, %278 : vector<1x128xf32>
    %280 = arith.index_cast %c5_i32 : i32 to index
    %c0_93 = arith.constant 0 : index
    %281 = vector.load %arg17[%280, %c0_93] : memref<8x128xf32, #tpu.memory_space<vmem>>, vector<1x128xf32>
    tpu.vector_store %arg17[%280, %c0_93], %279 {strides = array<i32>} : memref<8x128xf32, #tpu.memory_space<vmem>>, vector<1x128xf32>,
    %c6_i32 = arith.constant 6 : i32
    %282 = arith.index_cast %c6_i32 : i32 to index
    %c0_94 = arith.constant 0 : index
    %283 = vector.load %arg16[%282, %c0_94] : memref<8x512xf32, #tpu.memory_space<vmem>>, vector<1x512xf32>
    %284 = arith.truncf %279 : vector<1x128xf32> to vector<1x128xbf16>
    %c0_95 = arith.constant 0 : index
    %c0_96 = arith.constant 0 : index
    %285 = vector.load %arg11[%c0_95, %c0_96] : memref<128x512xbf16, #tpu.memory_space<vmem>>, vector<128x512xbf16>
    %cst_97 = arith.constant dense<0.000000e+00> : vector<1x512xf32>
    %286 = tpu.matmul %284, %285, %cst_97 {dimension_numbers = #tpu.dot_dimension_numbers<[1], [0], [0], [1], [0, 0, 1, 1], [], []>} : vector<1x128xbf16>, vector<128x512xbf16>, vector<1x512xf32> -> vector<1x512xf32>
    %287 = arith.addf %283, %286 : vector<1x512xf32>
    %288 = vector.extract_strided_slice %287 {offsets = [0, 0], sizes = [1, 128], strides = [1, 1]} : vector<1x512xf32> to vector<1x128xf32>
    %289 = arith.negf %288 : vector<1x128xf32>
    %290 = math.exp %289 : vector<1x128xf32>
    %cst_98 = arith.constant 1.000000e+00 : f32
    %291 = vector.broadcast %cst_98 : f32 to vector<1x128xf32>
    %292 = arith.addf %291, %290 : vector<1x128xf32>
    %293 = arith.divf %291, %292 : vector<1x128xf32>
    %294 = vector.extract_strided_slice %287 {offsets = [0, 128], sizes = [1, 128], strides = [1, 1]} : vector<1x512xf32> to vector<1x128xf32>
    %295 = arith.negf %294 : vector<1x128xf32>
    %296 = math.exp %295 : vector<1x128xf32>
    %cst_99 = arith.constant 1.000000e+00 : f32
    %297 = vector.broadcast %cst_99 : f32 to vector<1x128xf32>
    %298 = arith.addf %297, %296 : vector<1x128xf32>
    %299 = arith.divf %297, %298 : vector<1x128xf32>
    %300 = vector.extract_strided_slice %287 {offsets = [0, 256], sizes = [1, 128], strides = [1, 1]} : vector<1x512xf32> to vector<1x128xf32>
    %301 = math.tanh %300 : vector<1x128xf32>
    %302 = vector.extract_strided_slice %287 {offsets = [0, 384], sizes = [1, 128], strides = [1, 1]} : vector<1x512xf32> to vector<1x128xf32>
    %303 = arith.negf %302 : vector<1x128xf32>
    %304 = math.exp %303 : vector<1x128xf32>
    %cst_100 = arith.constant 1.000000e+00 : f32
    %305 = vector.broadcast %cst_100 : f32 to vector<1x128xf32>
    %306 = arith.addf %305, %304 : vector<1x128xf32>
    %307 = arith.divf %305, %306 : vector<1x128xf32>
    %308 = arith.mulf %299, %277 : vector<1x128xf32>
    %309 = arith.mulf %293, %301 : vector<1x128xf32>
    %310 = arith.addf %308, %309 : vector<1x128xf32>
    %311 = math.tanh %310 : vector<1x128xf32>
    %312 = arith.mulf %307, %311 : vector<1x128xf32>
    %313 = arith.index_cast %c6_i32 : i32 to index
    %c0_101 = arith.constant 0 : index
    %314 = vector.load %arg17[%313, %c0_101] : memref<8x128xf32, #tpu.memory_space<vmem>>, vector<1x128xf32>
    tpu.vector_store %arg17[%313, %c0_101], %312 {strides = array<i32>} : memref<8x128xf32, #tpu.memory_space<vmem>>, vector<1x128xf32>,
    %c7_i32 = arith.constant 7 : i32
    %315 = arith.index_cast %c7_i32 : i32 to index
    %c0_102 = arith.constant 0 : index
    %316 = vector.load %arg16[%315, %c0_102] : memref<8x512xf32, #tpu.memory_space<vmem>>, vector<1x512xf32>
    %317 = arith.truncf %312 : vector<1x128xf32> to vector<1x128xbf16>
    %c0_103 = arith.constant 0 : index
    %c0_104 = arith.constant 0 : index
    %318 = vector.load %arg11[%c0_103, %c0_104] : memref<128x512xbf16, #tpu.memory_space<vmem>>, vector<128x512xbf16>
    %cst_105 = arith.constant dense<0.000000e+00> : vector<1x512xf32>
    %319 = tpu.matmul %317, %318, %cst_105 {dimension_numbers = #tpu.dot_dimension_numbers<[1], [0], [0], [1], [0, 0, 1, 1], [], []>} : vector<1x128xbf16>, vector<128x512xbf16>, vector<1x512xf32> -> vector<1x512xf32>
    %320 = arith.addf %316, %319 : vector<1x512xf32>
    %321 = vector.extract_strided_slice %320 {offsets = [0, 0], sizes = [1, 128], strides = [1, 1]} : vector<1x512xf32> to vector<1x128xf32>
    %322 = arith.negf %321 : vector<1x128xf32>
    %323 = math.exp %322 : vector<1x128xf32>
    %cst_106 = arith.constant 1.000000e+00 : f32
    %324 = vector.broadcast %cst_106 : f32 to vector<1x128xf32>
    %325 = arith.addf %324, %323 : vector<1x128xf32>
    %326 = arith.divf %324, %325 : vector<1x128xf32>
    %327 = vector.extract_strided_slice %320 {offsets = [0, 128], sizes = [1, 128], strides = [1, 1]} : vector<1x512xf32> to vector<1x128xf32>
    %328 = arith.negf %327 : vector<1x128xf32>
    %329 = math.exp %328 : vector<1x128xf32>
    %cst_107 = arith.constant 1.000000e+00 : f32
    %330 = vector.broadcast %cst_107 : f32 to vector<1x128xf32>
    %331 = arith.addf %330, %329 : vector<1x128xf32>
    %332 = arith.divf %330, %331 : vector<1x128xf32>
    %333 = vector.extract_strided_slice %320 {offsets = [0, 256], sizes = [1, 128], strides = [1, 1]} : vector<1x512xf32> to vector<1x128xf32>
    %334 = math.tanh %333 : vector<1x128xf32>
    %335 = vector.extract_strided_slice %320 {offsets = [0, 384], sizes = [1, 128], strides = [1, 1]} : vector<1x512xf32> to vector<1x128xf32>
    %336 = arith.negf %335 : vector<1x128xf32>
    %337 = math.exp %336 : vector<1x128xf32>
    %cst_108 = arith.constant 1.000000e+00 : f32
    %338 = vector.broadcast %cst_108 : f32 to vector<1x128xf32>
    %339 = arith.addf %338, %337 : vector<1x128xf32>
    %340 = arith.divf %338, %339 : vector<1x128xf32>
    %341 = arith.mulf %332, %310 : vector<1x128xf32>
    %342 = arith.mulf %326, %334 : vector<1x128xf32>
    %343 = arith.addf %341, %342 : vector<1x128xf32>
    %344 = math.tanh %343 : vector<1x128xf32>
    %345 = arith.mulf %340, %344 : vector<1x128xf32>
    %346 = arith.index_cast %c7_i32 : i32 to index
    %c0_109 = arith.constant 0 : index
    %347 = vector.load %arg17[%346, %c0_109] : memref<8x128xf32, #tpu.memory_space<vmem>>, vector<1x128xf32>
    tpu.vector_store %arg17[%346, %c0_109], %345 {strides = array<i32>} : memref<8x128xf32, #tpu.memory_space<vmem>>, vector<1x128xf32>,
    %c8_i32 = arith.constant 8 : i32
    %c0_110 = arith.constant 0 : index
    %c0_111 = arith.constant 0 : index
    %348 = vector.load %arg17[%c0_110, %c0_111] : memref<8x128xf32, #tpu.memory_space<vmem>>, vector<8x128xf32>
    %349 = arith.truncf %348 : vector<8x128xf32> to vector<8x128xbf16>
    %c0_112 = arith.constant 0 : index
    %c0_113 = arith.constant 0 : index
    %350 = vector.load %arg13[%c0_112, %c0_113] : memref<128x1024xbf16, #tpu.memory_space<vmem>>, vector<128x1024xbf16>
    %cst_114 = arith.constant dense<0.000000e+00> : vector<8x1024xf32>
    %351 = tpu.matmul %349, %350, %cst_114 {dimension_numbers = #tpu.dot_dimension_numbers<[1], [0], [0], [1], [0, 0, 1, 1], [], []>} : vector<8x128xbf16>, vector<128x1024xbf16>, vector<8x1024xf32> -> vector<8x1024xf32>
    %c0_115 = arith.constant 0 : index
    %c0_116 = arith.constant 0 : index
    %352 = vector.load %arg14[%c0_115, %c0_116] : memref<1x1024xf32, #tpu.memory_space<vmem>>, vector<1x1024xf32>
    %353 = vector.broadcast %352 : vector<1x1024xf32> to vector<8x1024xf32>
    %354 = arith.addf %351, %353 : vector<8x1024xf32>
    %c0_117 = arith.constant 0 : index
    %c0_118 = arith.constant 0 : index
    %355 = vector.load %arg15[%c0_117, %c0_118] : memref<8x1024xf32, #tpu.memory_space<vmem>>, vector<8x1024xf32>
    tpu.vector_store %arg15[%c0_117, %c0_118], %354 {strides = array<i32>} : memref<8x1024xf32, #tpu.memory_space<vmem>>, vector<8x1024xf32>,
    return
  }
}

</mosaic_0001>

<llo_original>
// kernel: tpu_custom_call.1
$region0: #{tpu_custom_call.1}
  #allocation0 [shape = 'u32[]', space=smem, size = 0x4, offset = 0x4, fixed_abs, tag = 'smem constant byte address 0x4 - core index']
  #allocation1 [shape = 'u32[144,128]{1,0:T(1,128)}', space=vmem, size = 0x12000, scoped, tag = 'internal scratch']
  #allocation2 [shape = 'f32[8,512]{1,0:T(8,128)}', space=vmem, size = 0x4000, scoped, tag = 'scratch operand']
  #allocation3 [shape = 'f32[8,128]{1,0:T(8,128)}', space=vmem, size = 0x1000, scoped, tag = 'scratch operand']
  %s0 = inlined_call_operand.hbm [shape: bf16[8,128], index: 0, kind: input, shape index: {}]
  %s1 = inlined_call_operand.hbm [shape: s8[8,8], index: 1, kind: input, shape index: {}]
  %s2 = inlined_call_operand.hbm [shape: bf16[128,128], index: 2, kind: input, shape index: {}]
  %s3 = inlined_call_operand.vmem [shape: f32[1,128], index: 3, kind: input, shape index: {}]
  %s4 = inlined_call_operand.vmem [shape: f32[1,128], index: 4, kind: input, shape index: {}]
  %s5 = inlined_call_operand.vmem [shape: f32[1,128], index: 5, kind: input, shape index: {}]
  %s6 = inlined_call_operand.hbm [shape: bf16[128,128], index: 6, kind: input, shape index: {}]
  %s7 = inlined_call_operand.vmem [shape: f32[1,128], index: 7, kind: input, shape index: {}]
  %s8 = inlined_call_operand.hbm [shape: f32[1,128], index: 8, kind: input, shape index: {}]
  %s9 = inlined_call_operand.hbm [shape: f32[1,128], index: 9, kind: input, shape index: {}]
  %s10 = inlined_call_operand.hbm [shape: bf16[128,512], index: 10, kind: input, shape index: {}]
  %s11 = inlined_call_operand.hbm [shape: bf16[128,512], index: 11, kind: input, shape index: {}]
  %s12 = inlined_call_operand.vmem [shape: f32[1,512], index: 12, kind: input, shape index: {}]
  %s13 = inlined_call_operand.hbm [shape: bf16[128,1024], index: 13, kind: input, shape index: {}]
  %s14 = inlined_call_operand.vmem [shape: f32[1,1024], index: 14, kind: input, shape index: {}]
  %s15 = inlined_call_operand.hbm [shape: f32[8,1024], index: 15, kind: output, shape index: {}]
  %s16 = sld [smem:[#allocation0]]
  $region106: #{tpu_custom_call.1} parent=0
    _
  %s18 = ssub.s32 1, %s16
  %s19 = scalar_select 0, %s18, %s16
  $region1: #{tpu_custom_call.1} parent=0
    #allocation4 [shape = 'u8[2048]{0}', space=vmem, size = 0x800, scoped, tag = 'input window, operand 0, single buffered']
    #allocation5 [shape = 's32[1]{0}', space=sflag, size = 0x4, scoped, tag = 'scoped memory for tpu_custom_call.1']
    #allocation6 [shape = 's32[1]{0}', space=sflag, size = 0x4, scoped, tag = 'scoped memory for tpu_custom_call.1']
    #allocation7 [shape = 'u8[1024]{0}', space=vmem, size = 0x400, scoped, tag = 'input window, operand 1, single buffered']
    #allocation8 [shape = 's32[1]{0}', space=sflag, size = 0x4, scoped, tag = 'scoped memory for tpu_custom_call.1']
    #allocation9 [shape = 'u8[32768]{0}', space=vmem, size = 0x8000, scoped, tag = 'input window, operand 2, single buffered']
    #allocation10 [shape = 'u8[32768]{0}', space=vmem, size = 0x8000, scoped, tag = 'input window, operand 6, single buffered']
    #allocation11 [shape = 's32[1]{0}', space=sflag, size = 0x4, scoped, tag = 'scoped memory for tpu_custom_call.1']
    #allocation12 [shape = 'u8[512]{0}', space=vmem, size = 0x400, scoped, tag = 'input window, operand 8, single buffered']
    #allocation13 [shape = 'u8[512]{0}', space=vmem, size = 0x400, scoped, tag = 'input window, operand 9, single buffered']
    #allocation14 [shape = 's32[1]{0}', space=sflag, size = 0x4, scoped, tag = 'scoped memory for tpu_custom_call.1']
    #allocation15 [shape = 'u8[131072]{0}', space=vmem, size = 0x20000, scoped, tag = 'input window, operand 10, single buffered']
    #allocation16 [shape = 'u8[131072]{0}', space=vmem, size = 0x20000, scoped, tag = 'input window, operand 11, single buffered']
    #allocation17 [shape = 's32[1]{0}', space=sflag, size = 0x4, scoped, tag = 'scoped memory for tpu_custom_call.1']
    #allocation18 [shape = 'u8[262144]{0}', space=vmem, size = 0x40000, scoped, tag = 'input window, operand 13, single buffered']
    #allocation19 [shape = 'u8[32768]{0}', space=vmem, size = 0x8000, scoped, tag = 'output window, operand 0, single buffered']
    %20 = vsyncpa [#allocation5], 0
    %21 = vsyncpa [#allocation8], 0
    %22 = vsyncpa [#allocation11], 0
    %23 = vsyncpa [#allocation14], 0
    %24 = vsyncpa [#allocation17], 0
    %25 = vsyncpa [#allocation6], 0
    // Predicated region
    $region2: #{tpu_custom_call.1} parent=1 // pred_check
      _
    $region3: #{tpu_custom_call.1} parent=1 // pred_check_branch
      %27 = sbr.rel (0) target = $region5
    $region4: #{tpu_custom_call.1} parent=1 // pred_region
      %s29 = ssub.s32 64, 64
      %30 = vsyncadd [#allocation5], %s29
      %s32 = sshll.u32 [#allocation4], 4
      %s33 = int_to_ptr.vmem [resolvable:$true] %s32
      %35 = dma.hbm_to_vmem [thread:$0]  %s0, 64, %s33, [#allocation5]
    $region5: #{tpu_custom_call.1} parent=1 // pred_fallthru
      _
    // Predicated region
    $region6: #{tpu_custom_call.1} parent=1 // pred_check
      _
    $region7: #{tpu_custom_call.1} parent=1 // pred_check_branch
      %37 = sbr.rel (0) target = $region9
    $region8: #{tpu_custom_call.1} parent=1 // pred_region
      %s39 = ssub.s32 32, 32
      %40 = vsyncadd [#allocation8], %s39
      %s42 = sshll.u32 [#allocation7], 4
      %s43 = int_to_ptr.vmem [resolvable:$true] %s42
      %45 = dma.hbm_to_vmem [thread:$0]  %s1, 32, %s43, [#allocation8]
    $region9: #{tpu_custom_call.1} parent=1 // pred_fallthru
      _
    // Predicated region
    $region10: #{tpu_custom_call.1} parent=1 // pred_check
      _
    $region11: #{tpu_custom_call.1} parent=1 // pred_check_branch
      %47 = sbr.rel (0) target = $region13
    $region12: #{tpu_custom_call.1} parent=1 // pred_region
      %s49 = ssub.s32 1024, 1024
      %50 = vsyncadd [#allocation8], %s49
      %s51 = sshll.u32 [#allocation9], 4
      %s52 = int_to_ptr.vmem [resolvable:$true] %s51
      %57 = dma.hbm_to_vmem [thread:$0]  %s2, 1024, %s52, [#allocation8], 64, 64, 4
    $region13: #{tpu_custom_call.1} parent=1 // pred_fallthru
      _
    // Predicated region
    $region14: #{tpu_custom_call.1} parent=1 // pred_check
      _
    $region15: #{tpu_custom_call.1} parent=1 // pred_check_branch
      %59 = sbr.rel (0) target = $region17
    $region16: #{tpu_custom_call.1} parent=1 // pred_region
      _
    $region17: #{tpu_custom_call.1} parent=1 // pred_fallthru
      _
    // Predicated region
    $region18: #{tpu_custom_call.1} parent=1 // pred_check
      _
    $region19: #{tpu_custom_call.1} parent=1 // pred_check_branch
      %61 = sbr.rel (0) target = $region21
    $region20: #{tpu_custom_call.1} parent=1 // pred_region
      _
    $region21: #{tpu_custom_call.1} parent=1 // pred_fallthru
      _
    // Predicated region
    $region22: #{tpu_custom_call.1} parent=1 // pred_check
      _
    $region23: #{tpu_custom_call.1} parent=1 // pred_check_branch
      %63 = sbr.rel (0) target = $region25
    $region24: #{tpu_custom_call.1} parent=1 // pred_region
      _
    $region25: #{tpu_custom_call.1} parent=1 // pred_fallthru
      _
    // Predicated region
    $region26: #{tpu_custom_call.1} parent=1 // pred_check
      _
    $region27: #{tpu_custom_call.1} parent=1 // pred_check_branch
      %65 = sbr.rel (0) target = $region29
    $region28: #{tpu_custom_call.1} parent=1 // pred_region
      %s67 = ssub.s32 1024, 1024
      %68 = vsyncadd [#allocation11], %s67
      %s69 = sshll.u32 [#allocation10], 4
      %s70 = int_to_ptr.vmem [resolvable:$true] %s69
      %75 = dma.hbm_to_vmem [thread:$0]  %s6, 1024, %s70, [#allocation11], 64, 64, 4
    $region29: #{tpu_custom_call.1} parent=1 // pred_fallthru
      _
    // Predicated region
    $region30: #{tpu_custom_call.1} parent=1 // pred_check
      _
    $region31: #{tpu_custom_call.1} parent=1 // pred_check_branch
      %77 = sbr.rel (0) target = $region33
    $region32: #{tpu_custom_call.1} parent=1 // pred_region
      _
    $region33: #{tpu_custom_call.1} parent=1 // pred_fallthru
      _
    // Predicated region
    $region34: #{tpu_custom_call.1} parent=1 // pred_check
      _
    $region35: #{tpu_custom_call.1} parent=1 // pred_check_branch
      %79 = sbr.rel (0) target = $region37
    $region36: #{tpu_custom_call.1} parent=1 // pred_region
      %s81 = ssub.s32 16, 16
      %82 = vsyncadd [#allocation11], %s81
      %s84 = sshll.u32 [#allocation12], 4
      %s85 = int_to_ptr.vmem [resolvable:$true] %s84
      %87 = dma.hbm_to_vmem [thread:$0]  %s8, 16, %s85, [#allocation11]
    $region37: #{tpu_custom_call.1} parent=1 // pred_fallthru
      _
    // Predicated region
    $region38: #{tpu_custom_call.1} parent=1 // pred_check
      _
    $region39: #{tpu_custom_call.1} parent=1 // pred_check_branch
      %89 = sbr.rel (0) target = $region41
    $region40: #{tpu_custom_call.1} parent=1 // pred_region
      %s91 = ssub.s32 16, 16
      %92 = vsyncadd [#allocation14], %s91
      %s94 = sshll.u32 [#allocation13], 4
      %s95 = int_to_ptr.vmem [resolvable:$true] %s94
      %97 = dma.hbm_to_vmem [thread:$0]  %s9, 16, %s95, [#allocation14]
    $region41: #{tpu_custom_call.1} parent=1 // pred_fallthru
      _
    // Predicated region
    $region42: #{tpu_custom_call.1} parent=1 // pred_check
      _
    $region43: #{tpu_custom_call.1} parent=1 // pred_check_branch
      %99 = sbr.rel (0) target = $region45
    $region44: #{tpu_custom_call.1} parent=1 // pred_region
      %s101 = ssub.s32 4096, 4096
      %102 = vsyncadd [#allocation14], %s101
      %s103 = sshll.u32 [#allocation15], 4
      %s104 = int_to_ptr.vmem [resolvable:$true] %s103
      %109 = dma.hbm_to_vmem [thread:$0]  %s10, 4096, %s104, [#allocation14], 256, 256, 16
    $region45: #{tpu_custom_call.1} parent=1 // pred_fallthru
      _
    // Predicated region
    $region46: #{tpu_custom_call.1} parent=1 // pred_check
      _
    $region47: #{tpu_custom_call.1} parent=1 // pred_check_branch
      %111 = sbr.rel (0) target = $region49
    $region48: #{tpu_custom_call.1} parent=1 // pred_region
      %s113 = ssub.s32 4096, 4096
      %114 = vsyncadd [#allocation17], %s113
      %s115 = sshll.u32 [#allocation16], 4
      %s116 = int_to_ptr.vmem [resolvable:$true] %s115
      %121 = dma.hbm_to_vmem [thread:$0]  %s11, 4096, %s116, [#allocation17], 256, 256, 16
    $region49: #{tpu_custom_call.1} parent=1 // pred_fallthru
      _
    // Predicated region
    $region50: #{tpu_custom_call.1} parent=1 // pred_check
      _
    $region51: #{tpu_custom_call.1} parent=1 // pred_check_branch
      %123 = sbr.rel (0) target = $region53
    $region52: #{tpu_custom_call.1} parent=1 // pred_region
      _
    $region53: #{tpu_custom_call.1} parent=1 // pred_fallthru
      _
    // Predicated region
    $region54: #{tpu_custom_call.1} parent=1 // pred_check
      _
    $region55: #{tpu_custom_call.1} parent=1 // pred_check_branch
      %125 = sbr.rel (0) target = $region57
    $region56: #{tpu_custom_call.1} parent=1 // pred_region
      %s127 = ssub.s32 8192, 8192
      %128 = vsyncadd [#allocation17], %s127
      %s129 = sshll.u32 [#allocation18], 4
      %s130 = int_to_ptr.vmem [resolvable:$true] %s129
      %135 = dma.hbm_to_vmem [thread:$0]  %s13, 8192, %s130, [#allocation17], 512, 512, 32
    $region57: #{tpu_custom_call.1} parent=1 // pred_fallthru
      _
    // Predicated region
    $region58: #{tpu_custom_call.1} parent=1 // pred_check
      _
    $region59: #{tpu_custom_call.1} parent=1 // pred_check_branch
      %137 = sbr.rel (0) target = $region61
    $region60: #{tpu_custom_call.1} parent=1 // pred_region
      _
    $region61: #{tpu_custom_call.1} parent=1 // pred_fallthru
      _
    // Predicated region
    $region62: #{tpu_custom_call.1} parent=1 // pred_check
      _
    $region63: #{tpu_custom_call.1} parent=1 // pred_check_branch
      %139 = sbr.rel (0) target = $region65
    $region64: #{tpu_custom_call.1} parent=1 // pred_region
      %140 = dma.done [#allocation5], 64
    $region65: #{tpu_custom_call.1} parent=1 // pred_fallthru
      _
    // Predicated region
    $region66: #{tpu_custom_call.1} parent=1 // pred_check
      _
    $region67: #{tpu_custom_call.1} parent=1 // pred_check_branch
      %142 = sbr.rel (0) target = $region69
    $region68: #{tpu_custom_call.1} parent=1 // pred_region
      %143 = dma.done [#allocation8], 32
    $region69: #{tpu_custom_call.1} parent=1 // pred_fallthru
      _
    // Predicated region
    $region70: #{tpu_custom_call.1} parent=1 // pred_check
      _
    $region71: #{tpu_custom_call.1} parent=1 // pred_check_branch
      %145 = sbr.rel (0) target = $region73
    $region72: #{tpu_custom_call.1} parent=1 // pred_region
      %146 = dma.done [#allocation8], 1024
    $region73: #{tpu_custom_call.1} parent=1 // pred_fallthru
      _
    // Predicated region
    $region74: #{tpu_custom_call.1} parent=1 // pred_check
      _
    $region75: #{tpu_custom_call.1} parent=1 // pred_check_branch
      %148 = sbr.rel (0) target = $region77
    $region76: #{tpu_custom_call.1} parent=1 // pred_region
      %149 = dma.done [#allocation11], 1024
    $region77: #{tpu_custom_call.1} parent=1 // pred_fallthru
      _
    // Predicated region
    $region78: #{tpu_custom_call.1} parent=1 // pred_check
      _
    $region79: #{tpu_custom_call.1} parent=1 // pred_check_branch
      %151 = sbr.rel (0) target = $region81
    $region80: #{tpu_custom_call.1} parent=1 // pred_region
      %152 = dma.done [#allocation11], 16
    $region81: #{tpu_custom_call.1} parent=1 // pred_fallthru
      _
    // Predicated region
    $region82: #{tpu_custom_call.1} parent=1 // pred_check
      _
    $region83: #{tpu_custom_call.1} parent=1 // pred_check_branch
      %154 = sbr.rel (0) target = $region85
    $region84: #{tpu_custom_call.1} parent=1 // pred_region
      %155 = dma.done [#allocation14], 16
    $region85: #{tpu_custom_call.1} parent=1 // pred_fallthru
      _
    // Predicated region
    $region86: #{tpu_custom_call.1} parent=1 // pred_check
      _
    $region87: #{tpu_custom_call.1} parent=1 // pred_check_branch
      %157 = sbr.rel (0) target = $region89
    $region88: #{tpu_custom_call.1} parent=1 // pred_region
      %158 = dma.done [#allocation14], 4096
    $region89: #{tpu_custom_call.1} parent=1 // pred_fallthru
      _
    // Predicated region
    $region90: #{tpu_custom_call.1} parent=1 // pred_check
      _
    $region91: #{tpu_custom_call.1} parent=1 // pred_check_branch
      %160 = sbr.rel (0) target = $region93
    $region92: #{tpu_custom_call.1} parent=1 // pred_region
      %161 = dma.done [#allocation17], 4096
    $region93: #{tpu_custom_call.1} parent=1 // pred_fallthru
      _
    // Predicated region
    $region94: #{tpu_custom_call.1} parent=1 // pred_check
      _
    $region95: #{tpu_custom_call.1} parent=1 // pred_check_branch
      %163 = sbr.rel (0) target = $region97
    $region96: #{tpu_custom_call.1} parent=1 // pred_region
      %164 = dma.done [#allocation17], 8192
    $region97: #{tpu_custom_call.1} parent=1 // pred_fallthru
      _
    %v166 = vld [vmem:[#allocation7] sm:$0x3]
    %v167 = vunpack.c.0.s8 %v166
    %v168 = vcvt.s32.f32 %v167
    %vm169 = vcmp.gt.f32.partialorder %v168, 0.0
    %v170 = vld [vmem:[#allocation4] sm:$0xf]
    %v171 = vld [vmem:[#allocation9] sm:$0xf]
    %v172 = vld [vmem:[#allocation9 + $0x4] sm:$0xf]
    %v173 = vld [vmem:[#allocation9 + $0x8] sm:$0xf]
    %v174 = vld [vmem:[#allocation9 + $0xc] sm:$0xf]
    %v175 = vld [vmem:[#allocation9 + $0x10] sm:$0xf]
    %v176 = vld [vmem:[#allocation9 + $0x14] sm:$0xf]
    %v177 = vld [vmem:[#allocation9 + $0x18] sm:$0xf]
    %v178 = vld [vmem:[#allocation9 + $0x1c] sm:$0xf]
    %v179 = vld [vmem:[#allocation9 + $0x20] sm:$0xf]
    %v180 = vld [vmem:[#allocation9 + $0x24] sm:$0xf]
    %v181 = vld [vmem:[#allocation9 + $0x28] sm:$0xf]
    %v182 = vld [vmem:[#allocation9 + $0x2c] sm:$0xf]
    %v183 = vld [vmem:[#allocation9 + $0x30] sm:$0xf]
    %v184 = vld [vmem:[#allocation9 + $0x34] sm:$0xf]
    %v185 = vld [vmem:[#allocation9 + $0x38] sm:$0xf]
    %v186 = vld [vmem:[#allocation9 + $0x3c] sm:$0xf]
    %v203 = vunpack.c.l.b16 %v171
    %v204 = vunpack.c.l.b16 %v172
    %v205 = vunpack.c.l.b16 %v173
    %v206 = vunpack.c.l.b16 %v174
    %v207 = vunpack.c.l.b16 %v175
    %v208 = vunpack.c.l.b16 %v176
    %v209 = vunpack.c.l.b16 %v177
    %v210 = vunpack.c.l.b16 %v178
    %v211 = vunpack.c.l.b16 %v179
    %v212 = vunpack.c.l.b16 %v180
    %v213 = vunpack.c.l.b16 %v181
    %v214 = vunpack.c.l.b16 %v182
    %v215 = vunpack.c.l.b16 %v183
    %v216 = vunpack.c.l.b16 %v184
    %v217 = vunpack.c.l.b16 %v185
    %v218 = vunpack.c.l.b16 %v186
    %v219 = vpack.c.b16 %v204, %v203
    %v220 = vpack.c.b16 %v206, %v205
    %v221 = vpack.c.b16 %v208, %v207
    %v222 = vpack.c.b16 %v210, %v209
    %v223 = vpack.c.b16 %v212, %v211
    %v224 = vpack.c.b16 %v214, %v213
    %v225 = vpack.c.b16 %v216, %v215
    %v226 = vpack.c.b16 %v218, %v217
    %235 = vmatprep.subr.bf16.mxu0 0
    %236 = vmatpush1.bf16.msra.mxu0 %v226
    %237 = vmatprep.subr.bf16.mxu0 0
    %238 = vmatpush1.bf16.msra.mxu0 %v225
    %239 = vmatprep.subr.bf16.mxu0 0
    %240 = vmatpush1.bf16.msra.mxu0 %v224
    %241 = vmatprep.subr.bf16.mxu0 0
    %242 = vmatpush1.bf16.msra.mxu0 %v223
    %243 = vmatprep.subr.bf16.mxu0 0
    %244 = vmatpush1.bf16.msra.mxu0 %v222
    %245 = vmatprep.subr.bf16.mxu0 0
    %246 = vmatpush1.bf16.msra.mxu0 %v221
    %247 = vmatprep.subr.bf16.mxu0 0
    %248 = vmatpush1.bf16.msra.mxu0 %v220
    %249 = vmatprep.subr.bf16.mxu0 0
    %250 = vmatpush1.bf16.msra.mxu0 %v219
    %251 = vmatprep.subr.bf16.mxu0 0
    %252 = vmatpush2.bf16.msra.mxu0 0
    %253 = vmatprep.subr.bf16.mxu0 0
    %254 = vmatpush2.bf16.msra.mxu0 0
    %255 = vmatprep.subr.bf16.mxu0 0
    %256 = vmatpush2.bf16.msra.mxu0 0
    %257 = vmatprep.subr.bf16.mxu0 0
    %258 = vmatpush2.bf16.msra.mxu0 0
    %259 = vmatprep.subr.bf16.mxu0 0
    %260 = vmatpush2.bf16.msra.mxu0 0
    %261 = vmatprep.subr.bf16.mxu0 0
    %262 = vmatpush2.bf16.msra.mxu0 0
    %263 = vmatprep.subr.bf16.mxu0 0
    %264 = vmatpush2.bf16.msra.mxu0 0
    %265 = vmatprep.subr.bf16.mxu0 0
    %266 = vmatpush2.bf16.msra.mxu0 0
    %267 = vmatprep.mubr.bf16.mxu0 0
    %268 = vmatmul.mubr.bf16.gmra.mxu0 %v170
    %v269 = vpop.f32.mrf.mxu0
    %v270 = vadd.f32 0.0, %v269
    %v271 = vpop.f32.mrf.mxu0
    %v272 = vpop.f32.mrf.mxu0
    %v273 = vpop.f32.mrf.mxu0
    %274 = vdwg.mxu0
    %v275 = vld [vmem:[%s4] sm:$0x1]
    %v277 = vlaneseq
    %v278 = vshrl.u32 %v277, 7
    %v279 = vsub.s32 0, %v278
    %v280 = vrot.slane %v275, %v279
    %v282 = vmul.f32 %v270, %v280
    %283 = vadd.xlane.f32.xlu0 %v282
    %v284 = vpop.xlane.xlu0 %283
    %v285 = vld [vmem:[%s3] sm:$0x1]
    %286 = vmatprep.subr.mxu0 0.0
    %287 = vmatpush1.xpose.msra.mxu0 0.0
    %288 = vmatprep.subr.mxu0 0.0
    %289 = vmatpush1.xpose.msra.mxu0 0.0
    %290 = vmatprep.subr.mxu0 0.0
    %291 = vmatpush1.xpose.msra.mxu0 0.0
    %292 = vmatprep.subr.mxu0 0.0
    %293 = vmatpush1.xpose.msra.mxu0 0.0
    %294 = vmatprep.subr.mxu0 0.0
    %295 = vmatpush1.xpose.msra.mxu0 0.0
    %296 = vmatprep.subr.mxu0 0.0
    %297 = vmatpush1.xpose.msra.mxu0 0.0
    %298 = vmatprep.subr.mxu0 0.0
    %299 = vmatpush1.xpose.msra.mxu0 0.0
    %300 = vmatprep.subr.mxu0 0.0
    %301 = vmatpush1.xpose.msra.mxu0 0.0
    %302 = vmatprep.subr.mxu0 0.0
    %303 = vmatpush1.xpose.msra.mxu0 0.0
    %304 = vmatprep.subr.mxu0 0.0
    %305 = vmatpush1.xpose.msra.mxu0 0.0
    %306 = vmatprep.subr.mxu0 0.0
    %307 = vmatpush1.xpose.msra.mxu0 0.0
    %308 = vmatprep.subr.mxu0 0.0
    %309 = vmatpush1.xpose.msra.mxu0 0.0
    %310 = vmatprep.subr.mxu0 0.0
    %311 = vmatpush1.xpose.msra.mxu0 0.0
    %312 = vmatprep.subr.mxu0 0.0
    %313 = vmatpush1.xpose.msra.mxu0 0.0
    %314 = vmatprep.subr.mxu0 0.0
    %315 = vmatpush1.xpose.msra.mxu0 0.0
    %316 = vmatprep.subr.mxu0 0.0
    %317 = vmatpush1.xpose.msra.mxu0 %v270
    %318 = vmatprep.subr.mxu0 0.0
    %319 = vmatpush2.xpose.msra.mxu0 0.0
    %320 = vmatprep.subr.mxu0 0.0
    %321 = vmatpush2.xpose.msra.mxu0 0.0
    %322 = vmatprep.subr.mxu0 0.0
    %323 = vmatpush2.xpose.msra.mxu0 0.0
    %324 = vmatprep.subr.mxu0 0.0
    %325 = vmatpush2.xpose.msra.mxu0 0.0
    %326 = vmatprep.subr.mxu0 0.0
    %327 = vmatpush2.xpose.msra.mxu0 0.0
    %328 = vmatprep.subr.mxu0 0.0
    %329 = vmatpush2.xpose.msra.mxu0 0.0
    %330 = vmatprep.subr.mxu0 0.0
    %331 = vmatpush2.xpose.msra.mxu0 0.0
    %332 = vmatprep.subr.mxu0 0.0
    %333 = vmatpush2.xpose.msra.mxu0 0.0
    %334 = vmatprep.subr.mxu0 0.0
    %335 = vmatpush2.xpose.msra.mxu0 0.0
    %336 = vmatprep.subr.mxu0 0.0
    %337 = vmatpush2.xpose.msra.mxu0 0.0
    %338 = vmatprep.subr.mxu0 0.0
    %339 = vmatpush2.xpose.msra.mxu0 0.0
    %340 = vmatprep.subr.mxu0 0.0
    %341 = vmatpush2.xpose.msra.mxu0 0.0
    %342 = vmatprep.subr.mxu0 0.0
    %343 = vmatpush2.xpose.msra.mxu0 0.0
    %344 = vmatprep.subr.mxu0 0.0
    %345 = vmatpush2.xpose.msra.mxu0 0.0
    %346 = vmatprep.subr.mxu0 0.0
    %347 = vmatpush2.xpose.msra.mxu0 0.0
    %348 = vmatprep.subr.mxu0 0.0
    %349 = vmatpush2.xpose.msra.mxu0 0.0
    %350 = vmatprep.mubr.f32.mxu0 0.0
    %351 = vmatmul.mubr.f32.gmra.mxu0 %v285
    %v352 = vpop.f32.mrf.mxu0
    %v353 = vadd.f32 0.0, %v352
    %v354 = vpop.f32.mrf.mxu0
    %355 = vdwg.mxu0
    %v356 = vlaneseq
    %v357 = vshrl.u32 %v356, 7
    %v358 = vsub.s32 0, %v357
    %v359 = vrot.slane %v353, %v358
    %v360 = vadd.f32 %v284, %v359
    %vm361 = vcmp.gt.f32.partialorder %v360, 0.0
    %v362 = vmul.f32 %v360, 0.2
    %v363 = vsel %vm361, %v360, %v362
    %v364 = vsel %vm169, %v363, -1e+30
    %vm365 = vcmask 64512
    %v366 = vsel %vm365, %v364, -inf
    %367 = vmax.xlane.f32.xlu0 %v366
    %v368 = vpop.xlane.xlu0 %367
    %v369 = vsub.f32 %v364, %v368
    %v370 = vmul.f32 %v369, 1.442695
    %v371 = vpow.pop %v370
    %v372 = vsel %vm365, %v371, 0.0
    %373 = vadd.xlane.f32.xlu0 %v372
    %v374 = vpop.xlane.xlu0 %373
    %v375 = vrcp.pop %v374
    %v376 = vmul.f32 %v371, %v375
    %v377 = vpack.c.bf16 %v376, %v376
    %v378 = vpack.c.bf16 %v270, %v270
    %v379 = vld [vmem:[%s5] sm:$0x1]
    %v381 = vlaneseq
    %v382 = vshrl.u32 %v381, 7
    %v383 = vsub.s32 0, %v382
    %v384 = vrot.slane %v379, %v383
    %v387 = vsel %vm365, %v377, 0
    %vm389 = vcmask 1043456
    %v391 = vsel %vm389, %v378, 0
    %393 = vmatprep.subr.bf16.mxu0 0
    %394 = vmatpush1.bf16.msra.mxu0 0
    %395 = vmatprep.subr.bf16.mxu0 0
    %396 = vmatpush1.bf16.msra.mxu0 0
    %397 = vmatprep.subr.bf16.mxu0 0
    %398 = vmatpush1.bf16.msra.mxu0 0
    %399 = vmatprep.subr.bf16.mxu0 0
    %400 = vmatpush1.bf16.msra.mxu0 0
    %401 = vmatprep.subr.bf16.mxu0 0
    %402 = vmatpush1.bf16.msra.mxu0 0
    %403 = vmatprep.subr.bf16.mxu0 0
    %404 = vmatpush1.bf16.msra.mxu0 0
    %405 = vmatprep.subr.bf16.mxu0 0
    %406 = vmatpush1.bf16.msra.mxu0 0
    %407 = vmatprep.subr.bf16.mxu0 0
    %408 = vmatpush1.bf16.msra.mxu0 %v391
    %409 = vmatprep.subr.bf16.mxu0 0
    %410 = vmatpush2.bf16.msra.mxu0 0
    %411 = vmatprep.subr.bf16.mxu0 0
    %412 = vmatpush2.bf16.msra.mxu0 0
    %413 = vmatprep.subr.bf16.mxu0 0
    %414 = vmatpush2.bf16.msra.mxu0 0
    %415 = vmatprep.subr.bf16.mxu0 0
    %416 = vmatpush2.bf16.msra.mxu0 0
    %417 = vmatprep.subr.bf16.mxu0 0
    %418 = vmatpush2.bf16.msra.mxu0 0
    %419 = vmatprep.subr.bf16.mxu0 0
    %420 = vmatpush2.bf16.msra.mxu0 0
    %421 = vmatprep.subr.bf16.mxu0 0
    %422 = vmatpush2.bf16.msra.mxu0 0
    %423 = vmatprep.subr.bf16.mxu0 0
    %424 = vmatpush2.bf16.msra.mxu0 0
    %425 = vmatprep.mubr.bf16.mxu0 0
    %426 = vmatmul.mubr.bf16.gmra.mxu0 %v387
    %v427 = vpop.f32.mrf.mxu0
    %v428 = vadd.f32 %v384, %v427
    %v429 = vpop.f32.mrf.mxu0
    %v430 = vpop.f32.mrf.mxu0
    %v431 = vpop.f32.mrf.mxu0
    %432 = vdwg.mxu0
    %v433 = vmax.f32 %v428, 0.0
    %v434 = vpack.c.bf16 %v433, %v433
    %v435 = vld [vmem:[#allocation10] sm:$0xf]
    %v436 = vld [vmem:[#allocation10 + $0x4] sm:$0xf]
    %v437 = vld [vmem:[#allocation10 + $0x8] sm:$0xf]
    %v438 = vld [vmem:[#allocation10 + $0xc] sm:$0xf]
    %v439 = vld [vmem:[#allocation10 + $0x10] sm:$0xf]
    %v440 = vld [vmem:[#allocation10 + $0x14] sm:$0xf]
    %v441 = vld [vmem:[#allocation10 + $0x18] sm:$0xf]
    %v442 = vld [vmem:[#allocation10 + $0x1c] sm:$0xf]
    %v443 = vld [vmem:[#allocation10 + $0x20] sm:$0xf]
    %v444 = vld [vmem:[#allocation10 + $0x24] sm:$0xf]
    %v445 = vld [vmem:[#allocation10 + $0x28] sm:$0xf]
    %v446 = vld [vmem:[#allocation10 + $0x2c] sm:$0xf]
    %v447 = vld [vmem:[#allocation10 + $0x30] sm:$0xf]
    %v448 = vld [vmem:[#allocation10 + $0x34] sm:$0xf]
    %v449 = vld [vmem:[#allocation10 + $0x38] sm:$0xf]
    %v450 = vld [vmem:[#allocation10 + $0x3c] sm:$0xf]
    %v467 = vunpack.c.l.b16 %v435
    %v468 = vunpack.c.l.b16 %v436
    %v469 = vunpack.c.l.b16 %v437
    %v470 = vunpack.c.l.b16 %v438
    %v471 = vunpack.c.l.b16 %v439
    %v472 = vunpack.c.l.b16 %v440
    %v473 = vunpack.c.l.b16 %v441
    %v474 = vunpack.c.l.b16 %v442
    %v475 = vunpack.c.l.b16 %v443
    %v476 = vunpack.c.l.b16 %v444
    %v477 = vunpack.c.l.b16 %v445
    %v478 = vunpack.c.l.b16 %v446
    %v479 = vunpack.c.l.b16 %v447
    %v480 = vunpack.c.l.b16 %v448
    %v481 = vunpack.c.l.b16 %v449
    %v482 = vunpack.c.l.b16 %v450
    %v483 = vpack.c.b16 %v468, %v467
    %v484 = vpack.c.b16 %v470, %v469
    %v485 = vpack.c.b16 %v472, %v471
    %v486 = vpack.c.b16 %v474, %v473
    %v487 = vpack.c.b16 %v476, %v475
    %v488 = vpack.c.b16 %v478, %v477
    %v489 = vpack.c.b16 %v480, %v479
    %v490 = vpack.c.b16 %v482, %v481
    %499 = vmatprep.subr.bf16.mxu0 0
    %500 = vmatpush1.bf16.msra.mxu0 %v490
    %501 = vmatprep.subr.bf16.mxu0 0
    %502 = vmatpush1.bf16.msra.mxu0 %v489
    %503 = vmatprep.subr.bf16.mxu0 0
    %504 = vmatpush1.bf16.msra.mxu0 %v488
    %505 = vmatprep.subr.bf16.mxu0 0
    %506 = vmatpush1.bf16.msra.mxu0 %v487
    %507 = vmatprep.subr.bf16.mxu0 0
    %508 = vmatpush1.bf16.msra.mxu0 %v486
    %509 = vmatprep.subr.bf16.mxu0 0
    %510 = vmatpush1.bf16.msra.mxu0 %v485
    %511 = vmatprep.subr.bf16.mxu0 0
    %512 = vmatpush1.bf16.msra.mxu0 %v484
    %513 = vmatprep.subr.bf16.mxu0 0
    %514 = vmatpush1.bf16.msra.mxu0 %v483
    %515 = vmatprep.subr.bf16.mxu0 0
    %516 = vmatpush2.bf16.msra.mxu0 0
    %517 = vmatprep.subr.bf16.mxu0 0
    %518 = vmatpush2.bf16.msra.mxu0 0
    %519 = vmatprep.subr.bf16.mxu0 0
    %520 = vmatpush2.bf16.msra.mxu0 0
    %521 = vmatprep.subr.bf16.mxu0 0
    %522 = vmatpush2.bf16.msra.mxu0 0
    %523 = vmatprep.subr.bf16.mxu0 0
    %524 = vmatpush2.bf16.msra.mxu0 0
    %525 = vmatprep.subr.bf16.mxu0 0
    %526 = vmatpush2.bf16.msra.mxu0 0
    %527 = vmatprep.subr.bf16.mxu0 0
    %528 = vmatpush2.bf16.msra.mxu0 0
    %529 = vmatprep.subr.bf16.mxu0 0
    %530 = vmatpush2.bf16.msra.mxu0 0
    %531 = vmatprep.mubr.bf16.mxu0 0
    %532 = vmatmul.mubr.bf16.gmra.mxu0 %v434
    %v533 = vpop.f32.mrf.mxu0
    %v534 = vadd.f32 0.0, %v533
    %v535 = vpop.f32.mrf.mxu0
    %v536 = vpop.f32.mrf.mxu0
    %v537 = vpop.f32.mrf.mxu0
    %538 = vdwg.mxu0
    %v539 = vld [vmem:[#allocation12] sm:$0x1]
    %v541 = vlaneseq
    %v542 = vshrl.u32 %v541, 7
    %v543 = vsub.s32 0, %v542
    %v544 = vrot.slane %v539, %v543
    %v546 = vmul.f32 %v534, %v544
    %547 = vadd.xlane.f32.xlu0 %v546
    %v548 = vpop.xlane.xlu0 %547
    %v549 = vld [vmem:[%s7] sm:$0x1]
    %550 = vmatprep.subr.mxu0 0.0
    %551 = vmatpush1.xpose.msra.mxu0 0.0
    %552 = vmatprep.subr.mxu0 0.0
    %553 = vmatpush1.xpose.msra.mxu0 0.0
    %554 = vmatprep.subr.mxu0 0.0
    %555 = vmatpush1.xpose.msra.mxu0 0.0
    %556 = vmatprep.subr.mxu0 0.0
    %557 = vmatpush1.xpose.msra.mxu0 0.0
    %558 = vmatprep.subr.mxu0 0.0
    %559 = vmatpush1.xpose.msra.mxu0 0.0
    %560 = vmatprep.subr.mxu0 0.0
    %561 = vmatpush1.xpose.msra.mxu0 0.0
    %562 = vmatprep.subr.mxu0 0.0
    %563 = vmatpush1.xpose.msra.mxu0 0.0
    %564 = vmatprep.subr.mxu0 0.0
    %565 = vmatpush1.xpose.msra.mxu0 0.0
    %566 = vmatprep.subr.mxu0 0.0
    %567 = vmatpush1.xpose.msra.mxu0 0.0
    %568 = vmatprep.subr.mxu0 0.0
    %569 = vmatpush1.xpose.msra.mxu0 0.0
    %570 = vmatprep.subr.mxu0 0.0
    %571 = vmatpush1.xpose.msra.mxu0 0.0
    %572 = vmatprep.subr.mxu0 0.0
    %573 = vmatpush1.xpose.msra.mxu0 0.0
    %574 = vmatprep.subr.mxu0 0.0
    %575 = vmatpush1.xpose.msra.mxu0 0.0
    %576 = vmatprep.subr.mxu0 0.0
    %577 = vmatpush1.xpose.msra.mxu0 0.0
    %578 = vmatprep.subr.mxu0 0.0
    %579 = vmatpush1.xpose.msra.mxu0 0.0
    %580 = vmatprep.subr.mxu0 0.0
    %581 = vmatpush1.xpose.msra.mxu0 %v534
    %582 = vmatprep.subr.mxu0 0.0
    %583 = vmatpush2.xpose.msra.mxu0 0.0
    %584 = vmatprep.subr.mxu0 0.0
    %585 = vmatpush2.xpose.msra.mxu0 0.0
    %586 = vmatprep.subr.mxu0 0.0
    %587 = vmatpush2.xpose.msra.mxu0 0.0
    %588 = vmatprep.subr.mxu0 0.0
    %589 = vmatpush2.xpose.msra.mxu0 0.0
    %590 = vmatprep.subr.mxu0 0.0
    %591 = vmatpush2.xpose.msra.mxu0 0.0
    %592 = vmatprep.subr.mxu0 0.0
    %593 = vmatpush2.xpose.msra.mxu0 0.0
    %594 = vmatprep.subr.mxu0 0.0
    %595 = vmatpush2.xpose.msra.mxu0 0.0
    %596 = vmatprep.subr.mxu0 0.0
    %597 = vmatpush2.xpose.msra.mxu0 0.0
    %598 = vmatprep.subr.mxu0 0.0
    %599 = vmatpush2.xpose.msra.mxu0 0.0
    %600 = vmatprep.subr.mxu0 0.0
    %601 = vmatpush2.xpose.msra.mxu0 0.0
    %602 = vmatprep.subr.mxu0 0.0
    %603 = vmatpush2.xpose.msra.mxu0 0.0
    %604 = vmatprep.subr.mxu0 0.0
    %605 = vmatpush2.xpose.msra.mxu0 0.0
    %606 = vmatprep.subr.mxu0 0.0
    %607 = vmatpush2.xpose.msra.mxu0 0.0
    %608 = vmatprep.subr.mxu0 0.0
    %609 = vmatpush2.xpose.msra.mxu0 0.0
    %610 = vmatprep.subr.mxu0 0.0
    %611 = vmatpush2.xpose.msra.mxu0 0.0
    %612 = vmatprep.subr.mxu0 0.0
    %613 = vmatpush2.xpose.msra.mxu0 0.0
    %614 = vmatprep.mubr.f32.mxu0 0.0
    %615 = vmatmul.mubr.f32.gmra.mxu0 %v549
    %v616 = vpop.f32.mrf.mxu0
    %v617 = vadd.f32 0.0, %v616
    %v618 = vpop.f32.mrf.mxu0
    %619 = vdwg.mxu0
    %v620 = vlaneseq
    %v621 = vshrl.u32 %v620, 7
    %v622 = vsub.s32 0, %v621
    %v623 = vrot.slane %v617, %v622
    %v624 = vadd.f32 %v548, %v623
    %vm625 = vcmp.gt.f32.partialorder %v624, 0.0
    %v626 = vmul.f32 %v624, 0.2
    %v627 = vsel %vm625, %v624, %v626
    %v628 = vsel %vm169, %v627, -1e+30
    %v629 = vsel %vm365, %v628, -inf
    %630 = vmax.xlane.f32.xlu0 %v629
    %v631 = vpop.xlane.xlu0 %630
    %v632 = vsub.f32 %v628, %v631
    %v633 = vmul.f32 %v632, 1.442695
    %v634 = vpow.pop %v633
    %v635 = vsel %vm365, %v634, 0.0
    %636 = vadd.xlane.f32.xlu0 %v635
    %v637 = vpop.xlane.xlu0 %636
    %v638 = vrcp.pop %v637
    %v639 = vmul.f32 %v634, %v638
    %v640 = vpack.c.bf16 %v639, %v639
    %v641 = vpack.c.bf16 %v534, %v534
    %v642 = vld [vmem:[#allocation13] sm:$0x1]
    %v644 = vlaneseq
    %v645 = vshrl.u32 %v644, 7
    %v646 = vsub.s32 0, %v645
    %v647 = vrot.slane %v642, %v646
    %v650 = vsel %vm365, %v640, 0
    %v653 = vsel %vm389, %v641, 0
    %655 = vmatprep.subr.bf16.mxu0 0
    %656 = vmatpush1.bf16.msra.mxu0 0
    %657 = vmatprep.subr.bf16.mxu0 0
    %658 = vmatpush1.bf16.msra.mxu0 0
    %659 = vmatprep.subr.bf16.mxu0 0
    %660 = vmatpush1.bf16.msra.mxu0 0
    %661 = vmatprep.subr.bf16.mxu0 0
    %662 = vmatpush1.bf16.msra.mxu0 0
    %663 = vmatprep.subr.bf16.mxu0 0
    %664 = vmatpush1.bf16.msra.mxu0 0
    %665 = vmatprep.subr.bf16.mxu0 0
    %666 = vmatpush1.bf16.msra.mxu0 0
    %667 = vmatprep.subr.bf16.mxu0 0
    %668 = vmatpush1.bf16.msra.mxu0 0
    %669 = vmatprep.subr.bf16.mxu0 0
    %670 = vmatpush1.bf16.msra.mxu0 %v653
    %671 = vmatprep.subr.bf16.mxu0 0
    %672 = vmatpush2.bf16.msra.mxu0 0
    %673 = vmatprep.subr.bf16.mxu0 0
    %674 = vmatpush2.bf16.msra.mxu0 0
    %675 = vmatprep.subr.bf16.mxu0 0
    %676 = vmatpush2.bf16.msra.mxu0 0
    %677 = vmatprep.subr.bf16.mxu0 0
    %678 = vmatpush2.bf16.msra.mxu0 0
    %679 = vmatprep.subr.bf16.mxu0 0
    %680 = vmatpush2.bf16.msra.mxu0 0
    %681 = vmatprep.subr.bf16.mxu0 0
    %682 = vmatpush2.bf16.msra.mxu0 0
    %683 = vmatprep.subr.bf16.mxu0 0
    %684 = vmatpush2.bf16.msra.mxu0 0
    %685 = vmatprep.subr.bf16.mxu0 0
    %686 = vmatpush2.bf16.msra.mxu0 0
    %687 = vmatprep.mubr.bf16.mxu0 0
    %688 = vmatmul.mubr.bf16.gmra.mxu0 %v650
    %v689 = vpop.f32.mrf.mxu0
    %v690 = vadd.f32 %v647, %v689
    %v691 = vpop.f32.mrf.mxu0
    %v692 = vpop.f32.mrf.mxu0
    %v693 = vpop.f32.mrf.mxu0
    %694 = vdwg.mxu0
    %v695 = vpack.c.bf16 %v690, %v690
    %v696 = vld [vmem:[#allocation15] sm:$0xff]
    %v697 = vld [vmem:[#allocation15 + $0x8] sm:$0xff]
    %v698 = vld [vmem:[#allocation15 + $0x10] sm:$0xff]
    %v699 = vld [vmem:[#allocation15 + $0x18] sm:$0xff]
    %v700 = vld [vmem:[#allocation15 + $0x20] sm:$0xff]
    %v701 = vld [vmem:[#allocation15 + $0x28] sm:$0xff]
    %v702 = vld [vmem:[#allocation15 + $0x30] sm:$0xff]
    %v703 = vld [vmem:[#allocation15 + $0x38] sm:$0xff]
    %v704 = vld [vmem:[#allocation15 + $0x40] sm:$0xff]
    %v705 = vld [vmem:[#allocation15 + $0x48] sm:$0xff]
    %v706 = vld [vmem:[#allocation15 + $0x50] sm:$0xff]
    %v707 = vld [vmem:[#allocation15 + $0x58] sm:$0xff]
    %v708 = vld [vmem:[#allocation15 + $0x60] sm:$0xff]
    %v709 = vld [vmem:[#allocation15 + $0x68] sm:$0xff]
    %v710 = vld [vmem:[#allocation15 + $0x70] sm:$0xff]
    %v711 = vld [vmem:[#allocation15 + $0x78] sm:$0xff]
    %v712 = vld [vmem:[#allocation15 + $0x80] sm:$0xff]
    %v713 = vld [vmem:[#allocation15 + $0x88] sm:$0xff]
    %v714 = vld [vmem:[#allocation15 + $0x90] sm:$0xff]
    %v715 = vld [vmem:[#allocation15 + $0x98] sm:$0xff]
    %v716 = vld [vmem:[#allocation15 + $0xa0] sm:$0xff]
    %v717 = vld [vmem:[#allocation15 + $0xa8] sm:$0xff]
    %v718 = vld [vmem:[#allocation15 + $0xb0] sm:$0xff]
    %v719 = vld [vmem:[#allocation15 + $0xb8] sm:$0xff]
    %v720 = vld [vmem:[#allocation15 + $0xc0] sm:$0xff]
    %v721 = vld [vmem:[#allocation15 + $0xc8] sm:$0xff]
    %v722 = vld [vmem:[#allocation15 + $0xd0] sm:$0xff]
    %v723 = vld [vmem:[#allocation15 + $0xd8] sm:$0xff]
    %v724 = vld [vmem:[#allocation15 + $0xe0] sm:$0xff]
    %v725 = vld [vmem:[#allocation15 + $0xe8] sm:$0xff]
    %v726 = vld [vmem:[#allocation15 + $0xf0] sm:$0xff]
    %v727 = vld [vmem:[#allocation15 + $0xf8] sm:$0xff]
    %v728 = vld [vmem:[%s12] sm:$0xf]
    %v730 = vlaneseq
    %v731 = vshrl.u32 %v730, 7
    %v732 = vsub.s32 0, %v731
    %v733 = vrot.slane %v728, %v732
    %v734 = vlaneseq
    %v735 = vshrl.u32 %v734, 7
    %v736 = vsub.s32 1, %v735
    %v737 = vrot.slane %v728, %v736
    %v738 = vlaneseq
    %v739 = vshrl.u32 %v738, 7
    %v740 = vsub.s32 2, %v739
    %v741 = vrot.slane %v728, %v740
    %v742 = vlaneseq
    %v743 = vshrl.u32 %v742, 7
    %v744 = vsub.s32 3, %v743
    %v745 = vrot.slane %v728, %v744
    %v782 = vunpack.c.l.b16 %v696
    %v783 = vunpack.c.h.b16 %v696
    %v784 = vunpack.c.l.b16 %v697
    %v785 = vunpack.c.h.b16 %v697
    %v786 = vunpack.c.l.b16 %v698
    %v787 = vunpack.c.h.b16 %v698
    %v788 = vunpack.c.l.b16 %v699
    %v789 = vunpack.c.h.b16 %v699
    %v790 = vunpack.c.l.b16 %v700
    %v791 = vunpack.c.h.b16 %v700
    %v792 = vunpack.c.l.b16 %v701
    %v793 = vunpack.c.h.b16 %v701
    %v794 = vunpack.c.l.b16 %v702
    %v795 = vunpack.c.h.b16 %v702
    %v796 = vunpack.c.l.b16 %v703
    %v797 = vunpack.c.h.b16 %v703
    %v798 = vunpack.c.l.b16 %v704
    %v799 = vunpack.c.h.b16 %v704
    %v800 = vunpack.c.l.b16 %v705
    %v801 = vunpack.c.h.b16 %v705
    %v802 = vunpack.c.l.b16 %v706
    %v803 = vunpack.c.h.b16 %v706
    %v804 = vunpack.c.l.b16 %v707
    %v805 = vunpack.c.h.b16 %v707
    %v806 = vunpack.c.l.b16 %v708
    %v807 = vunpack.c.h.b16 %v708
    %v808 = vunpack.c.l.b16 %v709
    %v809 = vunpack.c.h.b16 %v709
    %v810 = vunpack.c.l.b16 %v710
    %v811 = vunpack.c.h.b16 %v710
    %v812 = vunpack.c.l.b16 %v711
    %v813 = vunpack.c.h.b16 %v711
    %v814 = vunpack.c.l.b16 %v712
    %v815 = vunpack.c.h.b16 %v712
    %v816 = vunpack.c.l.b16 %v713
    %v817 = vunpack.c.h.b16 %v713
    %v818 = vunpack.c.l.b16 %v714
    %v819 = vunpack.c.h.b16 %v714
    %v820 = vunpack.c.l.b16 %v715
    %v821 = vunpack.c.h.b16 %v715
    %v822 = vunpack.c.l.b16 %v716
    %v823 = vunpack.c.h.b16 %v716
    %v824 = vunpack.c.l.b16 %v717
    %v825 = vunpack.c.h.b16 %v717
    %v826 = vunpack.c.l.b16 %v718
    %v827 = vunpack.c.h.b16 %v718
    %v828 = vunpack.c.l.b16 %v719
    %v829 = vunpack.c.h.b16 %v719
    %v830 = vunpack.c.l.b16 %v720
    %v831 = vunpack.c.h.b16 %v720
    %v832 = vunpack.c.l.b16 %v721
    %v833 = vunpack.c.h.b16 %v721
    %v834 = vunpack.c.l.b16 %v722
    %v835 = vunpack.c.h.b16 %v722
    %v836 = vunpack.c.l.b16 %v723
    %v837 = vunpack.c.h.b16 %v723
    %v838 = vunpack.c.l.b16 %v724
    %v839 = vunpack.c.h.b16 %v724
    %v840 = vunpack.c.l.b16 %v725
    %v841 = vunpack.c.h.b16 %v725
    %v842 = vunpack.c.l.b16 %v726
    %v843 = vunpack.c.h.b16 %v726
    %v844 = vunpack.c.l.b16 %v727
    %v845 = vunpack.c.h.b16 %v727
    %v846 = vpack.c.b16 %v786, %v782
    %v847 = vpack.c.b16 %v787, %v783
    %v848 = vpack.c.b16 %v788, %v784
    %v849 = vpack.c.b16 %v789, %v785
    %v850 = vpack.c.b16 %v794, %v790
    %v851 = vpack.c.b16 %v795, %v791
    %v852 = vpack.c.b16 %v796, %v792
    %v853 = vpack.c.b16 %v797, %v793
    %v854 = vpack.c.b16 %v802, %v798
    %v855 = vpack.c.b16 %v803, %v799
    %v856 = vpack.c.b16 %v804, %v800
    %v857 = vpack.c.b16 %v805, %v801
    %v858 = vpack.c.b16 %v810, %v806
    %v859 = vpack.c.b16 %v811, %v807
    %v860 = vpack.c.b16 %v812, %v808
    %v861 = vpack.c.b16 %v813, %v809
    %v862 = vpack.c.b16 %v818, %v814
    %v863 = vpack.c.b16 %v819, %v815
    %v864 = vpack.c.b16 %v820, %v816
    %v865 = vpack.c.b16 %v821, %v817
    %v866 = vpack.c.b16 %v826, %v822
    %v867 = vpack.c.b16 %v827, %v823
    %v868 = vpack.c.b16 %v828, %v824
    %v869 = vpack.c.b16 %v829, %v825
    %v870 = vpack.c.b16 %v834, %v830
    %v871 = vpack.c.b16 %v835, %v831
    %v872 = vpack.c.b16 %v836, %v832
    %v873 = vpack.c.b16 %v837, %v833
    %v874 = vpack.c.b16 %v842, %v838
    %v875 = vpack.c.b16 %v843, %v839
    %v876 = vpack.c.b16 %v844, %v840
    %v877 = vpack.c.b16 %v845, %v841
    %910 = vmatprep.subr.bf16.mxu0 %v875
    %911 = vmatpush1.bf16.msra.mxu0 %v874
    %912 = vmatprep.subr.bf16.mxu0 %v871
    %913 = vmatpush1.bf16.msra.mxu0 %v870
    %914 = vmatprep.subr.bf16.mxu0 %v867
    %915 = vmatpush1.bf16.msra.mxu0 %v866
    %916 = vmatprep.subr.bf16.mxu0 %v863
    %917 = vmatpush1.bf16.msra.mxu0 %v862
    %918 = vmatprep.subr.bf16.mxu0 %v859
    %919 = vmatpush1.bf16.msra.mxu0 %v858
    %920 = vmatprep.subr.bf16.mxu0 %v855
    %921 = vmatpush1.bf16.msra.mxu0 %v854
    %922 = vmatprep.subr.bf16.mxu0 %v851
    %923 = vmatpush1.bf16.msra.mxu0 %v850
    %924 = vmatprep.subr.bf16.mxu0 %v847
    %925 = vmatpush1.bf16.msra.mxu0 %v846
    %926 = vmatprep.subr.bf16.mxu0 0
    %927 = vmatpush2.bf16.msra.mxu0 0
    %928 = vmatprep.subr.bf16.mxu0 0
    %929 = vmatpush2.bf16.msra.mxu0 0
    %930 = vmatprep.subr.bf16.mxu0 0
    %931 = vmatpush2.bf16.msra.mxu0 0
    %932 = vmatprep.subr.bf16.mxu0 0
    %933 = vmatpush2.bf16.msra.mxu0 0
    %934 = vmatprep.subr.bf16.mxu0 0
    %935 = vmatpush2.bf16.msra.mxu0 0
    %936 = vmatprep.subr.bf16.mxu0 0
    %937 = vmatpush2.bf16.msra.mxu0 0
    %938 = vmatprep.subr.bf16.mxu0 0
    %939 = vmatpush2.bf16.msra.mxu0 0
    %940 = vmatprep.subr.bf16.mxu0 0
    %941 = vmatpush2.bf16.msra.mxu0 0
    %942 = vmatprep.mubr.bf16.mxu0 0
    %943 = vmatmul.mubr.bf16.gmra.mxu0 %v695
    %v944 = vpop.f32.mrf.mxu0
    %v945 = vadd.f32 %v733, %v944
    %v946 = vpop.f32.mrf.mxu0
    %v947 = vadd.f32 %v737, %v946
    %v948 = vpop.f32.mrf.mxu0
    %v949 = vpop.f32.mrf.mxu0
    %950 = vdwg.mxu0
    %951 = vmatprep.subr.bf16.mxu0 %v877
    %952 = vmatpush1.bf16.msra.mxu0 %v876
    %953 = vmatprep.subr.bf16.mxu0 %v873
    %954 = vmatpush1.bf16.msra.mxu0 %v872
    %955 = vmatprep.subr.bf16.mxu0 %v869
    %956 = vmatpush1.bf16.msra.mxu0 %v868
    %957 = vmatprep.subr.bf16.mxu0 %v865
    %958 = vmatpush1.bf16.msra.mxu0 %v864
    %959 = vmatprep.subr.bf16.mxu0 %v861
    %960 = vmatpush1.bf16.msra.mxu0 %v860
    %961 = vmatprep.subr.bf16.mxu0 %v857
    %962 = vmatpush1.bf16.msra.mxu0 %v856
    %963 = vmatprep.subr.bf16.mxu0 %v853
    %964 = vmatpush1.bf16.msra.mxu0 %v852
    %965 = vmatprep.subr.bf16.mxu0 %v849
    %966 = vmatpush1.bf16.msra.mxu0 %v848
    %967 = vmatprep.subr.bf16.mxu0 0
    %968 = vmatpush2.bf16.msra.mxu0 0
    %969 = vmatprep.subr.bf16.mxu0 0
    %970 = vmatpush2.bf16.msra.mxu0 0
    %971 = vmatprep.subr.bf16.mxu0 0
    %972 = vmatpush2.bf16.msra.mxu0 0
    %973 = vmatprep.subr.bf16.mxu0 0
    %974 = vmatpush2.bf16.msra.mxu0 0
    %975 = vmatprep.subr.bf16.mxu0 0
    %976 = vmatpush2.bf16.msra.mxu0 0
    %977 = vmatprep.subr.bf16.mxu0 0
    %978 = vmatpush2.bf16.msra.mxu0 0
    %979 = vmatprep.subr.bf16.mxu0 0
    %980 = vmatpush2.bf16.msra.mxu0 0
    %981 = vmatprep.subr.bf16.mxu0 0
    %982 = vmatpush2.bf16.msra.mxu0 0
    %983 = vmatprep.mubr.bf16.mxu0 0
    %984 = vmatmul.mubr.bf16.gmra.mxu0 %v695
    %v985 = vpop.f32.mrf.mxu0
    %v986 = vadd.f32 %v741, %v985
    %v987 = vpop.f32.mrf.mxu0
    %v988 = vadd.f32 %v745, %v987
    %v989 = vpop.f32.mrf.mxu0
    %v990 = vpop.f32.mrf.mxu0
    %991 = vdwg.mxu0
    %992 = vst [vmem:[#allocation2] sm:$0xff] %v945
    %993 = vst [vmem:[#allocation2 + $0x8] sm:$0xff] %v947
    %994 = vst [vmem:[#allocation2 + $0x10] sm:$0xff] %v986
    %995 = vst [vmem:[#allocation2 + $0x18] sm:$0xff] %v988
    %v996 = vld [vmem:[#allocation2] ss:$8 sm:$0xf]
    %v997 = vld [vmem:[#allocation16] sm:$0xff]
    %v998 = vld [vmem:[#allocation16 + $0x8] sm:$0xff]
    %v999 = vld [vmem:[#allocation16 + $0x10] sm:$0xff]
    %v1000 = vld [vmem:[#allocation16 + $0x18] sm:$0xff]
    %v1001 = vld [vmem:[#allocation16 + $0x20] sm:$0xff]
    %v1002 = vld [vmem:[#allocation16 + $0x28] sm:$0xff]
    %v1003 = vld [vmem:[#allocation16 + $0x30] sm:$0xff]
    %v1004 = vld [vmem:[#allocation16 + $0x38] sm:$0xff]
    %v1005 = vld [vmem:[#allocation16 + $0x40] sm:$0xff]
    %v1006 = vld [vmem:[#allocation16 + $0x48] sm:$0xff]
    %v1007 = vld [vmem:[#allocation16 + $0x50] sm:$0xff]
    %v1008 = vld [vmem:[#allocation16 + $0x58] sm:$0xff]
    %v1009 = vld [vmem:[#allocation16 + $0x60] sm:$0xff]
    %v1010 = vld [vmem:[#allocation16 + $0x68] sm:$0xff]
    %v1011 = vld [vmem:[#allocation16 + $0x70] sm:$0xff]
    %v1012 = vld [vmem:[#allocation16 + $0x78] sm:$0xff]
    %v1013 = vld [vmem:[#allocation16 + $0x80] sm:$0xff]
    %v1014 = vld [vmem:[#allocation16 + $0x88] sm:$0xff]
    %v1015 = vld [vmem:[#allocation16 + $0x90] sm:$0xff]
    %v1016 = vld [vmem:[#allocation16 + $0x98] sm:$0xff]
    %v1017 = vld [vmem:[#allocation16 + $0xa0] sm:$0xff]
    %v1018 = vld [vmem:[#allocation16 + $0xa8] sm:$0xff]
    %v1019 = vld [vmem:[#allocation16 + $0xb0] sm:$0xff]
    %v1020 = vld [vmem:[#allocation16 + $0xb8] sm:$0xff]
    %v1021 = vld [vmem:[#allocation16 + $0xc0] sm:$0xff]
    %v1022 = vld [vmem:[#allocation16 + $0xc8] sm:$0xff]
    %v1023 = vld [vmem:[#allocation16 + $0xd0] sm:$0xff]
    %v1024 = vld [vmem:[#allocation16 + $0xd8] sm:$0xff]
    %v1025 = vld [vmem:[#allocation16 + $0xe0] sm:$0xff]
    %v1026 = vld [vmem:[#allocation16 + $0xe8] sm:$0xff]
    %v1027 = vld [vmem:[#allocation16 + $0xf0] sm:$0xff]
    %v1028 = vld [vmem:[#allocation16 + $0xf8] sm:$0xff]
    %v1061 = vunpack.c.l.b16 %v997
    %v1062 = vunpack.c.h.b16 %v997
    %v1063 = vunpack.c.l.b16 %v998
    %v1064 = vunpack.c.h.b16 %v998
    %v1065 = vunpack.c.l.b16 %v999
    %v1066 = vunpack.c.h.b16 %v999
    %v1067 = vunpack.c.l.b16 %v1000
    %v1068 = vunpack.c.h.b16 %v1000
    %v1069 = vunpack.c.l.b16 %v1001
    %v1070 = vunpack.c.h.b16 %v1001
    %v1071 = vunpack.c.l.b16 %v1002
    %v1072 = vunpack.c.h.b16 %v1002
    %v1073 = vunpack.c.l.b16 %v1003
    %v1074 = vunpack.c.h.b16 %v1003
    %v1075 = vunpack.c.l.b16 %v1004
    %v1076 = vunpack.c.h.b16 %v1004
    %v1077 = vunpack.c.l.b16 %v1005
    %v1078 = vunpack.c.h.b16 %v1005
    %v1079 = vunpack.c.l.b16 %v1006
    %v1080 = vunpack.c.h.b16 %v1006
    %v1081 = vunpack.c.l.b16 %v1007
    %v1082 = vunpack.c.h.b16 %v1007
    %v1083 = vunpack.c.l.b16 %v1008
    %v1084 = vunpack.c.h.b16 %v1008
    %v1085 = vunpack.c.l.b16 %v1009
    %v1086 = vunpack.c.h.b16 %v1009
    %v1087 = vunpack.c.l.b16 %v1010
    %v1088 = vunpack.c.h.b16 %v1010
    %v1089 = vunpack.c.l.b16 %v1011
    %v1090 = vunpack.c.h.b16 %v1011
    %v1091 = vunpack.c.l.b16 %v1012
    %v1092 = vunpack.c.h.b16 %v1012
    %v1093 = vunpack.c.l.b16 %v1013
    %v1094 = vunpack.c.h.b16 %v1013
    %v1095 = vunpack.c.l.b16 %v1014
    %v1096 = vunpack.c.h.b16 %v1014
    %v1097 = vunpack.c.l.b16 %v1015
    %v1098 = vunpack.c.h.b16 %v1015
    %v1099 = vunpack.c.l.b16 %v1016
    %v1100 = vunpack.c.h.b16 %v1016
    %v1101 = vunpack.c.l.b16 %v1017
    %v1102 = vunpack.c.h.b16 %v1017
    %v1103 = vunpack.c.l.b16 %v1018
    %v1104 = vunpack.c.h.b16 %v1018
    %v1105 = vunpack.c.l.b16 %v1019
    %v1106 = vunpack.c.h.b16 %v1019
    %v1107 = vunpack.c.l.b16 %v1020
    %v1108 = vunpack.c.h.b16 %v1020
    %v1109 = vunpack.c.l.b16 %v1021
    %v1110 = vunpack.c.h.b16 %v1021
    %v1111 = vunpack.c.l.b16 %v1022
    %v1112 = vunpack.c.h.b16 %v1022
    %v1113 = vunpack.c.l.b16 %v1023
    %v1114 = vunpack.c.h.b16 %v1023
    %v1115 = vunpack.c.l.b16 %v1024
    %v1116 = vunpack.c.h.b16 %v1024
    %v1117 = vunpack.c.l.b16 %v1025
    %v1118 = vunpack.c.h.b16 %v1025
    %v1119 = vunpack.c.l.b16 %v1026
    %v1120 = vunpack.c.h.b16 %v1026
    %v1121 = vunpack.c.l.b16 %v1027
    %v1122 = vunpack.c.h.b16 %v1027
    %v1123 = vunpack.c.l.b16 %v1028
    %v1124 = vunpack.c.h.b16 %v1028
    %v1125 = vpack.c.b16 %v1065, %v1061
    %v1126 = vpack.c.b16 %v1066, %v1062
    %v1127 = vpack.c.b16 %v1067, %v1063
    %v1128 = vpack.c.b16 %v1068, %v1064
    %v1129 = vpack.c.b16 %v1073, %v1069
    %v1130 = vpack.c.b16 %v1074, %v1070
    %v1131 = vpack.c.b16 %v1075, %v1071
    %v1132 = vpack.c.b16 %v1076, %v1072
    %v1133 = vpack.c.b16 %v1081, %v1077
    %v1134 = vpack.c.b16 %v1082, %v1078
    %v1135 = vpack.c.b16 %v1083, %v1079
    %v1136 = vpack.c.b16 %v1084, %v1080
    %v1137 = vpack.c.b16 %v1089, %v1085
    %v1138 = vpack.c.b16 %v1090, %v1086
    %v1139 = vpack.c.b16 %v1091, %v1087
    %v1140 = vpack.c.b16 %v1092, %v1088
    %v1141 = vpack.c.b16 %v1097, %v1093
    %v1142 = vpack.c.b16 %v1098, %v1094
    %v1143 = vpack.c.b16 %v1099, %v1095
    %v1144 = vpack.c.b16 %v1100, %v1096
    %v1145 = vpack.c.b16 %v1105, %v1101
    %v1146 = vpack.c.b16 %v1106, %v1102
    %v1147 = vpack.c.b16 %v1107, %v1103
    %v1148 = vpack.c.b16 %v1108, %v1104
    %v1149 = vpack.c.b16 %v1113, %v1109
    %v1150 = vpack.c.b16 %v1114, %v1110
    %v1151 = vpack.c.b16 %v1115, %v1111
    %v1152 = vpack.c.b16 %v1116, %v1112
    %v1153 = vpack.c.b16 %v1121, %v1117
    %v1154 = vpack.c.b16 %v1122, %v1118
    %v1155 = vpack.c.b16 %v1123, %v1119
    %v1156 = vpack.c.b16 %v1124, %v1120
    %1189 = vmatprep.subr.bf16.mxu0 %v1154
    %1190 = vmatpush1.bf16.msra.mxu0 %v1153
    %1191 = vmatprep.subr.bf16.mxu0 %v1150
    %1192 = vmatpush1.bf16.msra.mxu0 %v1149
    %1193 = vmatprep.subr.bf16.mxu0 %v1146
    %1194 = vmatpush1.bf16.msra.mxu0 %v1145
    %1195 = vmatprep.subr.bf16.mxu0 %v1142
    %1196 = vmatpush1.bf16.msra.mxu0 %v1141
    %1197 = vmatprep.subr.bf16.mxu0 %v1138
    %1198 = vmatpush1.bf16.msra.mxu0 %v1137
    %1199 = vmatprep.subr.bf16.mxu0 %v1134
    %1200 = vmatpush1.bf16.msra.mxu0 %v1133
    %1201 = vmatprep.subr.bf16.mxu0 %v1130
    %1202 = vmatpush1.bf16.msra.mxu0 %v1129
    %1203 = vmatprep.subr.bf16.mxu0 %v1126
    %1204 = vmatpush1.bf16.msra.mxu0 %v1125
    %1205 = vmatprep.subr.bf16.mxu0 0
    %1206 = vmatpush2.bf16.msra.mxu0 0
    %1207 = vmatprep.subr.bf16.mxu0 0
    %1208 = vmatpush2.bf16.msra.mxu0 0
    %1209 = vmatprep.subr.bf16.mxu0 0
    %1210 = vmatpush2.bf16.msra.mxu0 0
    %1211 = vmatprep.subr.bf16.mxu0 0
    %1212 = vmatpush2.bf16.msra.mxu0 0
    %1213 = vmatprep.subr.bf16.mxu0 0
    %1214 = vmatpush2.bf16.msra.mxu0 0
    %1215 = vmatprep.subr.bf16.mxu0 0
    %1216 = vmatpush2.bf16.msra.mxu0 0
    %1217 = vmatprep.subr.bf16.mxu0 0
    %1218 = vmatpush2.bf16.msra.mxu0 0
    %1219 = vmatprep.subr.bf16.mxu0 0
    %1220 = vmatpush2.bf16.msra.mxu0 0
    %1221 = vmatprep.mubr.bf16.mxu0 0
    %1222 = vmatmul.mubr.bf16.gmra.mxu0 0
    %v1223 = vpop.f32.mrf.mxu0
    %v1224 = vadd.f32 0.0, %v1223
    %v1225 = vpop.f32.mrf.mxu0
    %v1226 = vadd.f32 0.0, %v1225
    %v1227 = vpop.f32.mrf.mxu0
    %v1228 = vpop.f32.mrf.mxu0
    %1229 = vdwg.mxu0
    %1230 = vmatprep.subr.bf16.mxu0 %v1156
    %1231 = vmatpush1.bf16.msra.mxu0 %v1155
    %1232 = vmatprep.subr.bf16.mxu0 %v1152
    %1233 = vmatpush1.bf16.msra.mxu0 %v1151
    %1234 = vmatprep.subr.bf16.mxu0 %v1148
    %1235 = vmatpush1.bf16.msra.mxu0 %v1147
    %1236 = vmatprep.subr.bf16.mxu0 %v1144
    %1237 = vmatpush1.bf16.msra.mxu0 %v1143
    %1238 = vmatprep.subr.bf16.mxu0 %v1140
    %1239 = vmatpush1.bf16.msra.mxu0 %v1139
    %1240 = vmatprep.subr.bf16.mxu0 %v1136
    %1241 = vmatpush1.bf16.msra.mxu0 %v1135
    %1242 = vmatprep.subr.bf16.mxu0 %v1132
    %1243 = vmatpush1.bf16.msra.mxu0 %v1131
    %1244 = vmatprep.subr.bf16.mxu0 %v1128
    %1245 = vmatpush1.bf16.msra.mxu0 %v1127
    %1246 = vmatprep.subr.bf16.mxu0 0
    %1247 = vmatpush2.bf16.msra.mxu0 0
    %1248 = vmatprep.subr.bf16.mxu0 0
    %1249 = vmatpush2.bf16.msra.mxu0 0
    %1250 = vmatprep.subr.bf16.mxu0 0
    %1251 = vmatpush2.bf16.msra.mxu0 0
    %1252 = vmatprep.subr.bf16.mxu0 0
    %1253 = vmatpush2.bf16.msra.mxu0 0
    %1254 = vmatprep.subr.bf16.mxu0 0
    %1255 = vmatpush2.bf16.msra.mxu0 0
    %1256 = vmatprep.subr.bf16.mxu0 0
    %1257 = vmatpush2.bf16.msra.mxu0 0
    %1258 = vmatprep.subr.bf16.mxu0 0
    %1259 = vmatpush2.bf16.msra.mxu0 0
    %1260 = vmatprep.subr.bf16.mxu0 0
    %1261 = vmatpush2.bf16.msra.mxu0 0
    %1262 = vmatprep.mubr.bf16.mxu0 0
    %1263 = vmatmul.mubr.bf16.gmra.mxu0 0
    %v1264 = vpop.f32.mrf.mxu0
    %v1265 = vadd.f32 0.0, %v1264
    %v1266 = vpop.f32.mrf.mxu0
    %v1267 = vadd.f32 0.0, %v1266
    %v1268 = vpop.f32.mrf.mxu0
    %v1269 = vpop.f32.mrf.mxu0
    %1270 = vdwg.mxu0
    %v1275 = vcombine.low %v1224, %v1226
    %v1276 = vcombine.low %v1265, %v1267
    %v1278 = vunpack.c.l.s4 1966171168
    %v1279 = vunpack.c.0.s8 %v1278
    %v1280 = vlaneseq
    %v1281 = vshrl.u32 %v1280, 7
    %v1282 = vsub.s32 %v1279, %v1281
    %v1283 = vrot.slane %v1275, %v1282
    %v1285 = vunpack.c.l.s4 1966171168
    %v1286 = vunpack.c.0.s8 %v1285
    %v1287 = vlaneseq
    %v1288 = vshrl.u32 %v1287, 7
    %v1289 = vsub.s32 %v1286, %v1288
    %v1290 = vrot.slane %v1276, %v1289
    %v1291 = vcombine.low %v1283, %v1290
    %v1293 = vunpack.c.l.s4 1966171168
    %v1294 = vunpack.c.0.s8 %v1293
    %v1295 = vlaneseq
    %v1296 = vshrl.u32 %v1295, 7
    %v1297 = vsub.s32 %v1294, %v1296
    %v1298 = vrot.slane %v1291, %v1297
    %v1300 = vadd.f32 %v996, %v1298
    %v1301 = vxor.u32 %v1300, 2147483648
    %v1302 = vmul.f32 %v1301, 1.442695
    %v1303 = vpow.pop %v1302
    %v1304 = vadd.f32 %v1303, 1.0
    %v1305 = vrcp.pop %v1304
    %v1306 = vmul.f32 1.0, %v1305
    %v1308 = vrot.slane %v1300, 1
    %v1310 = vxor.u32 %v1308, 2147483648
    %v1311 = vmul.f32 %v1310, 1.442695
    %v1312 = vpow.pop %v1311
    %v1313 = vadd.f32 %v1312, 1.0
    %v1314 = vrcp.pop %v1313
    %v1315 = vmul.f32 1.0, %v1314
    %v1316 = vrot.slane %v1300, 2
    %v1318 = vtanh.pop %v1316
    %v1319 = vrot.slane %v1300, 3
    %v1321 = vxor.u32 %v1319, 2147483648
    %v1322 = vmul.f32 %v1321, 1.442695
    %v1323 = vpow.pop %v1322
    %v1324 = vadd.f32 %v1323, 1.0
    %v1325 = vrcp.pop %v1324
    %v1326 = vmul.f32 1.0, %v1325
    %v1327 = vmul.f32 %v1315, 0.0
    %v1328 = vmul.f32 %v1306, %v1318
    %v1329 = vadd.f32 %v1327, %v1328
    %v1330 = vtanh.pop %v1329
    %v1331 = vmul.f32 %v1326, %v1330
    %1332 = vst [vmem:[#allocation3] sm:$0x1] %v1331
    %s1333 = scalar_lea.vmem [#allocation2], 1
    %v1334 = vld [vmem:[%s1333] ss:$8 sm:$0xf]
    %v1335 = vpack.c.bf16 %v1331, %v1331
    %v1336 = vld [vmem:[#allocation16] sm:$0xff]
    %v1337 = vld [vmem:[#allocation16 + $0x8] sm:$0xff]
    %v1338 = vld [vmem:[#allocation16 + $0x10] sm:$0xff]
    %v1339 = vld [vmem:[#allocation16 + $0x18] sm:$0xff]
    %v1340 = vld [vmem:[#allocation16 + $0x20] sm:$0xff]
    %v1341 = vld [vmem:[#allocation16 + $0x28] sm:$0xff]
    %v1342 = vld [vmem:[#allocation16 + $0x30] sm:$0xff]
    %v1343 = vld [vmem:[#allocation16 + $0x38] sm:$0xff]
    %v1344 = vld [vmem:[#allocation16 + $0x40] sm:$0xff]
    %v1345 = vld [vmem:[#allocation16 + $0x48] sm:$0xff]
    %v1346 = vld [vmem:[#allocation16 + $0x50] sm:$0xff]
    %v1347 = vld [vmem:[#allocation16 + $0x58] sm:$0xff]
    %v1348 = vld [vmem:[#allocation16 + $0x60] sm:$0xff]
    %v1349 = vld [vmem:[#allocation16 + $0x68] sm:$0xff]
    %v1350 = vld [vmem:[#allocation16 + $0x70] sm:$0xff]
    %v1351 = vld [vmem:[#allocation16 + $0x78] sm:$0xff]
    %v1352 = vld [vmem:[#allocation16 + $0x80] sm:$0xff]
    %v1353 = vld [vmem:[#allocation16 + $0x88] sm:$0xff]
    %v1354 = vld [vmem:[#allocation16 + $0x90] sm:$0xff]
    %v1355 = vld [vmem:[#allocation16 + $0x98] sm:$0xff]
    %v1356 = vld [vmem:[#allocation16 + $0xa0] sm:$0xff]
    %v1357 = vld [vmem:[#allocation16 + $0xa8] sm:$0xff]
    %v1358 = vld [vmem:[#allocation16 + $0xb0] sm:$0xff]
    %v1359 = vld [vmem:[#allocation16 + $0xb8] sm:$0xff]
    %v1360 = vld [vmem:[#allocation16 + $0xc0] sm:$0xff]
    %v1361 = vld [vmem:[#allocation16 + $0xc8] sm:$0xff]
    %v1362 = vld [vmem:[#allocation16 + $0xd0] sm:$0xff]
    %v1363 = vld [vmem:[#allocation16 + $0xd8] sm:$0xff]
    %v1364 = vld [vmem:[#allocation16 + $0xe0] sm:$0xff]
    %v1365 = vld [vmem:[#allocation16 + $0xe8] sm:$0xff]
    %v1366 = vld [vmem:[#allocation16 + $0xf0] sm:$0xff]
    %v1367 = vld [vmem:[#allocation16 + $0xf8] sm:$0xff]
    %v1400 = vunpack.c.l.b16 %v1336
    %v1401 = vunpack.c.h.b16 %v1336
    %v1402 = vunpack.c.l.b16 %v1337
    %v1403 = vunpack.c.h.b16 %v1337
    %v1404 = vunpack.c.l.b16 %v1338
    %v1405 = vunpack.c.h.b16 %v1338
    %v1406 = vunpack.c.l.b16 %v1339
    %v1407 = vunpack.c.h.b16 %v1339
    %v1408 = vunpack.c.l.b16 %v1340
    %v1409 = vunpack.c.h.b16 %v1340
    %v1410 = vunpack.c.l.b16 %v1341
    %v1411 = vunpack.c.h.b16 %v1341
    %v1412 = vunpack.c.l.b16 %v1342
    %v1413 = vunpack.c.h.b16 %v1342
    %v1414 = vunpack.c.l.b16 %v1343
    %v1415 = vunpack.c.h.b16 %v1343
    %v1416 = vunpack.c.l.b16 %v1344
    %v1417 = vunpack.c.h.b16 %v1344
    %v1418 = vunpack.c.l.b16 %v1345
    %v1419 = vunpack.c.h.b16 %v1345
    %v1420 = vunpack.c.l.b16 %v1346
    %v1421 = vunpack.c.h.b16 %v1346
    %v1422 = vunpack.c.l.b16 %v1347
    %v1423 = vunpack.c.h.b16 %v1347
    %v1424 = vunpack.c.l.b16 %v1348
    %v1425 = vunpack.c.h.b16 %v1348
    %v1426 = vunpack.c.l.b16 %v1349
    %v1427 = vunpack.c.h.b16 %v1349
    %v1428 = vunpack.c.l.b16 %v1350
    %v1429 = vunpack.c.h.b16 %v1350
    %v1430 = vunpack.c.l.b16 %v1351
    %v1431 = vunpack.c.h.b16 %v1351
    %v1432 = vunpack.c.l.b16 %v1352
    %v1433 = vunpack.c.h.b16 %v1352
    %v1434 = vunpack.c.l.b16 %v1353
    %v1435 = vunpack.c.h.b16 %v1353
    %v1436 = vunpack.c.l.b16 %v1354
    %v1437 = vunpack.c.h.b16 %v1354
    %v1438 = vunpack.c.l.b16 %v1355
    %v1439 = vunpack.c.h.b16 %v1355
    %v1440 = vunpack.c.l.b16 %v1356
    %v1441 = vunpack.c.h.b16 %v1356
    %v1442 = vunpack.c.l.b16 %v1357
    %v1443 = vunpack.c.h.b16 %v1357
    %v1444 = vunpack.c.l.b16 %v1358
    %v1445 = vunpack.c.h.b16 %v1358
    %v1446 = vunpack.c.l.b16 %v1359
    %v1447 = vunpack.c.h.b16 %v1359
    %v1448 = vunpack.c.l.b16 %v1360
    %v1449 = vunpack.c.h.b16 %v1360
    %v1450 = vunpack.c.l.b16 %v1361
    %v1451 = vunpack.c.h.b16 %v1361
    %v1452 = vunpack.c.l.b16 %v1362
    %v1453 = vunpack.c.h.b16 %v1362
    %v1454 = vunpack.c.l.b16 %v1363
    %v1455 = vunpack.c.h.b16 %v1363
    %v1456 = vunpack.c.l.b16 %v1364
    %v1457 = vunpack.c.h.b16 %v1364
    %v1458 = vunpack.c.l.b16 %v1365
    %v1459 = vunpack.c.h.b16 %v1365
    %v1460 = vunpack.c.l.b16 %v1366
    %v1461 = vunpack.c.h.b16 %v1366
    %v1462 = vunpack.c.l.b16 %v1367
    %v1463 = vunpack.c.h.b16 %v1367
    %v1464 = vpack.c.b16 %v1404, %v1400
    %v1465 = vpack.c.b16 %v1405, %v1401
    %v1466 = vpack.c.b16 %v1406, %v1402
    %v1467 = vpack.c.b16 %v1407, %v1403
    %v1468 = vpack.c.b16 %v1412, %v1408
    %v1469 = vpack.c.b16 %v1413, %v1409
    %v1470 = vpack.c.b16 %v1414, %v1410
    %v1471 = vpack.c.b16 %v1415, %v1411
    %v1472 = vpack.c.b16 %v1420, %v1416
    %v1473 = vpack.c.b16 %v1421, %v1417
    %v1474 = vpack.c.b16 %v1422, %v1418
    %v1475 = vpack.c.b16 %v1423, %v1419
    %v1476 = vpack.c.b16 %v1428, %v1424
    %v1477 = vpack.c.b16 %v1429, %v1425
    %v1478 = vpack.c.b16 %v1430, %v1426
    %v1479 = vpack.c.b16 %v1431, %v1427
    %v1480 = vpack.c.b16 %v1436, %v1432
    %v1481 = vpack.c.b16 %v1437, %v1433
    %v1482 = vpack.c.b16 %v1438, %v1434
    %v1483 = vpack.c.b16 %v1439, %v1435
    %v1484 = vpack.c.b16 %v1444, %v1440
    %v1485 = vpack.c.b16 %v1445, %v1441
    %v1486 = vpack.c.b16 %v1446, %v1442
    %v1487 = vpack.c.b16 %v1447, %v1443
    %v1488 = vpack.c.b16 %v1452, %v1448
    %v1489 = vpack.c.b16 %v1453, %v1449
    %v1490 = vpack.c.b16 %v1454, %v1450
    %v1491 = vpack.c.b16 %v1455, %v1451
    %v1492 = vpack.c.b16 %v1460, %v1456
    %v1493 = vpack.c.b16 %v1461, %v1457
    %v1494 = vpack.c.b16 %v1462, %v1458
    %v1495 = vpack.c.b16 %v1463, %v1459
    %1528 = vmatprep.subr.bf16.mxu0 %v1493
    %1529 = vmatpush1.bf16.msra.mxu0 %v1492
    %1530 = vmatprep.subr.bf16.mxu0 %v1489
    %1531 = vmatpush1.bf16.msra.mxu0 %v1488
    %1532 = vmatprep.subr.bf16.mxu0 %v1485
    %1533 = vmatpush1.bf16.msra.mxu0 %v1484
    %1534 = vmatprep.subr.bf16.mxu0 %v1481
    %1535 = vmatpush1.bf16.msra.mxu0 %v1480
    %1536 = vmatprep.subr.bf16.mxu0 %v1477
    %1537 = vmatpush1.bf16.msra.mxu0 %v1476
    %1538 = vmatprep.subr.bf16.mxu0 %v1473
    %1539 = vmatpush1.bf16.msra.mxu0 %v1472
    %1540 = vmatprep.subr.bf16.mxu0 %v1469
    %1541 = vmatpush1.bf16.msra.mxu0 %v1468
    %1542 = vmatprep.subr.bf16.mxu0 %v1465
    %1543 = vmatpush1.bf16.msra.mxu0 %v1464
    %1544 = vmatprep.subr.bf16.mxu0 0
    %1545 = vmatpush2.bf16.msra.mxu0 0
    %1546 = vmatprep.subr.bf16.mxu0 0
    %1547 = vmatpush2.bf16.msra.mxu0 0
    %1548 = vmatprep.subr.bf16.mxu0 0
    %1549 = vmatpush2.bf16.msra.mxu0 0
    %1550 = vmatprep.subr.bf16.mxu0 0
    %1551 = vmatpush2.bf16.msra.mxu0 0
    %1552 = vmatprep.subr.bf16.mxu0 0
    %1553 = vmatpush2.bf16.msra.mxu0 0
    %1554 = vmatprep.subr.bf16.mxu0 0
    %1555 = vmatpush2.bf16.msra.mxu0 0
    %1556 = vmatprep.subr.bf16.mxu0 0
    %1557 = vmatpush2.bf16.msra.mxu0 0
    %1558 = vmatprep.subr.bf16.mxu0 0
    %1559 = vmatpush2.bf16.msra.mxu0 0
    %1560 = vmatprep.mubr.bf16.mxu0 0
    %1561 = vmatmul.mubr.bf16.gmra.mxu0 %v1335
    %v1562 = vpop.f32.mrf.mxu0
    %v1563 = vadd.f32 0.0, %v1562
    %v1564 = vpop.f32.mrf.mxu0
    %v1565 = vadd.f32 0.0, %v1564
    %v1566 = vpop.f32.mrf.mxu0
    %v1567 = vpop.f32.mrf.mxu0
    %1568 = vdwg.mxu0
    %1569 = vmatprep.subr.bf16.mxu0 %v1495
    %1570 = vmatpush1.bf16.msra.mxu0 %v1494
    %1571 = vmatprep.subr.bf16.mxu0 %v1491
    %1572 = vmatpush1.bf16.msra.mxu0 %v1490
    %1573 = vmatprep.subr.bf16.mxu0 %v1487
    %1574 = vmatpush1.bf16.msra.mxu0 %v1486
    %1575 = vmatprep.subr.bf16.mxu0 %v1483
    %1576 = vmatpush1.bf16.msra.mxu0 %v1482
    %1577 = vmatprep.subr.bf16.mxu0 %v1479
    %1578 = vmatpush1.bf16.msra.mxu0 %v1478
    %1579 = vmatprep.subr.bf16.mxu0 %v1475
    %1580 = vmatpush1.bf16.msra.mxu0 %v1474
    %1581 = vmatprep.subr.bf16.mxu0 %v1471
    %1582 = vmatpush1.bf16.msra.mxu0 %v1470
    %1583 = vmatprep.subr.bf16.mxu0 %v1467
    %1584 = vmatpush1.bf16.msra.mxu0 %v1466
    %1585 = vmatprep.subr.bf16.mxu0 0
    %1586 = vmatpush2.bf16.msra.mxu0 0
    %1587 = vmatprep.subr.bf16.mxu0 0
    %1588 = vmatpush2.bf16.msra.mxu0 0
    %1589 = vmatprep.subr.bf16.mxu0 0
    %1590 = vmatpush2.bf16.msra.mxu0 0
    %1591 = vmatprep.subr.bf16.mxu0 0
    %1592 = vmatpush2.bf16.msra.mxu0 0
    %1593 = vmatprep.subr.bf16.mxu0 0
    %1594 = vmatpush2.bf16.msra.mxu0 0
    %1595 = vmatprep.subr.bf16.mxu0 0
    %1596 = vmatpush2.bf16.msra.mxu0 0
    %1597 = vmatprep.subr.bf16.mxu0 0
    %1598 = vmatpush2.bf16.msra.mxu0 0
    %1599 = vmatprep.subr.bf16.mxu0 0
    %1600 = vmatpush2.bf16.msra.mxu0 0
    %1601 = vmatprep.mubr.bf16.mxu0 0
    %1602 = vmatmul.mubr.bf16.gmra.mxu0 %v1335
    %v1603 = vpop.f32.mrf.mxu0
    %v1604 = vadd.f32 0.0, %v1603
    %v1605 = vpop.f32.mrf.mxu0
    %v1606 = vadd.f32 0.0, %v1605
    %v1607 = vpop.f32.mrf.mxu0
    %v1608 = vpop.f32.mrf.mxu0
    %1609 = vdwg.mxu0
    %v1614 = vcombine.low %v1563, %v1565
    %v1615 = vcombine.low %v1604, %v1606
    %v1617 = vunpack.c.l.s4 1966171168
    %v1618 = vunpack.c.0.s8 %v1617
    %v1619 = vlaneseq
    %v1620 = vshrl.u32 %v1619, 7
    %v1621 = vsub.s32 %v1618, %v1620
    %v1622 = vrot.slane %v1614, %v1621
    %v1624 = vunpack.c.l.s4 1966171168
    %v1625 = vunpack.c.0.s8 %v1624
    %v1626 = vlaneseq
    %v1627 = vshrl.u32 %v1626, 7
    %v1628 = vsub.s32 %v1625, %v1627
    %v1629 = vrot.slane %v1615, %v1628
    %v1630 = vcombine.low %v1622, %v1629
    %v1632 = vunpack.c.l.s4 1966171168
    %v1633 = vunpack.c.0.s8 %v1632
    %v1634 = vlaneseq
    %v1635 = vshrl.u32 %v1634, 7
    %v1636 = vsub.s32 %v1633, %v1635
    %v1637 = vrot.slane %v1630, %v1636
    %v1639 = vadd.f32 %v1334, %v1637
    %v1640 = vxor.u32 %v1639, 2147483648
    %v1641 = vmul.f32 %v1640, 1.442695
    %v1642 = vpow.pop %v1641
    %v1643 = vadd.f32 %v1642, 1.0
    %v1644 = vrcp.pop %v1643
    %v1645 = vmul.f32 1.0, %v1644
    %v1647 = vrot.slane %v1639, 1
    %v1649 = vxor.u32 %v1647, 2147483648
    %v1650 = vmul.f32 %v1649, 1.442695
    %v1651 = vpow.pop %v1650
    %v1652 = vadd.f32 %v1651, 1.0
    %v1653 = vrcp.pop %v1652
    %v1654 = vmul.f32 1.0, %v1653
    %v1655 = vrot.slane %v1639, 2
    %v1657 = vtanh.pop %v1655
    %v1658 = vrot.slane %v1639, 3
    %v1660 = vxor.u32 %v1658, 2147483648
    %v1661 = vmul.f32 %v1660, 1.442695
    %v1662 = vpow.pop %v1661
    %v1663 = vadd.f32 %v1662, 1.0
    %v1664 = vrcp.pop %v1663
    %v1665 = vmul.f32 1.0, %v1664
    %v1666 = vmul.f32 %v1654, %v1329
    %v1667 = vmul.f32 %v1645, %v1657
    %v1668 = vadd.f32 %v1666, %v1667
    %v1669 = vtanh.pop %v1668
    %v1670 = vmul.f32 %v1665, %v1669
    %1671 = vst [vmem:[#allocation3 + $0x1] sm:$0x1] %v1670
    %s1672 = scalar_lea.vmem [#allocation2], 2
    %v1673 = vld [vmem:[%s1672] ss:$8 sm:$0xf]
    %v1674 = vpack.c.bf16 %v1670, %v1670
    %v1675 = vld [vmem:[#allocation16] sm:$0xff]
    %v1676 = vld [vmem:[#allocation16 + $0x8] sm:$0xff]
    %v1677 = vld [vmem:[#allocation16 + $0x10] sm:$0xff]
    %v1678 = vld [vmem:[#allocation16 + $0x18] sm:$0xff]
    %v1679 = vld [vmem:[#allocation16 + $0x20] sm:$0xff]
    %v1680 = vld [vmem:[#allocation16 + $0x28] sm:$0xff]
    %v1681 = vld [vmem:[#allocation16 + $0x30] sm:$0xff]
    %v1682 = vld [vmem:[#allocation16 + $0x38] sm:$0xff]
    %v1683 = vld [vmem:[#allocation16 + $0x40] sm:$0xff]
    %v1684 = vld [vmem:[#allocation16 + $0x48] sm:$0xff]
    %v1685 = vld [vmem:[#allocation16 + $0x50] sm:$0xff]
    %v1686 = vld [vmem:[#allocation16 + $0x58] sm:$0xff]
    %v1687 = vld [vmem:[#allocation16 + $0x60] sm:$0xff]
    %v1688 = vld [vmem:[#allocation16 + $0x68] sm:$0xff]
    %v1689 = vld [vmem:[#allocation16 + $0x70] sm:$0xff]
    %v1690 = vld [vmem:[#allocation16 + $0x78] sm:$0xff]
    %v1691 = vld [vmem:[#allocation16 + $0x80] sm:$0xff]
    %v1692 = vld [vmem:[#allocation16 + $0x88] sm:$0xff]
    %v1693 = vld [vmem:[#allocation16 + $0x90] sm:$0xff]
    %v1694 = vld [vmem:[#allocation16 + $0x98] sm:$0xff]
    %v1695 = vld [vmem:[#allocation16 + $0xa0] sm:$0xff]
    %v1696 = vld [vmem:[#allocation16 + $0xa8] sm:$0xff]
    %v1697 = vld [vmem:[#allocation16 + $0xb0] sm:$0xff]
    %v1698 = vld [vmem:[#allocation16 + $0xb8] sm:$0xff]
    %v1699 = vld [vmem:[#allocation16 + $0xc0] sm:$0xff]
    %v1700 = vld [vmem:[#allocation16 + $0xc8] sm:$0xff]
    %v1701 = vld [vmem:[#allocation16 + $0xd0] sm:$0xff]
    %v1702 = vld [vmem:[#allocation16 + $0xd8] sm:$0xff]
    %v1703 = vld [vmem:[#allocation16 + $0xe0] sm:$0xff]
    %v1704 = vld [vmem:[#allocation16 + $0xe8] sm:$0xff]
    %v1705 = vld [vmem:[#allocation16 + $0xf0] sm:$0xff]
    %v1706 = vld [vmem:[#allocation16 + $0xf8] sm:$0xff]
    %v1739 = vunpack.c.l.b16 %v1675
    %v1740 = vunpack.c.h.b16 %v1675
    %v1741 = vunpack.c.l.b16 %v1676
    %v1742 = vunpack.c.h.b16 %v1676
    %v1743 = vunpack.c.l.b16 %v1677
    %v1744 = vunpack.c.h.b16 %v1677
    %v1745 = vunpack.c.l.b16 %v1678
    %v1746 = vunpack.c.h.b16 %v1678
    %v1747 = vunpack.c.l.b16 %v1679
    %v1748 = vunpack.c.h.b16 %v1679
    %v1749 = vunpack.c.l.b16 %v1680
    %v1750 = vunpack.c.h.b16 %v1680
    %v1751 = vunpack.c.l.b16 %v1681
    %v1752 = vunpack.c.h.b16 %v1681
    %v1753 = vunpack.c.l.b16 %v1682
    %v1754 = vunpack.c.h.b16 %v1682
    %v1755 = vunpack.c.l.b16 %v1683
    %v1756 = vunpack.c.h.b16 %v1683
    %v1757 = vunpack.c.l.b16 %v1684
    %v1758 = vunpack.c.h.b16 %v1684
    %v1759 = vunpack.c.l.b16 %v1685
    %v1760 = vunpack.c.h.b16 %v1685
    %v1761 = vunpack.c.l.b16 %v1686
    %v1762 = vunpack.c.h.b16 %v1686
    %v1763 = vunpack.c.l.b16 %v1687
    %v1764 = vunpack.c.h.b16 %v1687
    %v1765 = vunpack.c.l.b16 %v1688
    %v1766 = vunpack.c.h.b16 %v1688
    %v1767 = vunpack.c.l.b16 %v1689
    %v1768 = vunpack.c.h.b16 %v1689
    %v1769 = vunpack.c.l.b16 %v1690
    %v1770 = vunpack.c.h.b16 %v1690
    %v1771 = vunpack.c.l.b16 %v1691
    %v1772 = vunpack.c.h.b16 %v1691
    %v1773 = vunpack.c.l.b16 %v1692
    %v1774 = vunpack.c.h.b16 %v1692
    %v1775 = vunpack.c.l.b16 %v1693
    %v1776 = vunpack.c.h.b16 %v1693
    %v1777 = vunpack.c.l.b16 %v1694
    %v1778 = vunpack.c.h.b16 %v1694
    %v1779 = vunpack.c.l.b16 %v1695
    %v1780 = vunpack.c.h.b16 %v1695
    %v1781 = vunpack.c.l.b16 %v1696
    %v1782 = vunpack.c.h.b16 %v1696
    %v1783 = vunpack.c.l.b16 %v1697
    %v1784 = vunpack.c.h.b16 %v1697
    %v1785 = vunpack.c.l.b16 %v1698
    %v1786 = vunpack.c.h.b16 %v1698
    %v1787 = vunpack.c.l.b16 %v1699
    %v1788 = vunpack.c.h.b16 %v1699
    %v1789 = vunpack.c.l.b16 %v1700
    %v1790 = vunpack.c.h.b16 %v1700
    %v1791 = vunpack.c.l.b16 %v1701
    %v1792 = vunpack.c.h.b16 %v1701
    %v1793 = vunpack.c.l.b16 %v1702
    %v1794 = vunpack.c.h.b16 %v1702
    %v1795 = vunpack.c.l.b16 %v1703
    %v1796 = vunpack.c.h.b16 %v1703
    %v1797 = vunpack.c.l.b16 %v1704
    %v1798 = vunpack.c.h.b16 %v1704
    %v1799 = vunpack.c.l.b16 %v1705
    %v1800 = vunpack.c.h.b16 %v1705
    %v1801 = vunpack.c.l.b16 %v1706
    %v1802 = vunpack.c.h.b16 %v1706
    %v1803 = vpack.c.b16 %v1743, %v1739
    %v1804 = vpack.c.b16 %v1744, %v1740
    %v1805 = vpack.c.b16 %v1745, %v1741
    %v1806 = vpack.c.b16 %v1746, %v1742
    %v1807 = vpack.c.b16 %v1751, %v1747
    %v1808 = vpack.c.b16 %v1752, %v1748
    %v1809 = vpack.c.b16 %v1753, %v1749
    %v1810 = vpack.c.b16 %v1754, %v1750
    %v1811 = vpack.c.b16 %v1759, %v1755
    %v1812 = vpack.c.b16 %v1760, %v1756
    %v1813 = vpack.c.b16 %v1761, %v1757
    %v1814 = vpack.c.b16 %v1762, %v1758
    %v1815 = vpack.c.b16 %v1767, %v1763
    %v1816 = vpack.c.b16 %v1768, %v1764
    %v1817 = vpack.c.b16 %v1769, %v1765
    %v1818 = vpack.c.b16 %v1770, %v1766
    %v1819 = vpack.c.b16 %v1775, %v1771
    %v1820 = vpack.c.b16 %v1776, %v1772
    %v1821 = vpack.c.b16 %v1777, %v1773
    %v1822 = vpack.c.b16 %v1778, %v1774
    %v1823 = vpack.c.b16 %v1783, %v1779
    %v1824 = vpack.c.b16 %v1784, %v1780
    %v1825 = vpack.c.b16 %v1785, %v1781
    %v1826 = vpack.c.b16 %v1786, %v1782
    %v1827 = vpack.c.b16 %v1791, %v1787
    %v1828 = vpack.c.b16 %v1792, %v1788
    %v1829 = vpack.c.b16 %v1793, %v1789
    %v1830 = vpack.c.b16 %v1794, %v1790
    %v1831 = vpack.c.b16 %v1799, %v1795
    %v1832 = vpack.c.b16 %v1800, %v1796
    %v1833 = vpack.c.b16 %v1801, %v1797
    %v1834 = vpack.c.b16 %v1802, %v1798
    %1867 = vmatprep.subr.bf16.mxu0 %v1832
    %1868 = vmatpush1.bf16.msra.mxu0 %v1831
    %1869 = vmatprep.subr.bf16.mxu0 %v1828
    %1870 = vmatpush1.bf16.msra.mxu0 %v1827
    %1871 = vmatprep.subr.bf16.mxu0 %v1824
    %1872 = vmatpush1.bf16.msra.mxu0 %v1823
    %1873 = vmatprep.subr.bf16.mxu0 %v1820
    %1874 = vmatpush1.bf16.msra.mxu0 %v1819
    %1875 = vmatprep.subr.bf16.mxu0 %v1816
    %1876 = vmatpush1.bf16.msra.mxu0 %v1815
    %1877 = vmatprep.subr.bf16.mxu0 %v1812
    %1878 = vmatpush1.bf16.msra.mxu0 %v1811
    %1879 = vmatprep.subr.bf16.mxu0 %v1808
    %1880 = vmatpush1.bf16.msra.mxu0 %v1807
    %1881 = vmatprep.subr.bf16.mxu0 %v1804
    %1882 = vmatpush1.bf16.msra.mxu0 %v1803
    %1883 = vmatprep.subr.bf16.mxu0 0
    %1884 = vmatpush2.bf16.msra.mxu0 0
    %1885 = vmatprep.subr.bf16.mxu0 0
    %1886 = vmatpush2.bf16.msra.mxu0 0
    %1887 = vmatprep.subr.bf16.mxu0 0
    %1888 = vmatpush2.bf16.msra.mxu0 0
    %1889 = vmatprep.subr.bf16.mxu0 0
    %1890 = vmatpush2.bf16.msra.mxu0 0
    %1891 = vmatprep.subr.bf16.mxu0 0
    %1892 = vmatpush2.bf16.msra.mxu0 0
    %1893 = vmatprep.subr.bf16.mxu0 0
    %1894 = vmatpush2.bf16.msra.mxu0 0
    %1895 = vmatprep.subr.bf16.mxu0 0
    %1896 = vmatpush2.bf16.msra.mxu0 0
    %1897 = vmatprep.subr.bf16.mxu0 0
    %1898 = vmatpush2.bf16.msra.mxu0 0
    %1899 = vmatprep.mubr.bf16.mxu0 0
    %1900 = vmatmul.mubr.bf16.gmra.mxu0 %v1674
    %v1901 = vpop.f32.mrf.mxu0
    %v1902 = vadd.f32 0.0, %v1901
    %v1903 = vpop.f32.mrf.mxu0
    %v1904 = vadd.f32 0.0, %v1903
    %v1905 = vpop.f32.mrf.mxu0
    %v1906 = vpop.f32.mrf.mxu0
    %1907 = vdwg.mxu0
    %1908 = vmatprep.subr.bf16.mxu0 %v1834
    %1909 = vmatpush1.bf16.msra.mxu0 %v1833
    %1910 = vmatprep.subr.bf16.mxu0 %v1830
    %1911 = vmatpush1.bf16.msra.mxu0 %v1829
    %1912 = vmatprep.subr.bf16.mxu0 %v1826
    %1913 = vmatpush1.bf16.msra.mxu0 %v1825
    %1914 = vmatprep.subr.bf16.mxu0 %v1822
    %1915 = vmatpush1.bf16.msra.mxu0 %v1821
    %1916 = vmatprep.subr.bf16.mxu0 %v1818
    %1917 = vmatpush1.bf16.msra.mxu0 %v1817
    %1918 = vmatprep.subr.bf16.mxu0 %v1814
    %1919 = vmatpush1.bf16.msra.mxu0 %v1813
    %1920 = vmatprep.subr.bf16.mxu0 %v1810
    %1921 = vmatpush1.bf16.msra.mxu0 %v1809
    %1922 = vmatprep.subr.bf16.mxu0 %v1806
    %1923 = vmatpush1.bf16.msra.mxu0 %v1805
    %1924 = vmatprep.subr.bf16.mxu0 0
    %1925 = vmatpush2.bf16.msra.mxu0 0
    %1926 = vmatprep.subr.bf16.mxu0 0
    %1927 = vmatpush2.bf16.msra.mxu0 0
    %1928 = vmatprep.subr.bf16.mxu0 0
    %1929 = vmatpush2.bf16.msra.mxu0 0
    %1930 = vmatprep.subr.bf16.mxu0 0
    %1931 = vmatpush2.bf16.msra.mxu0 0
    %1932 = vmatprep.subr.bf16.mxu0 0
    %1933 = vmatpush2.bf16.msra.mxu0 0
    %1934 = vmatprep.subr.bf16.mxu0 0
    %1935 = vmatpush2.bf16.msra.mxu0 0
    %1936 = vmatprep.subr.bf16.mxu0 0
    %1937 = vmatpush2.bf16.msra.mxu0 0
    %1938 = vmatprep.subr.bf16.mxu0 0
    %1939 = vmatpush2.bf16.msra.mxu0 0
    %1940 = vmatprep.mubr.bf16.mxu0 0
    %1941 = vmatmul.mubr.bf16.gmra.mxu0 %v1674
    %v1942 = vpop.f32.mrf.mxu0
    %v1943 = vadd.f32 0.0, %v1942
    %v1944 = vpop.f32.mrf.mxu0
    %v1945 = vadd.f32 0.0, %v1944
    %v1946 = vpop.f32.mrf.mxu0
    %v1947 = vpop.f32.mrf.mxu0
    %1948 = vdwg.mxu0
    %v1953 = vcombine.low %v1902, %v1904
    %v1954 = vcombine.low %v1943, %v1945
    %v1956 = vunpack.c.l.s4 1966171168
    %v1957 = vunpack.c.0.s8 %v1956
    %v1958 = vlaneseq
    %v1959 = vshrl.u32 %v1958, 7
    %v1960 = vsub.s32 %v1957, %v1959
    %v1961 = vrot.slane %v1953, %v1960
    %v1963 = vunpack.c.l.s4 1966171168
    %v1964 = vunpack.c.0.s8 %v1963
    %v1965 = vlaneseq
    %v1966 = vshrl.u32 %v1965, 7
    %v1967 = vsub.s32 %v1964, %v1966
    %v1968 = vrot.slane %v1954, %v1967
    %v1969 = vcombine.low %v1961, %v1968
    %v1971 = vunpack.c.l.s4 1966171168
    %v1972 = vunpack.c.0.s8 %v1971
    %v1973 = vlaneseq
    %v1974 = vshrl.u32 %v1973, 7
    %v1975 = vsub.s32 %v1972, %v1974
    %v1976 = vrot.slane %v1969, %v1975
    %v1978 = vadd.f32 %v1673, %v1976
    %v1979 = vxor.u32 %v1978, 2147483648
    %v1980 = vmul.f32 %v1979, 1.442695
    %v1981 = vpow.pop %v1980
    %v1982 = vadd.f32 %v1981, 1.0
    %v1983 = vrcp.pop %v1982
    %v1984 = vmul.f32 1.0, %v1983
    %v1986 = vrot.slane %v1978, 1
    %v1988 = vxor.u32 %v1986, 2147483648
    %v1989 = vmul.f32 %v1988, 1.442695
    %v1990 = vpow.pop %v1989
    %v1991 = vadd.f32 %v1990, 1.0
    %v1992 = vrcp.pop %v1991
    %v1993 = vmul.f32 1.0, %v1992
    %v1994 = vrot.slane %v1978, 2
    %v1996 = vtanh.pop %v1994
    %v1997 = vrot.slane %v1978, 3
    %v1999 = vxor.u32 %v1997, 2147483648
    %v2000 = vmul.f32 %v1999, 1.442695
    %v2001 = vpow.pop %v2000
    %v2002 = vadd.f32 %v2001, 1.0
    %v2003 = vrcp.pop %v2002
    %v2004 = vmul.f32 1.0, %v2003
    %v2005 = vmul.f32 %v1993, %v1668
    %v2006 = vmul.f32 %v1984, %v1996
    %v2007 = vadd.f32 %v2005, %v2006
    %v2008 = vtanh.pop %v2007
    %v2009 = vmul.f32 %v2004, %v2008
    %2010 = vst [vmem:[#allocation3 + $0x2] sm:$0x1] %v2009
    %s2011 = scalar_lea.vmem [#allocation2], 3
    %v2012 = vld [vmem:[%s2011] ss:$8 sm:$0xf]
    %v2013 = vpack.c.bf16 %v2009, %v2009
    %v2014 = vld [vmem:[#allocation16] sm:$0xff]
    %v2015 = vld [vmem:[#allocation16 + $0x8] sm:$0xff]
    %v2016 = vld [vmem:[#allocation16 + $0x10] sm:$0xff]
    %v2017 = vld [vmem:[#allocation16 + $0x18] sm:$0xff]
    %v2018 = vld [vmem:[#allocation16 + $0x20] sm:$0xff]
    %v2019 = vld [vmem:[#allocation16 + $0x28] sm:$0xff]
    %v2020 = vld [vmem:[#allocation16 + $0x30] sm:$0xff]
    %v2021 = vld [vmem:[#allocation16 + $0x38] sm:$0xff]
    %v2022 = vld [vmem:[#allocation16 + $0x40] sm:$0xff]
    %v2023 = vld [vmem:[#allocation16 + $0x48] sm:$0xff]
    %v2024 = vld [vmem:[#allocation16 + $0x50] sm:$0xff]
    %v2025 = vld [vmem:[#allocation16 + $0x58] sm:$0xff]
    %v2026 = vld [vmem:[#allocation16 + $0x60] sm:$0xff]
    %v2027 = vld [vmem:[#allocation16 + $0x68] sm:$0xff]
    %v2028 = vld [vmem:[#allocation16 + $0x70] sm:$0xff]
    %v2029 = vld [vmem:[#allocation16 + $0x78] sm:$0xff]
    %v2030 = vld [vmem:[#allocation16 + $0x80] sm:$0xff]
    %v2031 = vld [vmem:[#allocation16 + $0x88] sm:$0xff]
    %v2032 = vld [vmem:[#allocation16 + $0x90] sm:$0xff]
    %v2033 = vld [vmem:[#allocation16 + $0x98] sm:$0xff]
    %v2034 = vld [vmem:[#allocation16 + $0xa0] sm:$0xff]
    %v2035 = vld [vmem:[#allocation16 + $0xa8] sm:$0xff]
    %v2036 = vld [vmem:[#allocation16 + $0xb0] sm:$0xff]
    %v2037 = vld [vmem:[#allocation16 + $0xb8] sm:$0xff]
    %v2038 = vld [vmem:[#allocation16 + $0xc0] sm:$0xff]
    %v2039 = vld [vmem:[#allocation16 + $0xc8] sm:$0xff]
    %v2040 = vld [vmem:[#allocation16 + $0xd0] sm:$0xff]
    %v2041 = vld [vmem:[#allocation16 + $0xd8] sm:$0xff]
    %v2042 = vld [vmem:[#allocation16 + $0xe0] sm:$0xff]
    %v2043 = vld [vmem:[#allocation16 + $0xe8] sm:$0xff]
    %v2044 = vld [vmem:[#allocation16 + $0xf0] sm:$0xff]
    %v2045 = vld [vmem:[#allocation16 + $0xf8] sm:$0xff]
    %v2078 = vunpack.c.l.b16 %v2014
    %v2079 = vunpack.c.h.b16 %v2014
    %v2080 = vunpack.c.l.b16 %v2015
    %v2081 = vunpack.c.h.b16 %v2015
    %v2082 = vunpack.c.l.b16 %v2016
    %v2083 = vunpack.c.h.b16 %v2016
    %v2084 = vunpack.c.l.b16 %v2017
    %v2085 = vunpack.c.h.b16 %v2017
    %v2086 = vunpack.c.l.b16 %v2018
    %v2087 = vunpack.c.h.b16 %v2018
    %v2088 = vunpack.c.l.b16 %v2019
    %v2089 = vunpack.c.h.b16 %v2019
    %v2090 = vunpack.c.l.b16 %v2020
    %v2091 = vunpack.c.h.b16 %v2020
    %v2092 = vunpack.c.l.b16 %v2021
    %v2093 = vunpack.c.h.b16 %v2021
    %v2094 = vunpack.c.l.b16 %v2022
    %v2095 = vunpack.c.h.b16 %v2022
    %v2096 = vunpack.c.l.b16 %v2023
    %v2097 = vunpack.c.h.b16 %v2023
    %v2098 = vunpack.c.l.b16 %v2024
    %v2099 = vunpack.c.h.b16 %v2024
    %v2100 = vunpack.c.l.b16 %v2025
    %v2101 = vunpack.c.h.b16 %v2025
    %v2102 = vunpack.c.l.b16 %v2026
    %v2103 = vunpack.c.h.b16 %v2026
    %v2104 = vunpack.c.l.b16 %v2027
    %v2105 = vunpack.c.h.b16 %v2027
    %v2106 = vunpack.c.l.b16 %v2028
    %v2107 = vunpack.c.h.b16 %v2028
    %v2108 = vunpack.c.l.b16 %v2029
    %v2109 = vunpack.c.h.b16 %v2029
    %v2110 = vunpack.c.l.b16 %v2030
    %v2111 = vunpack.c.h.b16 %v2030
    %v2112 = vunpack.c.l.b16 %v2031
    %v2113 = vunpack.c.h.b16 %v2031
    %v2114 = vunpack.c.l.b16 %v2032
    %v2115 = vunpack.c.h.b16 %v2032
    %v2116 = vunpack.c.l.b16 %v2033
    %v2117 = vunpack.c.h.b16 %v2033
    %v2118 = vunpack.c.l.b16 %v2034
    %v2119 = vunpack.c.h.b16 %v2034
    %v2120 = vunpack.c.l.b16 %v2035
    %v2121 = vunpack.c.h.b16 %v2035
    %v2122 = vunpack.c.l.b16 %v2036
    %v2123 = vunpack.c.h.b16 %v2036
    %v2124 = vunpack.c.l.b16 %v2037
    %v2125 = vunpack.c.h.b16 %v2037
    %v2126 = vunpack.c.l.b16 %v2038
    %v2127 = vunpack.c.h.b16 %v2038
    %v2128 = vunpack.c.l.b16 %v2039
    %v2129 = vunpack.c.h.b16 %v2039
    %v2130 = vunpack.c.l.b16 %v2040
    %v2131 = vunpack.c.h.b16 %v2040
    %v2132 = vunpack.c.l.b16 %v2041
    %v2133 = vunpack.c.h.b16 %v2041
    %v2134 = vunpack.c.l.b16 %v2042
    %v2135 = vunpack.c.h.b16 %v2042
    %v2136 = vunpack.c.l.b16 %v2043
    %v2137 = vunpack.c.h.b16 %v2043
    %v2138 = vunpack.c.l.b16 %v2044
    %v2139 = vunpack.c.h.b16 %v2044
    %v2140 = vunpack.c.l.b16 %v2045
    %v2141 = vunpack.c.h.b16 %v2045
    %v2142 = vpack.c.b16 %v2082, %v2078
    %v2143 = vpack.c.b16 %v2083, %v2079
    %v2144 = vpack.c.b16 %v2084, %v2080
    %v2145 = vpack.c.b16 %v2085, %v2081
    %v2146 = vpack.c.b16 %v2090, %v2086
    %v2147 = vpack.c.b16 %v2091, %v2087
    %v2148 = vpack.c.b16 %v2092, %v2088
    %v2149 = vpack.c.b16 %v2093, %v2089
    %v2150 = vpack.c.b16 %v2098, %v2094
    %v2151 = vpack.c.b16 %v2099, %v2095
    %v2152 = vpack.c.b16 %v2100, %v2096
    %v2153 = vpack.c.b16 %v2101, %v2097
    %v2154 = vpack.c.b16 %v2106, %v2102
    %v2155 = vpack.c.b16 %v2107, %v2103
    %v2156 = vpack.c.b16 %v2108, %v2104
    %v2157 = vpack.c.b16 %v2109, %v2105
    %v2158 = vpack.c.b16 %v2114, %v2110
    %v2159 = vpack.c.b16 %v2115, %v2111
    %v2160 = vpack.c.b16 %v2116, %v2112
    %v2161 = vpack.c.b16 %v2117, %v2113
    %v2162 = vpack.c.b16 %v2122, %v2118
    %v2163 = vpack.c.b16 %v2123, %v2119
    %v2164 = vpack.c.b16 %v2124, %v2120
    %v2165 = vpack.c.b16 %v2125, %v2121
    %v2166 = vpack.c.b16 %v2130, %v2126
    %v2167 = vpack.c.b16 %v2131, %v2127
    %v2168 = vpack.c.b16 %v2132, %v2128
    %v2169 = vpack.c.b16 %v2133, %v2129
    %v2170 = vpack.c.b16 %v2138, %v2134
    %v2171 = vpack.c.b16 %v2139, %v2135
    %v2172 = vpack.c.b16 %v2140, %v2136
    %v2173 = vpack.c.b16 %v2141, %v2137
    %2206 = vmatprep.subr.bf16.mxu0 %v2171
    %2207 = vmatpush1.bf16.msra.mxu0 %v2170
    %2208 = vmatprep.subr.bf16.mxu0 %v2167
    %2209 = vmatpush1.bf16.msra.mxu0 %v2166
    %2210 = vmatprep.subr.bf16.mxu0 %v2163
    %2211 = vmatpush1.bf16.msra.mxu0 %v2162
    %2212 = vmatprep.subr.bf16.mxu0 %v2159
    %2213 = vmatpush1.bf16.msra.mxu0 %v2158
    %2214 = vmatprep.subr.bf16.mxu0 %v2155
    %2215 = vmatpush1.bf16.msra.mxu0 %v2154
    %2216 = vmatprep.subr.bf16.mxu0 %v2151
    %2217 = vmatpush1.bf16.msra.mxu0 %v2150
    %2218 = vmatprep.subr.bf16.mxu0 %v2147
    %2219 = vmatpush1.bf16.msra.mxu0 %v2146
    %2220 = vmatprep.subr.bf16.mxu0 %v2143
    %2221 = vmatpush1.bf16.msra.mxu0 %v2142
    %2222 = vmatprep.subr.bf16.mxu0 0
    %2223 = vmatpush2.bf16.msra.mxu0 0
    %2224 = vmatprep.subr.bf16.mxu0 0
    %2225 = vmatpush2.bf16.msra.mxu0 0
    %2226 = vmatprep.subr.bf16.mxu0 0
    %2227 = vmatpush2.bf16.msra.mxu0 0
    %2228 = vmatprep.subr.bf16.mxu0 0
    %2229 = vmatpush2.bf16.msra.mxu0 0
    %2230 = vmatprep.subr.bf16.mxu0 0
    %2231 = vmatpush2.bf16.msra.mxu0 0
    %2232 = vmatprep.subr.bf16.mxu0 0
    %2233 = vmatpush2.bf16.msra.mxu0 0
    %2234 = vmatprep.subr.bf16.mxu0 0
    %2235 = vmatpush2.bf16.msra.mxu0 0
    %2236 = vmatprep.subr.bf16.mxu0 0
    %2237 = vmatpush2.bf16.msra.mxu0 0
    %2238 = vmatprep.mubr.bf16.mxu0 0
    %2239 = vmatmul.mubr.bf16.gmra.mxu0 %v2013
    %v2240 = vpop.f32.mrf.mxu0
    %v2241 = vadd.f32 0.0, %v2240
    %v2242 = vpop.f32.mrf.mxu0
    %v2243 = vadd.f32 0.0, %v2242
    %v2244 = vpop.f32.mrf.mxu0
    %v2245 = vpop.f32.mrf.mxu0
    %2246 = vdwg.mxu0
    %2247 = vmatprep.subr.bf16.mxu0 %v2173
    %2248 = vmatpush1.bf16.msra.mxu0 %v2172
    %2249 = vmatprep.subr.bf16.mxu0 %v2169
    %2250 = vmatpush1.bf16.msra.mxu0 %v2168
    %2251 = vmatprep.subr.bf16.mxu0 %v2165
    %2252 = vmatpush1.bf16.msra.mxu0 %v2164
    %2253 = vmatprep.subr.bf16.mxu0 %v2161
    %2254 = vmatpush1.bf16.msra.mxu0 %v2160
    %2255 = vmatprep.subr.bf16.mxu0 %v2157
    %2256 = vmatpush1.bf16.msra.mxu0 %v2156
    %2257 = vmatprep.subr.bf16.mxu0 %v2153
    %2258 = vmatpush1.bf16.msra.mxu0 %v2152
    %2259 = vmatprep.subr.bf16.mxu0 %v2149
    %2260 = vmatpush1.bf16.msra.mxu0 %v2148
    %2261 = vmatprep.subr.bf16.mxu0 %v2145
    %2262 = vmatpush1.bf16.msra.mxu0 %v2144
    %2263 = vmatprep.subr.bf16.mxu0 0
    %2264 = vmatpush2.bf16.msra.mxu0 0
    %2265 = vmatprep.subr.bf16.mxu0 0
    %2266 = vmatpush2.bf16.msra.mxu0 0
    %2267 = vmatprep.subr.bf16.mxu0 0
    %2268 = vmatpush2.bf16.msra.mxu0 0
    %2269 = vmatprep.subr.bf16.mxu0 0
    %2270 = vmatpush2.bf16.msra.mxu0 0
    %2271 = vmatprep.subr.bf16.mxu0 0
    %2272 = vmatpush2.bf16.msra.mxu0 0
    %2273 = vmatprep.subr.bf16.mxu0 0
    %2274 = vmatpush2.bf16.msra.mxu0 0
    %2275 = vmatprep.subr.bf16.mxu0 0
    %2276 = vmatpush2.bf16.msra.mxu0 0
    %2277 = vmatprep.subr.bf16.mxu0 0
    %2278 = vmatpush2.bf16.msra.mxu0 0
    %2279 = vmatprep.mubr.bf16.mxu0 0
    %2280 = vmatmul.mubr.bf16.gmra.mxu0 %v2013
    %v2281 = vpop.f32.mrf.mxu0
    %v2282 = vadd.f32 0.0, %v2281
    %v2283 = vpop.f32.mrf.mxu0
    %v2284 = vadd.f32 0.0, %v2283
    %v2285 = vpop.f32.mrf.mxu0
    %v2286 = vpop.f32.mrf.mxu0
    %2287 = vdwg.mxu0
    %v2292 = vcombine.low %v2241, %v2243
    %v2293 = vcombine.low %v2282, %v2284
    %v2295 = vunpack.c.l.s4 1966171168
    %v2296 = vunpack.c.0.s8 %v2295
    %v2297 = vlaneseq
    %v2298 = vshrl.u32 %v2297, 7
    %v2299 = vsub.s32 %v2296, %v2298
    %v2300 = vrot.slane %v2292, %v2299
    %v2302 = vunpack.c.l.s4 1966171168
    %v2303 = vunpack.c.0.s8 %v2302
    %v2304 = vlaneseq
    %v2305 = vshrl.u32 %v2304, 7
    %v2306 = vsub.s32 %v2303, %v2305
    %v2307 = vrot.slane %v2293, %v2306
    %v2308 = vcombine.low %v2300, %v2307
    %v2310 = vunpack.c.l.s4 1966171168
    %v2311 = vunpack.c.0.s8 %v2310
    %v2312 = vlaneseq
    %v2313 = vshrl.u32 %v2312, 7
    %v2314 = vsub.s32 %v2311, %v2313
    %v2315 = vrot.slane %v2308, %v2314
    %v2317 = vadd.f32 %v2012, %v2315
    %v2318 = vxor.u32 %v2317, 2147483648
    %v2319 = vmul.f32 %v2318, 1.442695
    %v2320 = vpow.pop %v2319
    %v2321 = vadd.f32 %v2320, 1.0
    %v2322 = vrcp.pop %v2321
    %v2323 = vmul.f32 1.0, %v2322
    %v2325 = vrot.slane %v2317, 1
    %v2327 = vxor.u32 %v2325, 2147483648
    %v2328 = vmul.f32 %v2327, 1.442695
    %v2329 = vpow.pop %v2328
    %v2330 = vadd.f32 %v2329, 1.0
    %v2331 = vrcp.pop %v2330
    %v2332 = vmul.f32 1.0, %v2331
    %v2333 = vrot.slane %v2317, 2
    %v2335 = vtanh.pop %v2333
    %v2336 = vrot.slane %v2317, 3
    %v2338 = vxor.u32 %v2336, 2147483648
    %v2339 = vmul.f32 %v2338, 1.442695
    %v2340 = vpow.pop %v2339
    %v2341 = vadd.f32 %v2340, 1.0
    %v2342 = vrcp.pop %v2341
    %v2343 = vmul.f32 1.0, %v2342
    %v2344 = vmul.f32 %v2332, %v2007
    %v2345 = vmul.f32 %v2323, %v2335
    %v2346 = vadd.f32 %v2344, %v2345
    %v2347 = vtanh.pop %v2346
    %v2348 = vmul.f32 %v2343, %v2347
    %2349 = vst [vmem:[#allocation3 + $0x3] sm:$0x1] %v2348
    %s2350 = scalar_lea.vmem [#allocation2], 4
    %v2351 = vld [vmem:[%s2350] ss:$8 sm:$0xf]
    %v2352 = vpack.c.bf16 %v2348, %v2348
    %v2353 = vld [vmem:[#allocation16] sm:$0xff]
    %v2354 = vld [vmem:[#allocation16 + $0x8] sm:$0xff]
    %v2355 = vld [vmem:[#allocation16 + $0x10] sm:$0xff]
    %v2356 = vld [vmem:[#allocation16 + $0x18] sm:$0xff]
    %v2357 = vld [vmem:[#allocation16 + $0x20] sm:$0xff]
    %v2358 = vld [vmem:[#allocation16 + $0x28] sm:$0xff]
    %v2359 = vld [vmem:[#allocation16 + $0x30] sm:$0xff]
    %v2360 = vld [vmem:[#allocation16 + $0x38] sm:$0xff]
    %v2361 = vld [vmem:[#allocation16 + $0x40] sm:$0xff]
    %v2362 = vld [vmem:[#allocation16 + $0x48] sm:$0xff]
    %v2363 = vld [vmem:[#allocation16 + $0x50] sm:$0xff]
    %v2364 = vld [vmem:[#allocation16 + $0x58] sm:$0xff]
    %v2365 = vld [vmem:[#allocation16 + $0x60] sm:$0xff]
    %v2366 = vld [vmem:[#allocation16 + $0x68] sm:$0xff]
    %v2367 = vld [vmem:[#allocation16 + $0x70] sm:$0xff]
    %v2368 = vld [vmem:[#allocation16 + $0x78] sm:$0xff]
    %v2369 = vld [vmem:[#allocation16 + $0x80] sm:$0xff]
    %v2370 = vld [vmem:[#allocation16 + $0x88] sm:$0xff]
    %v2371 = vld [vmem:[#allocation16 + $0x90] sm:$0xff]
    %v2372 = vld [vmem:[#allocation16 + $0x98] sm:$0xff]
    %v2373 = vld [vmem:[#allocation16 + $0xa0] sm:$0xff]
    %v2374 = vld [vmem:[#allocation16 + $0xa8] sm:$0xff]
    %v2375 = vld [vmem:[#allocation16 + $0xb0] sm:$0xff]
    %v2376 = vld [vmem:[#allocation16 + $0xb8] sm:$0xff]
    %v2377 = vld [vmem:[#allocation16 + $0xc0] sm:$0xff]
    %v2378 = vld [vmem:[#allocation16 + $0xc8] sm:$0xff]
    %v2379 = vld [vmem:[#allocation16 + $0xd0] sm:$0xff]
    %v2380 = vld [vmem:[#allocation16 + $0xd8] sm:$0xff]
    %v2381 = vld [vmem:[#allocation16 + $0xe0] sm:$0xff]
    %v2382 = vld [vmem:[#allocation16 + $0xe8] sm:$0xff]
    %v2383 = vld [vmem:[#allocation16 + $0xf0] sm:$0xff]
    %v2384 = vld [vmem:[#allocation16 + $0xf8] sm:$0xff]
    %v2417 = vunpack.c.l.b16 %v2353
    %v2418 = vunpack.c.h.b16 %v2353
    %v2419 = vunpack.c.l.b16 %v2354
    %v2420 = vunpack.c.h.b16 %v2354
    %v2421 = vunpack.c.l.b16 %v2355
    %v2422 = vunpack.c.h.b16 %v2355
    %v2423 = vunpack.c.l.b16 %v2356
    %v2424 = vunpack.c.h.b16 %v2356
    %v2425 = vunpack.c.l.b16 %v2357
    %v2426 = vunpack.c.h.b16 %v2357
    %v2427 = vunpack.c.l.b16 %v2358
    %v2428 = vunpack.c.h.b16 %v2358
    %v2429 = vunpack.c.l.b16 %v2359
    %v2430 = vunpack.c.h.b16 %v2359
    %v2431 = vunpack.c.l.b16 %v2360
    %v2432 = vunpack.c.h.b16 %v2360
    %v2433 = vunpack.c.l.b16 %v2361
    %v2434 = vunpack.c.h.b16 %v2361
    %v2435 = vunpack.c.l.b16 %v2362
    %v2436 = vunpack.c.h.b16 %v2362
    %v2437 = vunpack.c.l.b16 %v2363
    %v2438 = vunpack.c.h.b16 %v2363
    %v2439 = vunpack.c.l.b16 %v2364
    %v2440 = vunpack.c.h.b16 %v2364
    %v2441 = vunpack.c.l.b16 %v2365
    %v2442 = vunpack.c.h.b16 %v2365
    %v2443 = vunpack.c.l.b16 %v2366
    %v2444 = vunpack.c.h.b16 %v2366
    %v2445 = vunpack.c.l.b16 %v2367
    %v2446 = vunpack.c.h.b16 %v2367
    %v2447 = vunpack.c.l.b16 %v2368
    %v2448 = vunpack.c.h.b16 %v2368
    %v2449 = vunpack.c.l.b16 %v2369
    %v2450 = vunpack.c.h.b16 %v2369
    %v2451 = vunpack.c.l.b16 %v2370
    %v2452 = vunpack.c.h.b16 %v2370
    %v2453 = vunpack.c.l.b16 %v2371
    %v2454 = vunpack.c.h.b16 %v2371
    %v2455 = vunpack.c.l.b16 %v2372
    %v2456 = vunpack.c.h.b16 %v2372
    %v2457 = vunpack.c.l.b16 %v2373
    %v2458 = vunpack.c.h.b16 %v2373
    %v2459 = vunpack.c.l.b16 %v2374
    %v2460 = vunpack.c.h.b16 %v2374
    %v2461 = vunpack.c.l.b16 %v2375
    %v2462 = vunpack.c.h.b16 %v2375
    %v2463 = vunpack.c.l.b16 %v2376
    %v2464 = vunpack.c.h.b16 %v2376
    %v2465 = vunpack.c.l.b16 %v2377
    %v2466 = vunpack.c.h.b16 %v2377
    %v2467 = vunpack.c.l.b16 %v2378
    %v2468 = vunpack.c.h.b16 %v2378
    %v2469 = vunpack.c.l.b16 %v2379
    %v2470 = vunpack.c.h.b16 %v2379
    %v2471 = vunpack.c.l.b16 %v2380
    %v2472 = vunpack.c.h.b16 %v2380
    %v2473 = vunpack.c.l.b16 %v2381
    %v2474 = vunpack.c.h.b16 %v2381
    %v2475 = vunpack.c.l.b16 %v2382
    %v2476 = vunpack.c.h.b16 %v2382
    %v2477 = vunpack.c.l.b16 %v2383
    %v2478 = vunpack.c.h.b16 %v2383
    %v2479 = vunpack.c.l.b16 %v2384
    %v2480 = vunpack.c.h.b16 %v2384
    %v2481 = vpack.c.b16 %v2421, %v2417
    %v2482 = vpack.c.b16 %v2422, %v2418
    %v2483 = vpack.c.b16 %v2423, %v2419
    %v2484 = vpack.c.b16 %v2424, %v2420
    %v2485 = vpack.c.b16 %v2429, %v2425
    %v2486 = vpack.c.b16 %v2430, %v2426
    %v2487 = vpack.c.b16 %v2431, %v2427
    %v2488 = vpack.c.b16 %v2432, %v2428
    %v2489 = vpack.c.b16 %v2437, %v2433
    %v2490 = vpack.c.b16 %v2438, %v2434
    %v2491 = vpack.c.b16 %v2439, %v2435
    %v2492 = vpack.c.b16 %v2440, %v2436
    %v2493 = vpack.c.b16 %v2445, %v2441
    %v2494 = vpack.c.b16 %v2446, %v2442
    %v2495 = vpack.c.b16 %v2447, %v2443
    %v2496 = vpack.c.b16 %v2448, %v2444
    %v2497 = vpack.c.b16 %v2453, %v2449
    %v2498 = vpack.c.b16 %v2454, %v2450
    %v2499 = vpack.c.b16 %v2455, %v2451
    %v2500 = vpack.c.b16 %v2456, %v2452
    %v2501 = vpack.c.b16 %v2461, %v2457
    %v2502 = vpack.c.b16 %v2462, %v2458
    %v2503 = vpack.c.b16 %v2463, %v2459
    %v2504 = vpack.c.b16 %v2464, %v2460
    %v2505 = vpack.c.b16 %v2469, %v2465
    %v2506 = vpack.c.b16 %v2470, %v2466
    %v2507 = vpack.c.b16 %v2471, %v2467
    %v2508 = vpack.c.b16 %v2472, %v2468
    %v2509 = vpack.c.b16 %v2477, %v2473
    %v2510 = vpack.c.b16 %v2478, %v2474
    %v2511 = vpack.c.b16 %v2479, %v2475
    %v2512 = vpack.c.b16 %v2480, %v2476
    %2545 = vmatprep.subr.bf16.mxu0 %v2510
    %2546 = vmatpush1.bf16.msra.mxu0 %v2509
    %2547 = vmatprep.subr.bf16.mxu0 %v2506
    %2548 = vmatpush1.bf16.msra.mxu0 %v2505
    %2549 = vmatprep.subr.bf16.mxu0 %v2502
    %2550 = vmatpush1.bf16.msra.mxu0 %v2501
    %2551 = vmatprep.subr.bf16.mxu0 %v2498
    %2552 = vmatpush1.bf16.msra.mxu0 %v2497
    %2553 = vmatprep.subr.bf16.mxu0 %v2494
    %2554 = vmatpush1.bf16.msra.mxu0 %v2493
    %2555 = vmatprep.subr.bf16.mxu0 %v2490
    %2556 = vmatpush1.bf16.msra.mxu0 %v2489
    %2557 = vmatprep.subr.bf16.mxu0 %v2486
    %2558 = vmatpush1.bf16.msra.mxu0 %v2485
    %2559 = vmatprep.subr.bf16.mxu0 %v2482
    %2560 = vmatpush1.bf16.msra.mxu0 %v2481
    %2561 = vmatprep.subr.bf16.mxu0 0
    %2562 = vmatpush2.bf16.msra.mxu0 0
    %2563 = vmatprep.subr.bf16.mxu0 0
    %2564 = vmatpush2.bf16.msra.mxu0 0
    %2565 = vmatprep.subr.bf16.mxu0 0
    %2566 = vmatpush2.bf16.msra.mxu0 0
    %2567 = vmatprep.subr.bf16.mxu0 0
    %2568 = vmatpush2.bf16.msra.mxu0 0
    %2569 = vmatprep.subr.bf16.mxu0 0
    %2570 = vmatpush2.bf16.msra.mxu0 0
    %2571 = vmatprep.subr.bf16.mxu0 0
    %2572 = vmatpush2.bf16.msra.mxu0 0
    %2573 = vmatprep.subr.bf16.mxu0 0
    %2574 = vmatpush2.bf16.msra.mxu0 0
    %2575 = vmatprep.subr.bf16.mxu0 0
    %2576 = vmatpush2.bf16.msra.mxu0 0
    %2577 = vmatprep.mubr.bf16.mxu0 0
    %2578 = vmatmul.mubr.bf16.gmra.mxu0 %v2352
    %v2579 = vpop.f32.mrf.mxu0
    %v2580 = vadd.f32 0.0, %v2579
    %v2581 = vpop.f32.mrf.mxu0
    %v2582 = vadd.f32 0.0, %v2581
    %v2583 = vpop.f32.mrf.mxu0
    %v2584 = vpop.f32.mrf.mxu0
    %2585 = vdwg.mxu0
    %2586 = vmatprep.subr.bf16.mxu0 %v2512
    %2587 = vmatpush1.bf16.msra.mxu0 %v2511
    %2588 = vmatprep.subr.bf16.mxu0 %v2508
    %2589 = vmatpush1.bf16.msra.mxu0 %v2507
    %2590 = vmatprep.subr.bf16.mxu0 %v2504
    %2591 = vmatpush1.bf16.msra.mxu0 %v2503
    %2592 = vmatprep.subr.bf16.mxu0 %v2500
    %2593 = vmatpush1.bf16.msra.mxu0 %v2499
    %2594 = vmatprep.subr.bf16.mxu0 %v2496
    %2595 = vmatpush1.bf16.msra.mxu0 %v2495
    %2596 = vmatprep.subr.bf16.mxu0 %v2492
    %2597 = vmatpush1.bf16.msra.mxu0 %v2491
    %2598 = vmatprep.subr.bf16.mxu0 %v2488
    %2599 = vmatpush1.bf16.msra.mxu0 %v2487
    %2600 = vmatprep.subr.bf16.mxu0 %v2484
    %2601 = vmatpush1.bf16.msra.mxu0 %v2483
    %2602 = vmatprep.subr.bf16.mxu0 0
    %2603 = vmatpush2.bf16.msra.mxu0 0
    %2604 = vmatprep.subr.bf16.mxu0 0
    %2605 = vmatpush2.bf16.msra.mxu0 0
    %2606 = vmatprep.subr.bf16.mxu0 0
    %2607 = vmatpush2.bf16.msra.mxu0 0
    %2608 = vmatprep.subr.bf16.mxu0 0
    %2609 = vmatpush2.bf16.msra.mxu0 0
    %2610 = vmatprep.subr.bf16.mxu0 0
    %2611 = vmatpush2.bf16.msra.mxu0 0
    %2612 = vmatprep.subr.bf16.mxu0 0
    %2613 = vmatpush2.bf16.msra.mxu0 0
    %2614 = vmatprep.subr.bf16.mxu0 0
    %2615 = vmatpush2.bf16.msra.mxu0 0
    %2616 = vmatprep.subr.bf16.mxu0 0
    %2617 = vmatpush2.bf16.msra.mxu0 0
    %2618 = vmatprep.mubr.bf16.mxu0 0
    %2619 = vmatmul.mubr.bf16.gmra.mxu0 %v2352
    %v2620 = vpop.f32.mrf.mxu0
    %v2621 = vadd.f32 0.0, %v2620
    %v2622 = vpop.f32.mrf.mxu0
    %v2623 = vadd.f32 0.0, %v2622
    %v2624 = vpop.f32.mrf.mxu0
    %v2625 = vpop.f32.mrf.mxu0
    %2626 = vdwg.mxu0
    %v2631 = vcombine.low %v2580, %v2582
    %v2632 = vcombine.low %v2621, %v2623
    %v2634 = vunpack.c.l.s4 1966171168
    %v2635 = vunpack.c.0.s8 %v2634
    %v2636 = vlaneseq
    %v2637 = vshrl.u32 %v2636, 7
    %v2638 = vsub.s32 %v2635, %v2637
    %v2639 = vrot.slane %v2631, %v2638
    %v2641 = vunpack.c.l.s4 1966171168
    %v2642 = vunpack.c.0.s8 %v2641
    %v2643 = vlaneseq
    %v2644 = vshrl.u32 %v2643, 7
    %v2645 = vsub.s32 %v2642, %v2644
    %v2646 = vrot.slane %v2632, %v2645
    %v2647 = vcombine.low %v2639, %v2646
    %v2649 = vunpack.c.l.s4 1966171168
    %v2650 = vunpack.c.0.s8 %v2649
    %v2651 = vlaneseq
    %v2652 = vshrl.u32 %v2651, 7
    %v2653 = vsub.s32 %v2650, %v2652
    %v2654 = vrot.slane %v2647, %v2653
    %v2656 = vadd.f32 %v2351, %v2654
    %v2657 = vxor.u32 %v2656, 2147483648
    %v2658 = vmul.f32 %v2657, 1.442695
    %v2659 = vpow.pop %v2658
    %v2660 = vadd.f32 %v2659, 1.0
    %v2661 = vrcp.pop %v2660
    %v2662 = vmul.f32 1.0, %v2661
    %v2664 = vrot.slane %v2656, 1
    %v2666 = vxor.u32 %v2664, 2147483648
    %v2667 = vmul.f32 %v2666, 1.442695
    %v2668 = vpow.pop %v2667
    %v2669 = vadd.f32 %v2668, 1.0
    %v2670 = vrcp.pop %v2669
    %v2671 = vmul.f32 1.0, %v2670
    %v2672 = vrot.slane %v2656, 2
    %v2674 = vtanh.pop %v2672
    %v2675 = vrot.slane %v2656, 3
    %v2677 = vxor.u32 %v2675, 2147483648
    %v2678 = vmul.f32 %v2677, 1.442695
    %v2679 = vpow.pop %v2678
    %v2680 = vadd.f32 %v2679, 1.0
    %v2681 = vrcp.pop %v2680
    %v2682 = vmul.f32 1.0, %v2681
    %v2683 = vmul.f32 %v2671, %v2346
    %v2684 = vmul.f32 %v2662, %v2674
    %v2685 = vadd.f32 %v2683, %v2684
    %v2686 = vtanh.pop %v2685
    %v2687 = vmul.f32 %v2682, %v2686
    %2688 = vst [vmem:[#allocation3 + $0x4] sm:$0x1] %v2687
    %s2689 = scalar_lea.vmem [#allocation2], 5
    %v2690 = vld [vmem:[%s2689] ss:$8 sm:$0xf]
    %v2691 = vpack.c.bf16 %v2687, %v2687
    %v2692 = vld [vmem:[#allocation16] sm:$0xff]
    %v2693 = vld [vmem:[#allocation16 + $0x8] sm:$0xff]
    %v2694 = vld [vmem:[#allocation16 + $0x10] sm:$0xff]
    %v2695 = vld [vmem:[#allocation16 + $0x18] sm:$0xff]
    %v2696 = vld [vmem:[#allocation16 + $0x20] sm:$0xff]
    %v2697 = vld [vmem:[#allocation16 + $0x28] sm:$0xff]
    %v2698 = vld [vmem:[#allocation16 + $0x30] sm:$0xff]
    %v2699 = vld [vmem:[#allocation16 + $0x38] sm:$0xff]
    %v2700 = vld [vmem:[#allocation16 + $0x40] sm:$0xff]
    %v2701 = vld [vmem:[#allocation16 + $0x48] sm:$0xff]
    %v2702 = vld [vmem:[#allocation16 + $0x50] sm:$0xff]
    %v2703 = vld [vmem:[#allocation16 + $0x58] sm:$0xff]
    %v2704 = vld [vmem:[#allocation16 + $0x60] sm:$0xff]
    %v2705 = vld [vmem:[#allocation16 + $0x68] sm:$0xff]
    %v2706 = vld [vmem:[#allocation16 + $0x70] sm:$0xff]
    %v2707 = vld [vmem:[#allocation16 + $0x78] sm:$0xff]
    %v2708 = vld [vmem:[#allocation16 + $0x80] sm:$0xff]
    %v2709 = vld [vmem:[#allocation16 + $0x88] sm:$0xff]
    %v2710 = vld [vmem:[#allocation16 + $0x90] sm:$0xff]
    %v2711 = vld [vmem:[#allocation16 + $0x98] sm:$0xff]
    %v2712 = vld [vmem:[#allocation16 + $0xa0] sm:$0xff]
    %v2713 = vld [vmem:[#allocation16 + $0xa8] sm:$0xff]
    %v2714 = vld [vmem:[#allocation16 + $0xb0] sm:$0xff]
    %v2715 = vld [vmem:[#allocation16 + $0xb8] sm:$0xff]
    %v2716 = vld [vmem:[#allocation16 + $0xc0] sm:$0xff]
    %v2717 = vld [vmem:[#allocation16 + $0xc8] sm:$0xff]
    %v2718 = vld [vmem:[#allocation16 + $0xd0] sm:$0xff]
    %v2719 = vld [vmem:[#allocation16 + $0xd8] sm:$0xff]
    %v2720 = vld [vmem:[#allocation16 + $0xe0] sm:$0xff]
    %v2721 = vld [vmem:[#allocation16 + $0xe8] sm:$0xff]
    %v2722 = vld [vmem:[#allocation16 + $0xf0] sm:$0xff]
    %v2723 = vld [vmem:[#allocation16 + $0xf8] sm:$0xff]
    %v2756 = vunpack.c.l.b16 %v2692
    %v2757 = vunpack.c.h.b16 %v2692
    %v2758 = vunpack.c.l.b16 %v2693
    %v2759 = vunpack.c.h.b16 %v2693
    %v2760 = vunpack.c.l.b16 %v2694
    %v2761 = vunpack.c.h.b16 %v2694
    %v2762 = vunpack.c.l.b16 %v2695
    %v2763 = vunpack.c.h.b16 %v2695
    %v2764 = vunpack.c.l.b16 %v2696
    %v2765 = vunpack.c.h.b16 %v2696
    %v2766 = vunpack.c.l.b16 %v2697
    %v2767 = vunpack.c.h.b16 %v2697
    %v2768 = vunpack.c.l.b16 %v2698
    %v2769 = vunpack.c.h.b16 %v2698
    %v2770 = vunpack.c.l.b16 %v2699
    %v2771 = vunpack.c.h.b16 %v2699
    %v2772 = vunpack.c.l.b16 %v2700
    %v2773 = vunpack.c.h.b16 %v2700
    %v2774 = vunpack.c.l.b16 %v2701
    %v2775 = vunpack.c.h.b16 %v2701
    %v2776 = vunpack.c.l.b16 %v2702
    %v2777 = vunpack.c.h.b16 %v2702
    %v2778 = vunpack.c.l.b16 %v2703
    %v2779 = vunpack.c.h.b16 %v2703
    %v2780 = vunpack.c.l.b16 %v2704
    %v2781 = vunpack.c.h.b16 %v2704
    %v2782 = vunpack.c.l.b16 %v2705
    %v2783 = vunpack.c.h.b16 %v2705
    %v2784 = vunpack.c.l.b16 %v2706
    %v2785 = vunpack.c.h.b16 %v2706
    %v2786 = vunpack.c.l.b16 %v2707
    %v2787 = vunpack.c.h.b16 %v2707
    %v2788 = vunpack.c.l.b16 %v2708
    %v2789 = vunpack.c.h.b16 %v2708
    %v2790 = vunpack.c.l.b16 %v2709
    %v2791 = vunpack.c.h.b16 %v2709
    %v2792 = vunpack.c.l.b16 %v2710
    %v2793 = vunpack.c.h.b16 %v2710
    %v2794 = vunpack.c.l.b16 %v2711
    %v2795 = vunpack.c.h.b16 %v2711
    %v2796 = vunpack.c.l.b16 %v2712
    %v2797 = vunpack.c.h.b16 %v2712
    %v2798 = vunpack.c.l.b16 %v2713
    %v2799 = vunpack.c.h.b16 %v2713
    %v2800 = vunpack.c.l.b16 %v2714
    %v2801 = vunpack.c.h.b16 %v2714
    %v2802 = vunpack.c.l.b16 %v2715
    %v2803 = vunpack.c.h.b16 %v2715
    %v2804 = vunpack.c.l.b16 %v2716
    %v2805 = vunpack.c.h.b16 %v2716
    %v2806 = vunpack.c.l.b16 %v2717
    %v2807 = vunpack.c.h.b16 %v2717
    %v2808 = vunpack.c.l.b16 %v2718
    %v2809 = vunpack.c.h.b16 %v2718
    %v2810 = vunpack.c.l.b16 %v2719
    %v2811 = vunpack.c.h.b16 %v2719
    %v2812 = vunpack.c.l.b16 %v2720
    %v2813 = vunpack.c.h.b16 %v2720
    %v2814 = vunpack.c.l.b16 %v2721
    %v2815 = vunpack.c.h.b16 %v2721
    %v2816 = vunpack.c.l.b16 %v2722
    %v2817 = vunpack.c.h.b16 %v2722
    %v2818 = vunpack.c.l.b16 %v2723
    %v2819 = vunpack.c.h.b16 %v2723
    %v2820 = vpack.c.b16 %v2760, %v2756
    %v2821 = vpack.c.b16 %v2761, %v2757
    %v2822 = vpack.c.b16 %v2762, %v2758
    %v2823 = vpack.c.b16 %v2763, %v2759
    %v2824 = vpack.c.b16 %v2768, %v2764
    %v2825 = vpack.c.b16 %v2769, %v2765
    %v2826 = vpack.c.b16 %v2770, %v2766
    %v2827 = vpack.c.b16 %v2771, %v2767
    %v2828 = vpack.c.b16 %v2776, %v2772
    %v2829 = vpack.c.b16 %v2777, %v2773
    %v2830 = vpack.c.b16 %v2778, %v2774
    %v2831 = vpack.c.b16 %v2779, %v2775
    %v2832 = vpack.c.b16 %v2784, %v2780
    %v2833 = vpack.c.b16 %v2785, %v2781
    %v2834 = vpack.c.b16 %v2786, %v2782
    %v2835 = vpack.c.b16 %v2787, %v2783
    %v2836 = vpack.c.b16 %v2792, %v2788
    %v2837 = vpack.c.b16 %v2793, %v2789
    %v2838 = vpack.c.b16 %v2794, %v2790
    %v2839 = vpack.c.b16 %v2795, %v2791
    %v2840 = vpack.c.b16 %v2800, %v2796
    %v2841 = vpack.c.b16 %v2801, %v2797
    %v2842 = vpack.c.b16 %v2802, %v2798
    %v2843 = vpack.c.b16 %v2803, %v2799
    %v2844 = vpack.c.b16 %v2808, %v2804
    %v2845 = vpack.c.b16 %v2809, %v2805
    %v2846 = vpack.c.b16 %v2810, %v2806
    %v2847 = vpack.c.b16 %v2811, %v2807
    %v2848 = vpack.c.b16 %v2816, %v2812
    %v2849 = vpack.c.b16 %v2817, %v2813
    %v2850 = vpack.c.b16 %v2818, %v2814
    %v2851 = vpack.c.b16 %v2819, %v2815
    %2884 = vmatprep.subr.bf16.mxu0 %v2849
    %2885 = vmatpush1.bf16.msra.mxu0 %v2848
    %2886 = vmatprep.subr.bf16.mxu0 %v2845
    %2887 = vmatpush1.bf16.msra.mxu0 %v2844
    %2888 = vmatprep.subr.bf16.mxu0 %v2841
    %2889 = vmatpush1.bf16.msra.mxu0 %v2840
    %2890 = vmatprep.subr.bf16.mxu0 %v2837
    %2891 = vmatpush1.bf16.msra.mxu0 %v2836
    %2892 = vmatprep.subr.bf16.mxu0 %v2833
    %2893 = vmatpush1.bf16.msra.mxu0 %v2832
    %2894 = vmatprep.subr.bf16.mxu0 %v2829
    %2895 = vmatpush1.bf16.msra.mxu0 %v2828
    %2896 = vmatprep.subr.bf16.mxu0 %v2825
    %2897 = vmatpush1.bf16.msra.mxu0 %v2824
    %2898 = vmatprep.subr.bf16.mxu0 %v2821
    %2899 = vmatpush1.bf16.msra.mxu0 %v2820
    %2900 = vmatprep.subr.bf16.mxu0 0
    %2901 = vmatpush2.bf16.msra.mxu0 0
    %2902 = vmatprep.subr.bf16.mxu0 0
    %2903 = vmatpush2.bf16.msra.mxu0 0
    %2904 = vmatprep.subr.bf16.mxu0 0
    %2905 = vmatpush2.bf16.msra.mxu0 0
    %2906 = vmatprep.subr.bf16.mxu0 0
    %2907 = vmatpush2.bf16.msra.mxu0 0
    %2908 = vmatprep.subr.bf16.mxu0 0
    %2909 = vmatpush2.bf16.msra.mxu0 0
    %2910 = vmatprep.subr.bf16.mxu0 0
    %2911 = vmatpush2.bf16.msra.mxu0 0
    %2912 = vmatprep.subr.bf16.mxu0 0
    %2913 = vmatpush2.bf16.msra.mxu0 0
    %2914 = vmatprep.subr.bf16.mxu0 0
    %2915 = vmatpush2.bf16.msra.mxu0 0
    %2916 = vmatprep.mubr.bf16.mxu0 0
    %2917 = vmatmul.mubr.bf16.gmra.mxu0 %v2691
    %v2918 = vpop.f32.mrf.mxu0
    %v2919 = vadd.f32 0.0, %v2918
    %v2920 = vpop.f32.mrf.mxu0
    %v2921 = vadd.f32 0.0, %v2920
    %v2922 = vpop.f32.mrf.mxu0
    %v2923 = vpop.f32.mrf.mxu0
    %2924 = vdwg.mxu0
    %2925 = vmatprep.subr.bf16.mxu0 %v2851
    %2926 = vmatpush1.bf16.msra.mxu0 %v2850
    %2927 = vmatprep.subr.bf16.mxu0 %v2847
    %2928 = vmatpush1.bf16.msra.mxu0 %v2846
    %2929 = vmatprep.subr.bf16.mxu0 %v2843
    %2930 = vmatpush1.bf16.msra.mxu0 %v2842
    %2931 = vmatprep.subr.bf16.mxu0 %v2839
    %2932 = vmatpush1.bf16.msra.mxu0 %v2838
    %2933 = vmatprep.subr.bf16.mxu0 %v2835
    %2934 = vmatpush1.bf16.msra.mxu0 %v2834
    %2935 = vmatprep.subr.bf16.mxu0 %v2831
    %2936 = vmatpush1.bf16.msra.mxu0 %v2830
    %2937 = vmatprep.subr.bf16.mxu0 %v2827
    %2938 = vmatpush1.bf16.msra.mxu0 %v2826
    %2939 = vmatprep.subr.bf16.mxu0 %v2823
    %2940 = vmatpush1.bf16.msra.mxu0 %v2822
    %2941 = vmatprep.subr.bf16.mxu0 0
    %2942 = vmatpush2.bf16.msra.mxu0 0
    %2943 = vmatprep.subr.bf16.mxu0 0
    %2944 = vmatpush2.bf16.msra.mxu0 0
    %2945 = vmatprep.subr.bf16.mxu0 0
    %2946 = vmatpush2.bf16.msra.mxu0 0
    %2947 = vmatprep.subr.bf16.mxu0 0
    %2948 = vmatpush2.bf16.msra.mxu0 0
    %2949 = vmatprep.subr.bf16.mxu0 0
    %2950 = vmatpush2.bf16.msra.mxu0 0
    %2951 = vmatprep.subr.bf16.mxu0 0
    %2952 = vmatpush2.bf16.msra.mxu0 0
    %2953 = vmatprep.subr.bf16.mxu0 0
    %2954 = vmatpush2.bf16.msra.mxu0 0
    %2955 = vmatprep.subr.bf16.mxu0 0
    %2956 = vmatpush2.bf16.msra.mxu0 0
    %2957 = vmatprep.mubr.bf16.mxu0 0
    %2958 = vmatmul.mubr.bf16.gmra.mxu0 %v2691
    %v2959 = vpop.f32.mrf.mxu0
    %v2960 = vadd.f32 0.0, %v2959
    %v2961 = vpop.f32.mrf.mxu0
    %v2962 = vadd.f32 0.0, %v2961
    %v2963 = vpop.f32.mrf.mxu0
    %v2964 = vpop.f32.mrf.mxu0
    %2965 = vdwg.mxu0
    %v2970 = vcombine.low %v2919, %v2921
    %v2971 = vcombine.low %v2960, %v2962
    %v2973 = vunpack.c.l.s4 1966171168
    %v2974 = vunpack.c.0.s8 %v2973
    %v2975 = vlaneseq
    %v2976 = vshrl.u32 %v2975, 7
    %v2977 = vsub.s32 %v2974, %v2976
    %v2978 = vrot.slane %v2970, %v2977
    %v2980 = vunpack.c.l.s4 1966171168
    %v2981 = vunpack.c.0.s8 %v2980
    %v2982 = vlaneseq
    %v2983 = vshrl.u32 %v2982, 7
    %v2984 = vsub.s32 %v2981, %v2983
    %v2985 = vrot.slane %v2971, %v2984
    %v2986 = vcombine.low %v2978, %v2985
    %v2988 = vunpack.c.l.s4 1966171168
    %v2989 = vunpack.c.0.s8 %v2988
    %v2990 = vlaneseq
    %v2991 = vshrl.u32 %v2990, 7
    %v2992 = vsub.s32 %v2989, %v2991
    %v2993 = vrot.slane %v2986, %v2992
    %v2995 = vadd.f32 %v2690, %v2993
    %v2996 = vxor.u32 %v2995, 2147483648
    %v2997 = vmul.f32 %v2996, 1.442695
    %v2998 = vpow.pop %v2997
    %v2999 = vadd.f32 %v2998, 1.0
    %v3000 = vrcp.pop %v2999
    %v3001 = vmul.f32 1.0, %v3000
    %v3003 = vrot.slane %v2995, 1
    %v3005 = vxor.u32 %v3003, 2147483648
    %v3006 = vmul.f32 %v3005, 1.442695
    %v3007 = vpow.pop %v3006
    %v3008 = vadd.f32 %v3007, 1.0
    %v3009 = vrcp.pop %v3008
    %v3010 = vmul.f32 1.0, %v3009
    %v3011 = vrot.slane %v2995, 2
    %v3013 = vtanh.pop %v3011
    %v3014 = vrot.slane %v2995, 3
    %v3016 = vxor.u32 %v3014, 2147483648
    %v3017 = vmul.f32 %v3016, 1.442695
    %v3018 = vpow.pop %v3017
    %v3019 = vadd.f32 %v3018, 1.0
    %v3020 = vrcp.pop %v3019
    %v3021 = vmul.f32 1.0, %v3020
    %v3022 = vmul.f32 %v3010, %v2685
    %v3023 = vmul.f32 %v3001, %v3013
    %v3024 = vadd.f32 %v3022, %v3023
    %v3025 = vtanh.pop %v3024
    %v3026 = vmul.f32 %v3021, %v3025
    %3027 = vst [vmem:[#allocation3 + $0x5] sm:$0x1] %v3026
    %s3028 = scalar_lea.vmem [#allocation2], 6
    %v3029 = vld [vmem:[%s3028] ss:$8 sm:$0xf]
    %v3030 = vpack.c.bf16 %v3026, %v3026
    %v3031 = vld [vmem:[#allocation16] sm:$0xff]
    %v3032 = vld [vmem:[#allocation16 + $0x8] sm:$0xff]
    %v3033 = vld [vmem:[#allocation16 + $0x10] sm:$0xff]
    %v3034 = vld [vmem:[#allocation16 + $0x18] sm:$0xff]
    %v3035 = vld [vmem:[#allocation16 + $0x20] sm:$0xff]
    %v3036 = vld [vmem:[#allocation16 + $0x28] sm:$0xff]
    %v3037 = vld [vmem:[#allocation16 + $0x30] sm:$0xff]
    %v3038 = vld [vmem:[#allocation16 + $0x38] sm:$0xff]
    %v3039 = vld [vmem:[#allocation16 + $0x40] sm:$0xff]
    %v3040 = vld [vmem:[#allocation16 + $0x48] sm:$0xff]
    %v3041 = vld [vmem:[#allocation16 + $0x50] sm:$0xff]
    %v3042 = vld [vmem:[#allocation16 + $0x58] sm:$0xff]
    %v3043 = vld [vmem:[#allocation16 + $0x60] sm:$0xff]
    %v3044 = vld [vmem:[#allocation16 + $0x68] sm:$0xff]
    %v3045 = vld [vmem:[#allocation16 + $0x70] sm:$0xff]
    %v3046 = vld [vmem:[#allocation16 + $0x78] sm:$0xff]
    %v3047 = vld [vmem:[#allocation16 + $0x80] sm:$0xff]
    %v3048 = vld [vmem:[#allocation16 + $0x88] sm:$0xff]
    %v3049 = vld [vmem:[#allocation16 + $0x90] sm:$0xff]
    %v3050 = vld [vmem:[#allocation16 + $0x98] sm:$0xff]
    %v3051 = vld [vmem:[#allocation16 + $0xa0] sm:$0xff]
    %v3052 = vld [vmem:[#allocation16 + $0xa8] sm:$0xff]
    %v3053 = vld [vmem:[#allocation16 + $0xb0] sm:$0xff]
    %v3054 = vld [vmem:[#allocation16 + $0xb8] sm:$0xff]
    %v3055 = vld [vmem:[#allocation16 + $0xc0] sm:$0xff]
    %v3056 = vld [vmem:[#allocation16 + $0xc8] sm:$0xff]
    %v3057 = vld [vmem:[#allocation16 + $0xd0] sm:$0xff]
    %v3058 = vld [vmem:[#allocation16 + $0xd8] sm:$0xff]
    %v3059 = vld [vmem:[#allocation16 + $0xe0] sm:$0xff]
    %v3060 = vld [vmem:[#allocation16 + $0xe8] sm:$0xff]
    %v3061 = vld [vmem:[#allocation16 + $0xf0] sm:$0xff]
    %v3062 = vld [vmem:[#allocation16 + $0xf8] sm:$0xff]
    %v3095 = vunpack.c.l.b16 %v3031
    %v3096 = vunpack.c.h.b16 %v3031
    %v3097 = vunpack.c.l.b16 %v3032
    %v3098 = vunpack.c.h.b16 %v3032
    %v3099 = vunpack.c.l.b16 %v3033
    %v3100 = vunpack.c.h.b16 %v3033
    %v3101 = vunpack.c.l.b16 %v3034
    %v3102 = vunpack.c.h.b16 %v3034
    %v3103 = vunpack.c.l.b16 %v3035
    %v3104 = vunpack.c.h.b16 %v3035
    %v3105 = vunpack.c.l.b16 %v3036
    %v3106 = vunpack.c.h.b16 %v3036
    %v3107 = vunpack.c.l.b16 %v3037
    %v3108 = vunpack.c.h.b16 %v3037
    %v3109 = vunpack.c.l.b16 %v3038
    %v3110 = vunpack.c.h.b16 %v3038
    %v3111 = vunpack.c.l.b16 %v3039
    %v3112 = vunpack.c.h.b16 %v3039
    %v3113 = vunpack.c.l.b16 %v3040
    %v3114 = vunpack.c.h.b16 %v3040
    %v3115 = vunpack.c.l.b16 %v3041
    %v3116 = vunpack.c.h.b16 %v3041
    %v3117 = vunpack.c.l.b16 %v3042
    %v3118 = vunpack.c.h.b16 %v3042
    %v3119 = vunpack.c.l.b16 %v3043
    %v3120 = vunpack.c.h.b16 %v3043
    %v3121 = vunpack.c.l.b16 %v3044
    %v3122 = vunpack.c.h.b16 %v3044
    %v3123 = vunpack.c.l.b16 %v3045
    %v3124 = vunpack.c.h.b16 %v3045
    %v3125 = vunpack.c.l.b16 %v3046
    %v3126 = vunpack.c.h.b16 %v3046
    %v3127 = vunpack.c.l.b16 %v3047
    %v3128 = vunpack.c.h.b16 %v3047
    %v3129 = vunpack.c.l.b16 %v3048
    %v3130 = vunpack.c.h.b16 %v3048
    %v3131 = vunpack.c.l.b16 %v3049
    %v3132 = vunpack.c.h.b16 %v3049
    %v3133 = vunpack.c.l.b16 %v3050
    %v3134 = vunpack.c.h.b16 %v3050
    %v3135 = vunpack.c.l.b16 %v3051
    %v3136 = vunpack.c.h.b16 %v3051
    %v3137 = vunpack.c.l.b16 %v3052
    %v3138 = vunpack.c.h.b16 %v3052
    %v3139 = vunpack.c.l.b16 %v3053
    %v3140 = vunpack.c.h.b16 %v3053
    %v3141 = vunpack.c.l.b16 %v3054
    %v3142 = vunpack.c.h.b16 %v3054
    %v3143 = vunpack.c.l.b16 %v3055
    %v3144 = vunpack.c.h.b16 %v3055
    %v3145 = vunpack.c.l.b16 %v3056
    %v3146 = vunpack.c.h.b16 %v3056
    %v3147 = vunpack.c.l.b16 %v3057
    %v3148 = vunpack.c.h.b16 %v3057
    %v3149 = vunpack.c.l.b16 %v3058
    %v3150 = vunpack.c.h.b16 %v3058
    %v3151 = vunpack.c.l.b16 %v3059
    %v3152 = vunpack.c.h.b16 %v3059
    %v3153 = vunpack.c.l.b16 %v3060
    %v3154 = vunpack.c.h.b16 %v3060
    %v3155 = vunpack.c.l.b16 %v3061
    %v3156 = vunpack.c.h.b16 %v3061
    %v3157 = vunpack.c.l.b16 %v3062
    %v3158 = vunpack.c.h.b16 %v3062
    %v3159 = vpack.c.b16 %v3099, %v3095
    %v3160 = vpack.c.b16 %v3100, %v3096
    %v3161 = vpack.c.b16 %v3101, %v3097
    %v3162 = vpack.c.b16 %v3102, %v3098
    %v3163 = vpack.c.b16 %v3107, %v3103
    %v3164 = vpack.c.b16 %v3108, %v3104
    %v3165 = vpack.c.b16 %v3109, %v3105
    %v3166 = vpack.c.b16 %v3110, %v3106
    %v3167 = vpack.c.b16 %v3115, %v3111
    %v3168 = vpack.c.b16 %v3116, %v3112
    %v3169 = vpack.c.b16 %v3117, %v3113
    %v3170 = vpack.c.b16 %v3118, %v3114
    %v3171 = vpack.c.b16 %v3123, %v3119
    %v3172 = vpack.c.b16 %v3124, %v3120
    %v3173 = vpack.c.b16 %v3125, %v3121
    %v3174 = vpack.c.b16 %v3126, %v3122
    %v3175 = vpack.c.b16 %v3131, %v3127
    %v3176 = vpack.c.b16 %v3132, %v3128
    %v3177 = vpack.c.b16 %v3133, %v3129
    %v3178 = vpack.c.b16 %v3134, %v3130
    %v3179 = vpack.c.b16 %v3139, %v3135
    %v3180 = vpack.c.b16 %v3140, %v3136
    %v3181 = vpack.c.b16 %v3141, %v3137
    %v3182 = vpack.c.b16 %v3142, %v3138
    %v3183 = vpack.c.b16 %v3147, %v3143
    %v3184 = vpack.c.b16 %v3148, %v3144
    %v3185 = vpack.c.b16 %v3149, %v3145
    %v3186 = vpack.c.b16 %v3150, %v3146
    %v3187 = vpack.c.b16 %v3155, %v3151
    %v3188 = vpack.c.b16 %v3156, %v3152
    %v3189 = vpack.c.b16 %v3157, %v3153
    %v3190 = vpack.c.b16 %v3158, %v3154
    %3223 = vmatprep.subr.bf16.mxu0 %v3188
    %3224 = vmatpush1.bf16.msra.mxu0 %v3187
    %3225 = vmatprep.subr.bf16.mxu0 %v3184
    %3226 = vmatpush1.bf16.msra.mxu0 %v3183
    %3227 = vmatprep.subr.bf16.mxu0 %v3180
    %3228 = vmatpush1.bf16.msra.mxu0 %v3179
    %3229 = vmatprep.subr.bf16.mxu0 %v3176
    %3230 = vmatpush1.bf16.msra.mxu0 %v3175
    %3231 = vmatprep.subr.bf16.mxu0 %v3172
    %3232 = vmatpush1.bf16.msra.mxu0 %v3171
    %3233 = vmatprep.subr.bf16.mxu0 %v3168
    %3234 = vmatpush1.bf16.msra.mxu0 %v3167
    %3235 = vmatprep.subr.bf16.mxu0 %v3164
    %3236 = vmatpush1.bf16.msra.mxu0 %v3163
    %3237 = vmatprep.subr.bf16.mxu0 %v3160
    %3238 = vmatpush1.bf16.msra.mxu0 %v3159
    %3239 = vmatprep.subr.bf16.mxu0 0
    %3240 = vmatpush2.bf16.msra.mxu0 0
    %3241 = vmatprep.subr.bf16.mxu0 0
    %3242 = vmatpush2.bf16.msra.mxu0 0
    %3243 = vmatprep.subr.bf16.mxu0 0
    %3244 = vmatpush2.bf16.msra.mxu0 0
    %3245 = vmatprep.subr.bf16.mxu0 0
    %3246 = vmatpush2.bf16.msra.mxu0 0
    %3247 = vmatprep.subr.bf16.mxu0 0
    %3248 = vmatpush2.bf16.msra.mxu0 0
    %3249 = vmatprep.subr.bf16.mxu0 0
    %3250 = vmatpush2.bf16.msra.mxu0 0
    %3251 = vmatprep.subr.bf16.mxu0 0
    %3252 = vmatpush2.bf16.msra.mxu0 0
    %3253 = vmatprep.subr.bf16.mxu0 0
    %3254 = vmatpush2.bf16.msra.mxu0 0
    %3255 = vmatprep.mubr.bf16.mxu0 0
    %3256 = vmatmul.mubr.bf16.gmra.mxu0 %v3030
    %v3257 = vpop.f32.mrf.mxu0
    %v3258 = vadd.f32 0.0, %v3257
    %v3259 = vpop.f32.mrf.mxu0
    %v3260 = vadd.f32 0.0, %v3259
    %v3261 = vpop.f32.mrf.mxu0
    %v3262 = vpop.f32.mrf.mxu0
    %3263 = vdwg.mxu0
    %3264 = vmatprep.subr.bf16.mxu0 %v3190
    %3265 = vmatpush1.bf16.msra.mxu0 %v3189
    %3266 = vmatprep.subr.bf16.mxu0 %v3186
    %3267 = vmatpush1.bf16.msra.mxu0 %v3185
    %3268 = vmatprep.subr.bf16.mxu0 %v3182
    %3269 = vmatpush1.bf16.msra.mxu0 %v3181
    %3270 = vmatprep.subr.bf16.mxu0 %v3178
    %3271 = vmatpush1.bf16.msra.mxu0 %v3177
    %3272 = vmatprep.subr.bf16.mxu0 %v3174
    %3273 = vmatpush1.bf16.msra.mxu0 %v3173
    %3274 = vmatprep.subr.bf16.mxu0 %v3170
    %3275 = vmatpush1.bf16.msra.mxu0 %v3169
    %3276 = vmatprep.subr.bf16.mxu0 %v3166
    %3277 = vmatpush1.bf16.msra.mxu0 %v3165
    %3278 = vmatprep.subr.bf16.mxu0 %v3162
    %3279 = vmatpush1.bf16.msra.mxu0 %v3161
    %3280 = vmatprep.subr.bf16.mxu0 0
    %3281 = vmatpush2.bf16.msra.mxu0 0
    %3282 = vmatprep.subr.bf16.mxu0 0
    %3283 = vmatpush2.bf16.msra.mxu0 0
    %3284 = vmatprep.subr.bf16.mxu0 0
    %3285 = vmatpush2.bf16.msra.mxu0 0
    %3286 = vmatprep.subr.bf16.mxu0 0
    %3287 = vmatpush2.bf16.msra.mxu0 0
    %3288 = vmatprep.subr.bf16.mxu0 0
    %3289 = vmatpush2.bf16.msra.mxu0 0
    %3290 = vmatprep.subr.bf16.mxu0 0
    %3291 = vmatpush2.bf16.msra.mxu0 0
    %3292 = vmatprep.subr.bf16.mxu0 0
    %3293 = vmatpush2.bf16.msra.mxu0 0
    %3294 = vmatprep.subr.bf16.mxu0 0
    %3295 = vmatpush2.bf16.msra.mxu0 0
    %3296 = vmatprep.mubr.bf16.mxu0 0
    %3297 = vmatmul.mubr.bf16.gmra.mxu0 %v3030
    %v3298 = vpop.f32.mrf.mxu0
    %v3299 = vadd.f32 0.0, %v3298
    %v3300 = vpop.f32.mrf.mxu0
    %v3301 = vadd.f32 0.0, %v3300
    %v3302 = vpop.f32.mrf.mxu0
    %v3303 = vpop.f32.mrf.mxu0
    %3304 = vdwg.mxu0
    %v3309 = vcombine.low %v3258, %v3260
    %v3310 = vcombine.low %v3299, %v3301
    %v3312 = vunpack.c.l.s4 1966171168
    %v3313 = vunpack.c.0.s8 %v3312
    %v3314 = vlaneseq
    %v3315 = vshrl.u32 %v3314, 7
    %v3316 = vsub.s32 %v3313, %v3315
    %v3317 = vrot.slane %v3309, %v3316
    %v3319 = vunpack.c.l.s4 1966171168
    %v3320 = vunpack.c.0.s8 %v3319
    %v3321 = vlaneseq
    %v3322 = vshrl.u32 %v3321, 7
    %v3323 = vsub.s32 %v3320, %v3322
    %v3324 = vrot.slane %v3310, %v3323
    %v3325 = vcombine.low %v3317, %v3324
    %v3327 = vunpack.c.l.s4 1966171168
    %v3328 = vunpack.c.0.s8 %v3327
    %v3329 = vlaneseq
    %v3330 = vshrl.u32 %v3329, 7
    %v3331 = vsub.s32 %v3328, %v3330
    %v3332 = vrot.slane %v3325, %v3331
    %v3334 = vadd.f32 %v3029, %v3332
    %v3335 = vxor.u32 %v3334, 2147483648
    %v3336 = vmul.f32 %v3335, 1.442695
    %v3337 = vpow.pop %v3336
    %v3338 = vadd.f32 %v3337, 1.0
    %v3339 = vrcp.pop %v3338
    %v3340 = vmul.f32 1.0, %v3339
    %v3342 = vrot.slane %v3334, 1
    %v3344 = vxor.u32 %v3342, 2147483648
    %v3345 = vmul.f32 %v3344, 1.442695
    %v3346 = vpow.pop %v3345
    %v3347 = vadd.f32 %v3346, 1.0
    %v3348 = vrcp.pop %v3347
    %v3349 = vmul.f32 1.0, %v3348
    %v3350 = vrot.slane %v3334, 2
    %v3352 = vtanh.pop %v3350
    %v3353 = vrot.slane %v3334, 3
    %v3355 = vxor.u32 %v3353, 2147483648
    %v3356 = vmul.f32 %v3355, 1.442695
    %v3357 = vpow.pop %v3356
    %v3358 = vadd.f32 %v3357, 1.0
    %v3359 = vrcp.pop %v3358
    %v3360 = vmul.f32 1.0, %v3359
    %v3361 = vmul.f32 %v3349, %v3024
    %v3362 = vmul.f32 %v3340, %v3352
    %v3363 = vadd.f32 %v3361, %v3362
    %v3364 = vtanh.pop %v3363
    %v3365 = vmul.f32 %v3360, %v3364
    %3366 = vst [vmem:[#allocation3 + $0x6] sm:$0x1] %v3365
    %s3367 = scalar_lea.vmem [#allocation2], 7
    %v3368 = vld [vmem:[%s3367] ss:$8 sm:$0xf]
    %v3369 = vpack.c.bf16 %v3365, %v3365
    %v3370 = vld [vmem:[#allocation16] sm:$0xff]
    %v3371 = vld [vmem:[#allocation16 + $0x8] sm:$0xff]
    %v3372 = vld [vmem:[#allocation16 + $0x10] sm:$0xff]
    %v3373 = vld [vmem:[#allocation16 + $0x18] sm:$0xff]
    %v3374 = vld [vmem:[#allocation16 + $0x20] sm:$0xff]
    %v3375 = vld [vmem:[#allocation16 + $0x28] sm:$0xff]
    %v3376 = vld [vmem:[#allocation16 + $0x30] sm:$0xff]
    %v3377 = vld [vmem:[#allocation16 + $0x38] sm:$0xff]
    %v3378 = vld [vmem:[#allocation16 + $0x40] sm:$0xff]
    %v3379 = vld [vmem:[#allocation16 + $0x48] sm:$0xff]
    %v3380 = vld [vmem:[#allocation16 + $0x50] sm:$0xff]
    %v3381 = vld [vmem:[#allocation16 + $0x58] sm:$0xff]
    %v3382 = vld [vmem:[#allocation16 + $0x60] sm:$0xff]
    %v3383 = vld [vmem:[#allocation16 + $0x68] sm:$0xff]
    %v3384 = vld [vmem:[#allocation16 + $0x70] sm:$0xff]
    %v3385 = vld [vmem:[#allocation16 + $0x78] sm:$0xff]
    %v3386 = vld [vmem:[#allocation16 + $0x80] sm:$0xff]
    %v3387 = vld [vmem:[#allocation16 + $0x88] sm:$0xff]
    %v3388 = vld [vmem:[#allocation16 + $0x90] sm:$0xff]
    %v3389 = vld [vmem:[#allocation16 + $0x98] sm:$0xff]
    %v3390 = vld [vmem:[#allocation16 + $0xa0] sm:$0xff]
    %v3391 = vld [vmem:[#allocation16 + $0xa8] sm:$0xff]
    %v3392 = vld [vmem:[#allocation16 + $0xb0] sm:$0xff]
    %v3393 = vld [vmem:[#allocation16 + $0xb8] sm:$0xff]
    %v3394 = vld [vmem:[#allocation16 + $0xc0] sm:$0xff]
    %v3395 = vld [vmem:[#allocation16 + $0xc8] sm:$0xff]
    %v3396 = vld [vmem:[#allocation16 + $0xd0] sm:$0xff]
    %v3397 = vld [vmem:[#allocation16 + $0xd8] sm:$0xff]
    %v3398 = vld [vmem:[#allocation16 + $0xe0] sm:$0xff]
    %v3399 = vld [vmem:[#allocation16 + $0xe8] sm:$0xff]
    %v3400 = vld [vmem:[#allocation16 + $0xf0] sm:$0xff]
    %v3401 = vld [vmem:[#allocation16 + $0xf8] sm:$0xff]
    %v3434 = vunpack.c.l.b16 %v3370
    %v3435 = vunpack.c.h.b16 %v3370
    %v3436 = vunpack.c.l.b16 %v3371
    %v3437 = vunpack.c.h.b16 %v3371
    %v3438 = vunpack.c.l.b16 %v3372
    %v3439 = vunpack.c.h.b16 %v3372
    %v3440 = vunpack.c.l.b16 %v3373
    %v3441 = vunpack.c.h.b16 %v3373
    %v3442 = vunpack.c.l.b16 %v3374
    %v3443 = vunpack.c.h.b16 %v3374
    %v3444 = vunpack.c.l.b16 %v3375
    %v3445 = vunpack.c.h.b16 %v3375
    %v3446 = vunpack.c.l.b16 %v3376
    %v3447 = vunpack.c.h.b16 %v3376
    %v3448 = vunpack.c.l.b16 %v3377
    %v3449 = vunpack.c.h.b16 %v3377
    %v3450 = vunpack.c.l.b16 %v3378
    %v3451 = vunpack.c.h.b16 %v3378
    %v3452 = vunpack.c.l.b16 %v3379
    %v3453 = vunpack.c.h.b16 %v3379
    %v3454 = vunpack.c.l.b16 %v3380
    %v3455 = vunpack.c.h.b16 %v3380
    %v3456 = vunpack.c.l.b16 %v3381
    %v3457 = vunpack.c.h.b16 %v3381
    %v3458 = vunpack.c.l.b16 %v3382
    %v3459 = vunpack.c.h.b16 %v3382
    %v3460 = vunpack.c.l.b16 %v3383
    %v3461 = vunpack.c.h.b16 %v3383
    %v3462 = vunpack.c.l.b16 %v3384
    %v3463 = vunpack.c.h.b16 %v3384
    %v3464 = vunpack.c.l.b16 %v3385
    %v3465 = vunpack.c.h.b16 %v3385
    %v3466 = vunpack.c.l.b16 %v3386
    %v3467 = vunpack.c.h.b16 %v3386
    %v3468 = vunpack.c.l.b16 %v3387
    %v3469 = vunpack.c.h.b16 %v3387
    %v3470 = vunpack.c.l.b16 %v3388
    %v3471 = vunpack.c.h.b16 %v3388
    %v3472 = vunpack.c.l.b16 %v3389
    %v3473 = vunpack.c.h.b16 %v3389
    %v3474 = vunpack.c.l.b16 %v3390
    %v3475 = vunpack.c.h.b16 %v3390
    %v3476 = vunpack.c.l.b16 %v3391
    %v3477 = vunpack.c.h.b16 %v3391
    %v3478 = vunpack.c.l.b16 %v3392
    %v3479 = vunpack.c.h.b16 %v3392
    %v3480 = vunpack.c.l.b16 %v3393
    %v3481 = vunpack.c.h.b16 %v3393
    %v3482 = vunpack.c.l.b16 %v3394
    %v3483 = vunpack.c.h.b16 %v3394
    %v3484 = vunpack.c.l.b16 %v3395
    %v3485 = vunpack.c.h.b16 %v3395
    %v3486 = vunpack.c.l.b16 %v3396
    %v3487 = vunpack.c.h.b16 %v3396
    %v3488 = vunpack.c.l.b16 %v3397
    %v3489 = vunpack.c.h.b16 %v3397
    %v3490 = vunpack.c.l.b16 %v3398
    %v3491 = vunpack.c.h.b16 %v3398
    %v3492 = vunpack.c.l.b16 %v3399
    %v3493 = vunpack.c.h.b16 %v3399
    %v3494 = vunpack.c.l.b16 %v3400
    %v3495 = vunpack.c.h.b16 %v3400
    %v3496 = vunpack.c.l.b16 %v3401
    %v3497 = vunpack.c.h.b16 %v3401
    %v3498 = vpack.c.b16 %v3438, %v3434
    %v3499 = vpack.c.b16 %v3439, %v3435
    %v3500 = vpack.c.b16 %v3440, %v3436
    %v3501 = vpack.c.b16 %v3441, %v3437
    %v3502 = vpack.c.b16 %v3446, %v3442
    %v3503 = vpack.c.b16 %v3447, %v3443
    %v3504 = vpack.c.b16 %v3448, %v3444
    %v3505 = vpack.c.b16 %v3449, %v3445
    %v3506 = vpack.c.b16 %v3454, %v3450
    %v3507 = vpack.c.b16 %v3455, %v3451
    %v3508 = vpack.c.b16 %v3456, %v3452
    %v3509 = vpack.c.b16 %v3457, %v3453
    %v3510 = vpack.c.b16 %v3462, %v3458
    %v3511 = vpack.c.b16 %v3463, %v3459
    %v3512 = vpack.c.b16 %v3464, %v3460
    %v3513 = vpack.c.b16 %v3465, %v3461
    %v3514 = vpack.c.b16 %v3470, %v3466
    %v3515 = vpack.c.b16 %v3471, %v3467
    %v3516 = vpack.c.b16 %v3472, %v3468
    %v3517 = vpack.c.b16 %v3473, %v3469
    %v3518 = vpack.c.b16 %v3478, %v3474
    %v3519 = vpack.c.b16 %v3479, %v3475
    %v3520 = vpack.c.b16 %v3480, %v3476
    %v3521 = vpack.c.b16 %v3481, %v3477
    %v3522 = vpack.c.b16 %v3486, %v3482
    %v3523 = vpack.c.b16 %v3487, %v3483
    %v3524 = vpack.c.b16 %v3488, %v3484
    %v3525 = vpack.c.b16 %v3489, %v3485
    %v3526 = vpack.c.b16 %v3494, %v3490
    %v3527 = vpack.c.b16 %v3495, %v3491
    %v3528 = vpack.c.b16 %v3496, %v3492
    %v3529 = vpack.c.b16 %v3497, %v3493
    %3562 = vmatprep.subr.bf16.mxu0 %v3527
    %3563 = vmatpush1.bf16.msra.mxu0 %v3526
    %3564 = vmatprep.subr.bf16.mxu0 %v3523
    %3565 = vmatpush1.bf16.msra.mxu0 %v3522
    %3566 = vmatprep.subr.bf16.mxu0 %v3519
    %3567 = vmatpush1.bf16.msra.mxu0 %v3518
    %3568 = vmatprep.subr.bf16.mxu0 %v3515
    %3569 = vmatpush1.bf16.msra.mxu0 %v3514
    %3570 = vmatprep.subr.bf16.mxu0 %v3511
    %3571 = vmatpush1.bf16.msra.mxu0 %v3510
    %3572 = vmatprep.subr.bf16.mxu0 %v3507
    %3573 = vmatpush1.bf16.msra.mxu0 %v3506
    %3574 = vmatprep.subr.bf16.mxu0 %v3503
    %3575 = vmatpush1.bf16.msra.mxu0 %v3502
    %3576 = vmatprep.subr.bf16.mxu0 %v3499
    %3577 = vmatpush1.bf16.msra.mxu0 %v3498
    %3578 = vmatprep.subr.bf16.mxu0 0
    %3579 = vmatpush2.bf16.msra.mxu0 0
    %3580 = vmatprep.subr.bf16.mxu0 0
    %3581 = vmatpush2.bf16.msra.mxu0 0
    %3582 = vmatprep.subr.bf16.mxu0 0
    %3583 = vmatpush2.bf16.msra.mxu0 0
    %3584 = vmatprep.subr.bf16.mxu0 0
    %3585 = vmatpush2.bf16.msra.mxu0 0
    %3586 = vmatprep.subr.bf16.mxu0 0
    %3587 = vmatpush2.bf16.msra.mxu0 0
    %3588 = vmatprep.subr.bf16.mxu0 0
    %3589 = vmatpush2.bf16.msra.mxu0 0
    %3590 = vmatprep.subr.bf16.mxu0 0
    %3591 = vmatpush2.bf16.msra.mxu0 0
    %3592 = vmatprep.subr.bf16.mxu0 0
    %3593 = vmatpush2.bf16.msra.mxu0 0
    %3594 = vmatprep.mubr.bf16.mxu0 0
    %3595 = vmatmul.mubr.bf16.gmra.mxu0 %v3369
    %v3596 = vpop.f32.mrf.mxu0
    %v3597 = vadd.f32 0.0, %v3596
    %v3598 = vpop.f32.mrf.mxu0
    %v3599 = vadd.f32 0.0, %v3598
    %v3600 = vpop.f32.mrf.mxu0
    %v3601 = vpop.f32.mrf.mxu0
    %3602 = vdwg.mxu0
    %3603 = vmatprep.subr.bf16.mxu0 %v3529
    %3604 = vmatpush1.bf16.msra.mxu0 %v3528
    %3605 = vmatprep.subr.bf16.mxu0 %v3525
    %3606 = vmatpush1.bf16.msra.mxu0 %v3524
    %3607 = vmatprep.subr.bf16.mxu0 %v3521
    %3608 = vmatpush1.bf16.msra.mxu0 %v3520
    %3609 = vmatprep.subr.bf16.mxu0 %v3517
    %3610 = vmatpush1.bf16.msra.mxu0 %v3516
    %3611 = vmatprep.subr.bf16.mxu0 %v3513
    %3612 = vmatpush1.bf16.msra.mxu0 %v3512
    %3613 = vmatprep.subr.bf16.mxu0 %v3509
    %3614 = vmatpush1.bf16.msra.mxu0 %v3508
    %3615 = vmatprep.subr.bf16.mxu0 %v3505
    %3616 = vmatpush1.bf16.msra.mxu0 %v3504
    %3617 = vmatprep.subr.bf16.mxu0 %v3501
    %3618 = vmatpush1.bf16.msra.mxu0 %v3500
    %3619 = vmatprep.subr.bf16.mxu0 0
    %3620 = vmatpush2.bf16.msra.mxu0 0
    %3621 = vmatprep.subr.bf16.mxu0 0
    %3622 = vmatpush2.bf16.msra.mxu0 0
    %3623 = vmatprep.subr.bf16.mxu0 0
    %3624 = vmatpush2.bf16.msra.mxu0 0
    %3625 = vmatprep.subr.bf16.mxu0 0
    %3626 = vmatpush2.bf16.msra.mxu0 0
    %3627 = vmatprep.subr.bf16.mxu0 0
    %3628 = vmatpush2.bf16.msra.mxu0 0
    %3629 = vmatprep.subr.bf16.mxu0 0
    %3630 = vmatpush2.bf16.msra.mxu0 0
    %3631 = vmatprep.subr.bf16.mxu0 0
    %3632 = vmatpush2.bf16.msra.mxu0 0
    %3633 = vmatprep.subr.bf16.mxu0 0
    %3634 = vmatpush2.bf16.msra.mxu0 0
    %3635 = vmatprep.mubr.bf16.mxu0 0
    %3636 = vmatmul.mubr.bf16.gmra.mxu0 %v3369
    %v3637 = vpop.f32.mrf.mxu0
    %v3638 = vadd.f32 0.0, %v3637
    %v3639 = vpop.f32.mrf.mxu0
    %v3640 = vadd.f32 0.0, %v3639
    %v3641 = vpop.f32.mrf.mxu0
    %v3642 = vpop.f32.mrf.mxu0
    %3643 = vdwg.mxu0
    %v3648 = vcombine.low %v3597, %v3599
    %v3649 = vcombine.low %v3638, %v3640
    %v3651 = vunpack.c.l.s4 1966171168
    %v3652 = vunpack.c.0.s8 %v3651
    %v3653 = vlaneseq
    %v3654 = vshrl.u32 %v3653, 7
    %v3655 = vsub.s32 %v3652, %v3654
    %v3656 = vrot.slane %v3648, %v3655
    %v3658 = vunpack.c.l.s4 1966171168
    %v3659 = vunpack.c.0.s8 %v3658
    %v3660 = vlaneseq
    %v3661 = vshrl.u32 %v3660, 7
    %v3662 = vsub.s32 %v3659, %v3661
    %v3663 = vrot.slane %v3649, %v3662
    %v3664 = vcombine.low %v3656, %v3663
    %v3666 = vunpack.c.l.s4 1966171168
    %v3667 = vunpack.c.0.s8 %v3666
    %v3668 = vlaneseq
    %v3669 = vshrl.u32 %v3668, 7
    %v3670 = vsub.s32 %v3667, %v3669
    %v3671 = vrot.slane %v3664, %v3670
    %v3673 = vadd.f32 %v3368, %v3671
    %v3674 = vxor.u32 %v3673, 2147483648
    %v3675 = vmul.f32 %v3674, 1.442695
    %v3676 = vpow.pop %v3675
    %v3677 = vadd.f32 %v3676, 1.0
    %v3678 = vrcp.pop %v3677
    %v3679 = vmul.f32 1.0, %v3678
    %v3681 = vrot.slane %v3673, 1
    %v3683 = vxor.u32 %v3681, 2147483648
    %v3684 = vmul.f32 %v3683, 1.442695
    %v3685 = vpow.pop %v3684
    %v3686 = vadd.f32 %v3685, 1.0
    %v3687 = vrcp.pop %v3686
    %v3688 = vmul.f32 1.0, %v3687
    %v3689 = vrot.slane %v3673, 2
    %v3691 = vtanh.pop %v3689
    %v3692 = vrot.slane %v3673, 3
    %v3694 = vxor.u32 %v3692, 2147483648
    %v3695 = vmul.f32 %v3694, 1.442695
    %v3696 = vpow.pop %v3695
    %v3697 = vadd.f32 %v3696, 1.0
    %v3698 = vrcp.pop %v3697
    %v3699 = vmul.f32 1.0, %v3698
    %v3700 = vmul.f32 %v3688, %v3363
    %v3701 = vmul.f32 %v3679, %v3691
    %v3702 = vadd.f32 %v3700, %v3701
    %v3703 = vtanh.pop %v3702
    %v3704 = vmul.f32 %v3699, %v3703
    %3705 = vst [vmem:[#allocation3 + $0x7] sm:$0x1] %v3704
    %v3706 = vld [vmem:[#allocation3] sm:$0xff]
    %v3707 = vpack.c.bf16 %v3706, %v3706
    %v3708 = vld [vmem:[#allocation18] sm:$0xff]
    %v3709 = vld [vmem:[#allocation18 + $0x8] sm:$0xff]
    %v3710 = vld [vmem:[#allocation18 + $0x10] sm:$0xff]
    %v3711 = vld [vmem:[#allocation18 + $0x18] sm:$0xff]
    %v3712 = vld [vmem:[#allocation18 + $0x20] sm:$0xff]
    %v3713 = vld [vmem:[#allocation18 + $0x28] sm:$0xff]
    %v3714 = vld [vmem:[#allocation18 + $0x30] sm:$0xff]
    %v3715 = vld [vmem:[#allocation18 + $0x38] sm:$0xff]
    %v3716 = vld [vmem:[#allocation18 + $0x40] sm:$0xff]
    %v3717 = vld [vmem:[#allocation18 + $0x48] sm:$0xff]
    %v3718 = vld [vmem:[#allocation18 + $0x50] sm:$0xff]
    %v3719 = vld [vmem:[#allocation18 + $0x58] sm:$0xff]
    %v3720 = vld [vmem:[#allocation18 + $0x60] sm:$0xff]
    %v3721 = vld [vmem:[#allocation18 + $0x68] sm:$0xff]
    %v3722 = vld [vmem:[#allocation18 + $0x70] sm:$0xff]
    %v3723 = vld [vmem:[#allocation18 + $0x78] sm:$0xff]
    %v3724 = vld [vmem:[#allocation18 + $0x80] sm:$0xff]
    %v3725 = vld [vmem:[#allocation18 + $0x88] sm:$0xff]
    %v3726 = vld [vmem:[#allocation18 + $0x90] sm:$0xff]
    %v3727 = vld [vmem:[#allocation18 + $0x98] sm:$0xff]
    %v3728 = vld [vmem:[#allocation18 + $0xa0] sm:$0xff]
    %v3729 = vld [vmem:[#allocation18 + $0xa8] sm:$0xff]
    %v3730 = vld [vmem:[#allocation18 + $0xb0] sm:$0xff]
    %v3731 = vld [vmem:[#allocation18 + $0xb8] sm:$0xff]
    %v3732 = vld [vmem:[#allocation18 + $0xc0] sm:$0xff]
    %v3733 = vld [vmem:[#allocation18 + $0xc8] sm:$0xff]
    %v3734 = vld [vmem:[#allocation18 + $0xd0] sm:$0xff]
    %v3735 = vld [vmem:[#allocation18 + $0xd8] sm:$0xff]
    %v3736 = vld [vmem:[#allocation18 + $0xe0] sm:$0xff]
    %v3737 = vld [vmem:[#allocation18 + $0xe8] sm:$0xff]
    %v3738 = vld [vmem:[#allocation18 + $0xf0] sm:$0xff]
    %v3739 = vld [vmem:[#allocation18 + $0xf8] sm:$0xff]
    %v3740 = vld [vmem:[#allocation18 + $0x100] sm:$0xff]
    %v3741 = vld [vmem:[#allocation18 + $0x108] sm:$0xff]
    %v3742 = vld [vmem:[#allocation18 + $0x110] sm:$0xff]
    %v3743 = vld [vmem:[#allocation18 + $0x118] sm:$0xff]
    %v3744 = vld [vmem:[#allocation18 + $0x120] sm:$0xff]
    %v3745 = vld [vmem:[#allocation18 + $0x128] sm:$0xff]
    %v3746 = vld [vmem:[#allocation18 + $0x130] sm:$0xff]
    %v3747 = vld [vmem:[#allocation18 + $0x138] sm:$0xff]
    %v3748 = vld [vmem:[#allocation18 + $0x140] sm:$0xff]
    %v3749 = vld [vmem:[#allocation18 + $0x148] sm:$0xff]
    %v3750 = vld [vmem:[#allocation18 + $0x150] sm:$0xff]
    %v3751 = vld [vmem:[#allocation18 + $0x158] sm:$0xff]
    %v3752 = vld [vmem:[#allocation18 + $0x160] sm:$0xff]
    %v3753 = vld [vmem:[#allocation18 + $0x168] sm:$0xff]
    %v3754 = vld [vmem:[#allocation18 + $0x170] sm:$0xff]
    %v3755 = vld [vmem:[#allocation18 + $0x178] sm:$0xff]
    %v3756 = vld [vmem:[#allocation18 + $0x180] sm:$0xff]
    %v3757 = vld [vmem:[#allocation18 + $0x188] sm:$0xff]
    %v3758 = vld [vmem:[#allocation18 + $0x190] sm:$0xff]
    %v3759 = vld [vmem:[#allocation18 + $0x198] sm:$0xff]
    %v3760 = vld [vmem:[#allocation18 + $0x1a0] sm:$0xff]
    %v3761 = vld [vmem:[#allocation18 + $0x1a8] sm:$0xff]
    %v3762 = vld [vmem:[#allocation18 + $0x1b0] sm:$0xff]
    %v3763 = vld [vmem:[#allocation18 + $0x1b8] sm:$0xff]
    %v3764 = vld [vmem:[#allocation18 + $0x1c0] sm:$0xff]
    %v3765 = vld [vmem:[#allocation18 + $0x1c8] sm:$0xff]
    %v3766 = vld [vmem:[#allocation18 + $0x1d0] sm:$0xff]
    %v3767 = vld [vmem:[#allocation18 + $0x1d8] sm:$0xff]
    %v3768 = vld [vmem:[#allocation18 + $0x1e0] sm:$0xff]
    %v3769 = vld [vmem:[#allocation18 + $0x1e8] sm:$0xff]
    %v3770 = vld [vmem:[#allocation18 + $0x1f0] sm:$0xff]
    %v3771 = vld [vmem:[#allocation18 + $0x1f8] sm:$0xff]
    %v3772 = vld [vmem:[%s14] sm:$0xff]
    %v3774 = vlaneseq
    %v3775 = vshrl.u32 %v3774, 7
    %v3776 = vsub.s32 0, %v3775
    %v3777 = vrot.slane %v3772, %v3776
    %v3778 = vlaneseq
    %v3779 = vshrl.u32 %v3778, 7
    %v3780 = vsub.s32 1, %v3779
    %v3781 = vrot.slane %v3772, %v3780
    %v3782 = vlaneseq
    %v3783 = vshrl.u32 %v3782, 7
    %v3784 = vsub.s32 2, %v3783
    %v3785 = vrot.slane %v3772, %v3784
    %v3786 = vlaneseq
    %v3787 = vshrl.u32 %v3786, 7
    %v3788 = vsub.s32 3, %v3787
    %v3789 = vrot.slane %v3772, %v3788
    %v3790 = vlaneseq
    %v3791 = vshrl.u32 %v3790, 7
    %v3792 = vsub.s32 4, %v3791
    %v3793 = vrot.slane %v3772, %v3792
    %v3794 = vlaneseq
    %v3795 = vshrl.u32 %v3794, 7
    %v3796 = vsub.s32 5, %v3795
    %v3797 = vrot.slane %v3772, %v3796
    %v3798 = vlaneseq
    %v3799 = vshrl.u32 %v3798, 7
    %v3800 = vsub.s32 6, %v3799
    %v3801 = vrot.slane %v3772, %v3800
    %v3802 = vlaneseq
    %v3803 = vshrl.u32 %v3802, 7
    %v3804 = vsub.s32 7, %v3803
    %v3805 = vrot.slane %v3772, %v3804
    %v3878 = vunpack.c.l.b16 %v3708
    %v3879 = vunpack.c.h.b16 %v3708
    %v3880 = vunpack.c.l.b16 %v3709
    %v3881 = vunpack.c.h.b16 %v3709
    %v3882 = vunpack.c.l.b16 %v3710
    %v3883 = vunpack.c.h.b16 %v3710
    %v3884 = vunpack.c.l.b16 %v3711
    %v3885 = vunpack.c.h.b16 %v3711
    %v3886 = vunpack.c.l.b16 %v3712
    %v3887 = vunpack.c.h.b16 %v3712
    %v3888 = vunpack.c.l.b16 %v3713
    %v3889 = vunpack.c.h.b16 %v3713
    %v3890 = vunpack.c.l.b16 %v3714
    %v3891 = vunpack.c.h.b16 %v3714
    %v3892 = vunpack.c.l.b16 %v3715
    %v3893 = vunpack.c.h.b16 %v3715
    %v3894 = vunpack.c.l.b16 %v3716
    %v3895 = vunpack.c.h.b16 %v3716
    %v3896 = vunpack.c.l.b16 %v3717
    %v3897 = vunpack.c.h.b16 %v3717
    %v3898 = vunpack.c.l.b16 %v3718
    %v3899 = vunpack.c.h.b16 %v3718
    %v3900 = vunpack.c.l.b16 %v3719
    %v3901 = vunpack.c.h.b16 %v3719
    %v3902 = vunpack.c.l.b16 %v3720
    %v3903 = vunpack.c.h.b16 %v3720
    %v3904 = vunpack.c.l.b16 %v3721
    %v3905 = vunpack.c.h.b16 %v3721
    %v3906 = vunpack.c.l.b16 %v3722
    %v3907 = vunpack.c.h.b16 %v3722
    %v3908 = vunpack.c.l.b16 %v3723
    %v3909 = vunpack.c.h.b16 %v3723
    %v3910 = vunpack.c.l.b16 %v3724
    %v3911 = vunpack.c.h.b16 %v3724
    %v3912 = vunpack.c.l.b16 %v3725
    %v3913 = vunpack.c.h.b16 %v3725
    %v3914 = vunpack.c.l.b16 %v3726
    %v3915 = vunpack.c.h.b16 %v3726
    %v3916 = vunpack.c.l.b16 %v3727
    %v3917 = vunpack.c.h.b16 %v3727
    %v3918 = vunpack.c.l.b16 %v3728
    %v3919 = vunpack.c.h.b16 %v3728
    %v3920 = vunpack.c.l.b16 %v3729
    %v3921 = vunpack.c.h.b16 %v3729
    %v3922 = vunpack.c.l.b16 %v3730
    %v3923 = vunpack.c.h.b16 %v3730
    %v3924 = vunpack.c.l.b16 %v3731
    %v3925 = vunpack.c.h.b16 %v3731
    %v3926 = vunpack.c.l.b16 %v3732
    %v3927 = vunpack.c.h.b16 %v3732
    %v3928 = vunpack.c.l.b16 %v3733
    %v3929 = vunpack.c.h.b16 %v3733
    %v3930 = vunpack.c.l.b16 %v3734
    %v3931 = vunpack.c.h.b16 %v3734
    %v3932 = vunpack.c.l.b16 %v3735
    %v3933 = vunpack.c.h.b16 %v3735
    %v3934 = vunpack.c.l.b16 %v3736
    %v3935 = vunpack.c.h.b16 %v3736
    %v3936 = vunpack.c.l.b16 %v3737
    %v3937 = vunpack.c.h.b16 %v3737
    %v3938 = vunpack.c.l.b16 %v3738
    %v3939 = vunpack.c.h.b16 %v3738
    %v3940 = vunpack.c.l.b16 %v3739
    %v3941 = vunpack.c.h.b16 %v3739
    %v3942 = vunpack.c.l.b16 %v3740
    %v3943 = vunpack.c.h.b16 %v3740
    %v3944 = vunpack.c.l.b16 %v3741
    %v3945 = vunpack.c.h.b16 %v3741
    %v3946 = vunpack.c.l.b16 %v3742
    %v3947 = vunpack.c.h.b16 %v3742
    %v3948 = vunpack.c.l.b16 %v3743
    %v3949 = vunpack.c.h.b16 %v3743
    %v3950 = vunpack.c.l.b16 %v3744
    %v3951 = vunpack.c.h.b16 %v3744
    %v3952 = vunpack.c.l.b16 %v3745
    %v3953 = vunpack.c.h.b16 %v3745
    %v3954 = vunpack.c.l.b16 %v3746
    %v3955 = vunpack.c.h.b16 %v3746
    %v3956 = vunpack.c.l.b16 %v3747
    %v3957 = vunpack.c.h.b16 %v3747
    %v3958 = vunpack.c.l.b16 %v3748
    %v3959 = vunpack.c.h.b16 %v3748
    %v3960 = vunpack.c.l.b16 %v3749
    %v3961 = vunpack.c.h.b16 %v3749
    %v3962 = vunpack.c.l.b16 %v3750
    %v3963 = vunpack.c.h.b16 %v3750
    %v3964 = vunpack.c.l.b16 %v3751
    %v3965 = vunpack.c.h.b16 %v3751
    %v3966 = vunpack.c.l.b16 %v3752
    %v3967 = vunpack.c.h.b16 %v3752
    %v3968 = vunpack.c.l.b16 %v3753
    %v3969 = vunpack.c.h.b16 %v3753
    %v3970 = vunpack.c.l.b16 %v3754
    %v3971 = vunpack.c.h.b16 %v3754
    %v3972 = vunpack.c.l.b16 %v3755
    %v3973 = vunpack.c.h.b16 %v3755
    %v3974 = vunpack.c.l.b16 %v3756
    %v3975 = vunpack.c.h.b16 %v3756
    %v3976 = vunpack.c.l.b16 %v3757
    %v3977 = vunpack.c.h.b16 %v3757
    %v3978 = vunpack.c.l.b16 %v3758
    %v3979 = vunpack.c.h.b16 %v3758
    %v3980 = vunpack.c.l.b16 %v3759
    %v3981 = vunpack.c.h.b16 %v3759
    %v3982 = vunpack.c.l.b16 %v3760
    %v3983 = vunpack.c.h.b16 %v3760
    %v3984 = vunpack.c.l.b16 %v3761
    %v3985 = vunpack.c.h.b16 %v3761
    %v3986 = vunpack.c.l.b16 %v3762
    %v3987 = vunpack.c.h.b16 %v3762
    %v3988 = vunpack.c.l.b16 %v3763
    %v3989 = vunpack.c.h.b16 %v3763
    %v3990 = vunpack.c.l.b16 %v3764
    %v3991 = vunpack.c.h.b16 %v3764
    %v3992 = vunpack.c.l.b16 %v3765
    %v3993 = vunpack.c.h.b16 %v3765
    %v3994 = vunpack.c.l.b16 %v3766
    %v3995 = vunpack.c.h.b16 %v3766
    %v3996 = vunpack.c.l.b16 %v3767
    %v3997 = vunpack.c.h.b16 %v3767
    %v3998 = vunpack.c.l.b16 %v3768
    %v3999 = vunpack.c.h.b16 %v3768
    %v4000 = vunpack.c.l.b16 %v3769
    %v4001 = vunpack.c.h.b16 %v3769
    %v4002 = vunpack.c.l.b16 %v3770
    %v4003 = vunpack.c.h.b16 %v3770
    %v4004 = vunpack.c.l.b16 %v3771
    %v4005 = vunpack.c.h.b16 %v3771
    %v4006 = vpack.c.b16 %v3886, %v3878
    %v4007 = vpack.c.b16 %v3887, %v3879
    %v4008 = vpack.c.b16 %v3888, %v3880
    %v4009 = vpack.c.b16 %v3889, %v3881
    %v4010 = vpack.c.b16 %v3890, %v3882
    %v4011 = vpack.c.b16 %v3891, %v3883
    %v4012 = vpack.c.b16 %v3892, %v3884
    %v4013 = vpack.c.b16 %v3893, %v3885
    %v4014 = vpack.c.b16 %v3902, %v3894
    %v4015 = vpack.c.b16 %v3903, %v3895
    %v4016 = vpack.c.b16 %v3904, %v3896
    %v4017 = vpack.c.b16 %v3905, %v3897
    %v4018 = vpack.c.b16 %v3906, %v3898
    %v4019 = vpack.c.b16 %v3907, %v3899
    %v4020 = vpack.c.b16 %v3908, %v3900
    %v4021 = vpack.c.b16 %v3909, %v3901
    %v4022 = vpack.c.b16 %v3918, %v3910
    %v4023 = vpack.c.b16 %v3919, %v3911
    %v4024 = vpack.c.b16 %v3920, %v3912
    %v4025 = vpack.c.b16 %v3921, %v3913
    %v4026 = vpack.c.b16 %v3922, %v3914
    %v4027 = vpack.c.b16 %v3923, %v3915
    %v4028 = vpack.c.b16 %v3924, %v3916
    %v4029 = vpack.c.b16 %v3925, %v3917
    %v4030 = vpack.c.b16 %v3934, %v3926
    %v4031 = vpack.c.b16 %v3935, %v3927
    %v4032 = vpack.c.b16 %v3936, %v3928
    %v4033 = vpack.c.b16 %v3937, %v3929
    %v4034 = vpack.c.b16 %v3938, %v3930
    %v4035 = vpack.c.b16 %v3939, %v3931
    %v4036 = vpack.c.b16 %v3940, %v3932
    %v4037 = vpack.c.b16 %v3941, %v3933
    %v4038 = vpack.c.b16 %v3950, %v3942
    %v4039 = vpack.c.b16 %v3951, %v3943
    %v4040 = vpack.c.b16 %v3952, %v3944
    %v4041 = vpack.c.b16 %v3953, %v3945
    %v4042 = vpack.c.b16 %v3954, %v3946
    %v4043 = vpack.c.b16 %v3955, %v3947
    %v4044 = vpack.c.b16 %v3956, %v3948
    %v4045 = vpack.c.b16 %v3957, %v3949
    %v4046 = vpack.c.b16 %v3966, %v3958
    %v4047 = vpack.c.b16 %v3967, %v3959
    %v4048 = vpack.c.b16 %v3968, %v3960
    %v4049 = vpack.c.b16 %v3969, %v3961
    %v4050 = vpack.c.b16 %v3970, %v3962
    %v4051 = vpack.c.b16 %v3971, %v3963
    %v4052 = vpack.c.b16 %v3972, %v3964
    %v4053 = vpack.c.b16 %v3973, %v3965
    %v4054 = vpack.c.b16 %v3982, %v3974
    %v4055 = vpack.c.b16 %v3983, %v3975
    %v4056 = vpack.c.b16 %v3984, %v3976
    %v4057 = vpack.c.b16 %v3985, %v3977
    %v4058 = vpack.c.b16 %v3986, %v3978
    %v4059 = vpack.c.b16 %v3987, %v3979
    %v4060 = vpack.c.b16 %v3988, %v3980
    %v4061 = vpack.c.b16 %v3989, %v3981
    %v4062 = vpack.c.b16 %v3998, %v3990
    %v4063 = vpack.c.b16 %v3999, %v3991
    %v4064 = vpack.c.b16 %v4000, %v3992
    %v4065 = vpack.c.b16 %v4001, %v3993
    %v4066 = vpack.c.b16 %v4002, %v3994
    %v4067 = vpack.c.b16 %v4003, %v3995
    %v4068 = vpack.c.b16 %v4004, %v3996
    %v4069 = vpack.c.b16 %v4005, %v3997
    %4134 = vmatprep.subr.bf16.mxu0 %v4063
    %4135 = vmatpush1.bf16.msra.mxu0 %v4062
    %4136 = vmatprep.subr.bf16.mxu0 %v4055
    %4137 = vmatpush1.bf16.msra.mxu0 %v4054
    %4138 = vmatprep.subr.bf16.mxu0 %v4047
    %4139 = vmatpush1.bf16.msra.mxu0 %v4046
    %4140 = vmatprep.subr.bf16.mxu0 %v4039
    %4141 = vmatpush1.bf16.msra.mxu0 %v4038
    %4142 = vmatprep.subr.bf16.mxu0 %v4031
    %4143 = vmatpush1.bf16.msra.mxu0 %v4030
    %4144 = vmatprep.subr.bf16.mxu0 %v4023
    %4145 = vmatpush1.bf16.msra.mxu0 %v4022
    %4146 = vmatprep.subr.bf16.mxu0 %v4015
    %4147 = vmatpush1.bf16.msra.mxu0 %v4014
    %4148 = vmatprep.subr.bf16.mxu0 %v4007
    %4149 = vmatpush1.bf16.msra.mxu0 %v4006
    %4150 = vmatprep.subr.bf16.mxu0 0
    %4151 = vmatpush2.bf16.msra.mxu0 0
    %4152 = vmatprep.subr.bf16.mxu0 0
    %4153 = vmatpush2.bf16.msra.mxu0 0
    %4154 = vmatprep.subr.bf16.mxu0 0
    %4155 = vmatpush2.bf16.msra.mxu0 0
    %4156 = vmatprep.subr.bf16.mxu0 0
    %4157 = vmatpush2.bf16.msra.mxu0 0
    %4158 = vmatprep.subr.bf16.mxu0 0
    %4159 = vmatpush2.bf16.msra.mxu0 0
    %4160 = vmatprep.subr.bf16.mxu0 0
    %4161 = vmatpush2.bf16.msra.mxu0 0
    %4162 = vmatprep.subr.bf16.mxu0 0
    %4163 = vmatpush2.bf16.msra.mxu0 0
    %4164 = vmatprep.subr.bf16.mxu0 0
    %4165 = vmatpush2.bf16.msra.mxu0 0
    %4166 = vmatprep.mubr.bf16.mxu0 0
    %4167 = vmatmul.mubr.bf16.gmra.mxu0 %v3707
    %v4168 = vpop.f32.mrf.mxu0
    %v4169 = vadd.f32 %v3777, %v4168
    %v4170 = vpop.f32.mrf.mxu0
    %v4171 = vadd.f32 %v3781, %v4170
    %v4172 = vpop.f32.mrf.mxu0
    %v4173 = vpop.f32.mrf.mxu0
    %4174 = vdwg.mxu0
    %4175 = vmatprep.subr.bf16.mxu0 %v4065
    %4176 = vmatpush1.bf16.msra.mxu0 %v4064
    %4177 = vmatprep.subr.bf16.mxu0 %v4057
    %4178 = vmatpush1.bf16.msra.mxu0 %v4056
    %4179 = vmatprep.subr.bf16.mxu0 %v4049
    %4180 = vmatpush1.bf16.msra.mxu0 %v4048
    %4181 = vmatprep.subr.bf16.mxu0 %v4041
    %4182 = vmatpush1.bf16.msra.mxu0 %v4040
    %4183 = vmatprep.subr.bf16.mxu0 %v4033
    %4184 = vmatpush1.bf16.msra.mxu0 %v4032
    %4185 = vmatprep.subr.bf16.mxu0 %v4025
    %4186 = vmatpush1.bf16.msra.mxu0 %v4024
    %4187 = vmatprep.subr.bf16.mxu0 %v4017
    %4188 = vmatpush1.bf16.msra.mxu0 %v4016
    %4189 = vmatprep.subr.bf16.mxu0 %v4009
    %4190 = vmatpush1.bf16.msra.mxu0 %v4008
    %4191 = vmatprep.subr.bf16.mxu0 0
    %4192 = vmatpush2.bf16.msra.mxu0 0
    %4193 = vmatprep.subr.bf16.mxu0 0
    %4194 = vmatpush2.bf16.msra.mxu0 0
    %4195 = vmatprep.subr.bf16.mxu0 0
    %4196 = vmatpush2.bf16.msra.mxu0 0
    %4197 = vmatprep.subr.bf16.mxu0 0
    %4198 = vmatpush2.bf16.msra.mxu0 0
    %4199 = vmatprep.subr.bf16.mxu0 0
    %4200 = vmatpush2.bf16.msra.mxu0 0
    %4201 = vmatprep.subr.bf16.mxu0 0
    %4202 = vmatpush2.bf16.msra.mxu0 0
    %4203 = vmatprep.subr.bf16.mxu0 0
    %4204 = vmatpush2.bf16.msra.mxu0 0
    %4205 = vmatprep.subr.bf16.mxu0 0
    %4206 = vmatpush2.bf16.msra.mxu0 0
    %4207 = vmatprep.mubr.bf16.mxu0 0
    %4208 = vmatmul.mubr.bf16.gmra.mxu0 %v3707
    %v4209 = vpop.f32.mrf.mxu0
    %v4210 = vadd.f32 %v3785, %v4209
    %v4211 = vpop.f32.mrf.mxu0
    %v4212 = vadd.f32 %v3789, %v4211
    %v4213 = vpop.f32.mrf.mxu0
    %v4214 = vpop.f32.mrf.mxu0
    %4215 = vdwg.mxu0
    %4216 = vmatprep.subr.bf16.mxu0 %v4067
    %4217 = vmatpush1.bf16.msra.mxu0 %v4066
    %4218 = vmatprep.subr.bf16.mxu0 %v4059
    %4219 = vmatpush1.bf16.msra.mxu0 %v4058
    %4220 = vmatprep.subr.bf16.mxu0 %v4051
    %4221 = vmatpush1.bf16.msra.mxu0 %v4050
    %4222 = vmatprep.subr.bf16.mxu0 %v4043
    %4223 = vmatpush1.bf16.msra.mxu0 %v4042
    %4224 = vmatprep.subr.bf16.mxu0 %v4035
    %4225 = vmatpush1.bf16.msra.mxu0 %v4034
    %4226 = vmatprep.subr.bf16.mxu0 %v4027
    %4227 = vmatpush1.bf16.msra.mxu0 %v4026
    %4228 = vmatprep.subr.bf16.mxu0 %v4019
    %4229 = vmatpush1.bf16.msra.mxu0 %v4018
    %4230 = vmatprep.subr.bf16.mxu0 %v4011
    %4231 = vmatpush1.bf16.msra.mxu0 %v4010
    %4232 = vmatprep.subr.bf16.mxu0 0
    %4233 = vmatpush2.bf16.msra.mxu0 0
    %4234 = vmatprep.subr.bf16.mxu0 0
    %4235 = vmatpush2.bf16.msra.mxu0 0
    %4236 = vmatprep.subr.bf16.mxu0 0
    %4237 = vmatpush2.bf16.msra.mxu0 0
    %4238 = vmatprep.subr.bf16.mxu0 0
    %4239 = vmatpush2.bf16.msra.mxu0 0
    %4240 = vmatprep.subr.bf16.mxu0 0
    %4241 = vmatpush2.bf16.msra.mxu0 0
    %4242 = vmatprep.subr.bf16.mxu0 0
    %4243 = vmatpush2.bf16.msra.mxu0 0
    %4244 = vmatprep.subr.bf16.mxu0 0
    %4245 = vmatpush2.bf16.msra.mxu0 0
    %4246 = vmatprep.subr.bf16.mxu0 0
    %4247 = vmatpush2.bf16.msra.mxu0 0
    %4248 = vmatprep.mubr.bf16.mxu0 0
    %4249 = vmatmul.mubr.bf16.gmra.mxu0 %v3707
    %v4250 = vpop.f32.mrf.mxu0
    %v4251 = vadd.f32 %v3793, %v4250
    %v4252 = vpop.f32.mrf.mxu0
    %v4253 = vadd.f32 %v3797, %v4252
    %v4254 = vpop.f32.mrf.mxu0
    %v4255 = vpop.f32.mrf.mxu0
    %4256 = vdwg.mxu0
    %4257 = vmatprep.subr.bf16.mxu0 %v4069
    %4258 = vmatpush1.bf16.msra.mxu0 %v4068
    %4259 = vmatprep.subr.bf16.mxu0 %v4061
    %4260 = vmatpush1.bf16.msra.mxu0 %v4060
    %4261 = vmatprep.subr.bf16.mxu0 %v4053
    %4262 = vmatpush1.bf16.msra.mxu0 %v4052
    %4263 = vmatprep.subr.bf16.mxu0 %v4045
    %4264 = vmatpush1.bf16.msra.mxu0 %v4044
    %4265 = vmatprep.subr.bf16.mxu0 %v4037
    %4266 = vmatpush1.bf16.msra.mxu0 %v4036
    %4267 = vmatprep.subr.bf16.mxu0 %v4029
    %4268 = vmatpush1.bf16.msra.mxu0 %v4028
    %4269 = vmatprep.subr.bf16.mxu0 %v4021
    %4270 = vmatpush1.bf16.msra.mxu0 %v4020
    %4271 = vmatprep.subr.bf16.mxu0 %v4013
    %4272 = vmatpush1.bf16.msra.mxu0 %v4012
    %4273 = vmatprep.subr.bf16.mxu0 0
    %4274 = vmatpush2.bf16.msra.mxu0 0
    %4275 = vmatprep.subr.bf16.mxu0 0
    %4276 = vmatpush2.bf16.msra.mxu0 0
    %4277 = vmatprep.subr.bf16.mxu0 0
    %4278 = vmatpush2.bf16.msra.mxu0 0
    %4279 = vmatprep.subr.bf16.mxu0 0
    %4280 = vmatpush2.bf16.msra.mxu0 0
    %4281 = vmatprep.subr.bf16.mxu0 0
    %4282 = vmatpush2.bf16.msra.mxu0 0
    %4283 = vmatprep.subr.bf16.mxu0 0
    %4284 = vmatpush2.bf16.msra.mxu0 0
    %4285 = vmatprep.subr.bf16.mxu0 0
    %4286 = vmatpush2.bf16.msra.mxu0 0
    %4287 = vmatprep.subr.bf16.mxu0 0
    %4288 = vmatpush2.bf16.msra.mxu0 0
    %4289 = vmatprep.mubr.bf16.mxu0 0
    %4290 = vmatmul.mubr.bf16.gmra.mxu0 %v3707
    %v4291 = vpop.f32.mrf.mxu0
    %v4292 = vadd.f32 %v3801, %v4291
    %v4293 = vpop.f32.mrf.mxu0
    %v4294 = vadd.f32 %v3805, %v4293
    %v4295 = vpop.f32.mrf.mxu0
    %v4296 = vpop.f32.mrf.mxu0
    %4297 = vdwg.mxu0
    %4298 = vst [vmem:[#allocation19] sm:$0xff] %v4169
    %4299 = vst [vmem:[#allocation19 + $0x8] sm:$0xff] %v4171
    %4300 = vst [vmem:[#allocation19 + $0x10] sm:$0xff] %v4210
    %4301 = vst [vmem:[#allocation19 + $0x18] sm:$0xff] %v4212
    %4302 = vst [vmem:[#allocation19 + $0x20] sm:$0xff] %v4251
    %4303 = vst [vmem:[#allocation19 + $0x28] sm:$0xff] %v4253
    %4304 = vst [vmem:[#allocation19 + $0x30] sm:$0xff] %v4292
    %4305 = vst [vmem:[#allocation19 + $0x38] sm:$0xff] %v4294
    // Predicated region
    $region98: #{tpu_custom_call.1} parent=1 // pred_check
      _
    $region99: #{tpu_custom_call.1} parent=1 // pred_check_branch
      %4307 = sbr.rel (0) target = $region101
    $region100: #{tpu_custom_call.1} parent=1 // pred_region
      %s4309 = ssub.s32 1024, 1024
      %4310 = vsyncadd [#allocation6], %s4309
      %s4312 = sshll.u32 [#allocation19], 4
      %s4313 = int_to_ptr.vmem [resolvable:$true] %s4312
      %4315 = dma.vmem_to_hbm [thread:$0]  %s4313, 1024, %s15, [#allocation6]
    $region101: #{tpu_custom_call.1} parent=1 // pred_fallthru
      _
    // Predicated region
    $region102: #{tpu_custom_call.1} parent=1 // pred_check
      _
    $region103: #{tpu_custom_call.1} parent=1 // pred_check_branch
      %4317 = sbr.rel (0) target = $region105
    $region104: #{tpu_custom_call.1} parent=1 // pred_region
      %4318 = dma.done [#allocation6], 1024
    $region105: #{tpu_custom_call.1} parent=1 // pred_fallthru
      _
    %4319 = vsyncpa [#allocation5], 1
    %4320 = vsyncpa [#allocation8], 1
    %4321 = vsyncpa [#allocation11], 1
    %4322 = vsyncpa [#allocation14], 1
    %4323 = vsyncpa [#allocation17], 1
    %4324 = vsyncpa [#allocation6], 1

</llo_original>
